<compile_context>
chip_gen: v6e
topology: v6e:2x2x1
jax: 0.10.0
libtpu: 0.0.40
codegen_flags: <defaults>
</compile_context>

<pallas_src>
import math

import jax
import jax.numpy as jnp
from jax.experimental import pallas as pl
from jax.experimental.pallas import tpu as pltpu

# ---------------- static config (small shapes consistent with the module) ----
B, T = 2, 3                 # batch, temporal length (seq_length)
IMG, P, C_IN = 16, 8, 3     # image size, patch size, image channels
D = 8                       # ViT hidden_dim (module passes `in_channels` as hidden_dim)
H_HEADS = 2                 # num_heads (must divide D)
DH = D // H_HEADS           # 4
MLP = 32                    # mlp_dim
L = 2                       # num_layers
NC = 1                      # num_classes
NPATCH = (IMG // P) ** 2    # 4
S = NPATCH + 1              # 5 tokens incl. class token
S_PAD = 8                   # padded token count (sublane tile aligned)
N = B * T                   # 6 samples
NSP = N * S_PAD             # 48 token rows total
CP2 = C_IN * P * P          # 192
EPS = 1e-6                  # torchvision ViT LayerNorm eps
NEG = -1e30                 # additive mask value for masked attention entries
HIGH = jax.lax.Precision.HIGHEST   # used only by the pure-JAX reference

# --------- packed-slab layout constants (shared by glue and kernel) -----------
SLAB_W = 32                 # lane width of weight/bias slabs (>= 3*D and MLP)
LAYER_W_ROWS = 3 * D + MLP  # rows per layer in weight slab: wqkv | wo | w1 | w2
W_ROWS = CP2 + L * LAYER_W_ROWS
# bias slab rows 0..7: [lnfw, lnfb, wh^T, bh, 0,0,0,0]; then 8 rows per layer:
# [ln1w, ln1b, bqkv, bo, ln2w, ln2b, b1, b2]
B_ROWS = 8 + 8 * L
# const slab (lane width NSP): rows 0..H*NSP-1 = additive attention mask,
# rows H*NSP..(H+1)*NSP-1 = per-token addend (cols 0:D)
C_ROWS = (H_HEADS + 1) * NSP


# ------------------------------- Pallas kernel --------------------------------
def vit_kernel(patches_ref, w_ref, b_ref, c_ref, o_ref):
    f32 = jnp.float32

    def layer_norm(z, w, b):
        mu = jnp.mean(z, axis=-1, keepdims=True)
        var = jnp.mean(z * z, axis=-1, keepdims=True) - mu * mu
        return (z - mu) * jax.lax.rsqrt(var + EPS) * w + b

    def gelu_tanh(z):
        # tanh-approx GELU; |err| vs exact GELU << tolerance at these magnitudes
        c = math.sqrt(2.0 / math.pi)
        return 0.5 * z * (1.0 + jnp.tanh(c * (z + 0.044715 * z * z * z)))

    scale = 1.0 / math.sqrt(DH)

    # constants hoisted out of the layer unroll (loaded once, no re-broadcasts)
    mask = c_ref[0:H_HEADS * NSP, :]                         # (96, 48) additive
    addend = c_ref[H_HEADS * NSP:(H_HEADS + 1) * NSP, 0:D]   # (48, D)

    # patch embedding: single (48,192)@(192,8) matmul, default MXU precision
    x = jnp.dot(patches_ref[...], w_ref[0:CP2, 0:D],
                preferred_element_type=f32) + addend         # (48, D)

    for l in range(L):                                       # static unroll
        wb = CP2 + l * LAYER_W_ROWS
        bb = 8 + 8 * l

        # ---- multi-head self-attention block ----
        y = layer_norm(x, b_ref[bb:bb + 1, 0:D], b_ref[bb + 1:bb + 2, 0:D])
        # fused QKV: one (48,8)@(8,24) matmul + (1,24) bias
        qkv = jnp.dot(y, w_ref[wb:wb + D, 0:3 * D],
                      preferred_element_type=f32) + b_ref[bb + 2:bb + 3, 0:3 * D]

        scs, vs = [], []
        for h in range(H_HEADS):                             # static unroll
            q = qkv[:, h * DH:(h + 1) * DH] * scale          # (48, DH)
            k = qkv[:, D + h * DH:D + (h + 1) * DH]          # (48, DH)
            vs.append(qkv[:, 2 * D + h * DH:2 * D + (h + 1) * DH])
            # scores over ALL 48 token rows; cross-sample/padded-key entries
            # are killed by the block-diagonal additive mask below
            scs.append(jax.lax.dot_general(
                q, k, (((1,), (1,)), ((), ())), preferred_element_type=f32))

        # stack heads along rows -> single softmax pass over a (96,48) slab
        sc = jnp.concatenate(scs, axis=0) + mask
        sc = sc - jnp.max(sc, axis=-1, keepdims=True)        # keep before exp!
        e = jnp.exp(sc)
        a = e * pl.reciprocal(jnp.sum(e, axis=-1, keepdims=True), approx=True)

        wo_l = w_ref[wb + D:wb + 2 * D, 0:D]                 # (D, D)
        attn = None
        for h in range(H_HEADS):
            ctx = jnp.dot(a[h * NSP:(h + 1) * NSP], vs[h],
                          preferred_element_type=f32)        # (48, DH)
            # out_proj of concat(heads) == sum_h ctx_h @ Wo[rows of head h]
            proj = jnp.dot(ctx, wo_l[h * DH:(h + 1) * DH, :],
                           preferred_element_type=f32)       # (48, D)
            attn = proj if attn is None else attn + proj
        x = x + attn + b_ref[bb + 3:bb + 4, 0:D]

        # ---- MLP block ----
        y2 = layer_norm(x, b_ref[bb + 4:bb + 5, 0:D], b_ref[bb + 5:bb + 6, 0:D])
        hdn = gelu_tanh(jnp.dot(y2, w_ref[wb + 2 * D:wb + 3 * D, 0:MLP],
                                preferred_element_type=f32)
                        + b_ref[bb + 6:bb + 7, 0:MLP])
        x = x + jnp.dot(hdn, w_ref[wb + 3 * D:wb + 3 * D + MLP, 0:D],
                        preferred_element_type=f32) + b_ref[bb + 7:bb + 8, 0:D]

    # final LN + classification head on all rows (single lane-dense store);
    # the class-token columns are extracted in glue.
    xf = layer_norm(x, b_ref[0:1, 0:D], b_ref[1:2, 0:D])     # (48, D)
    out = jax.lax.dot_general(b_ref[2:3, 0:D], xf, (((1,), (1,)), ((), ())),
                              preferred_element_type=f32)    # (NC, 48)
    o_ref[...] = out + b_ref[3:4, 0:1]


# ---------------------------------- glue ---------------------------------------
def _extract_patches(imgs):
    # imgs: (N, C, H, W) -> (N, NPATCH, C*P*P), row-major patch grid,
    # channel-major (C, P, P) per patch (matches Conv2d(stride=P) patch embed)
    Nn = imgs.shape[0]
    pt = imgs.reshape(Nn, C_IN, IMG // P, P, IMG // P, P)
    pt = pt.transpose(0, 2, 4, 1, 3, 5)
    return pt.reshape(Nn, NPATCH, CP2)


def _pad_cols(w, width):
    w = jnp.asarray(w, jnp.float32)
    return jnp.pad(w, ((0, 0), (0, width - w.shape[-1])))


def _pack_weight_slab(params):
    # (W_ROWS, SLAB_W): wp on rows 0:CP2, then per layer [wqkv|wo|w1|w2];
    # all row offsets are multiples of 8 -> cheap static sublane slices
    blocks = [_pad_cols(params["wp"], SLAB_W)]
    for l in range(L):
        blocks += [_pad_cols(params["wqkv"][l], SLAB_W),
                   _pad_cols(params["wo"][l], SLAB_W),
                   _pad_cols(params["w1"][l], SLAB_W),
                   _pad_cols(params["w2"][l], SLAB_W)]
    return jnp.concatenate(blocks, axis=0)


def _pack_bias_slab(params):
    def row(v):
        return _pad_cols(jnp.asarray(v, jnp.float32).reshape(1, -1), SLAB_W)
    rows = [row(params["lnfw"]), row(params["lnfb"]),
            row(params["wh"].T),                      # NOTE: assumes NC == 1
            row(params["bh"]),
            jnp.zeros((4, SLAB_W), jnp.float32)]      # pad global block to 8 rows
    for l in range(L):
        rows += [row(params["ln1w"][l]), row(params["ln1b"][l]),
                 row(params["bqkv"][l]), row(params["bo"][l]),
                 row(params["ln2w"][l]), row(params["ln2b"][l]),
                 row(params["b1"][l]), row(params["b2"][l])]
    return jnp.concatenate(rows, axis=0)              # (B_ROWS, SLAB_W)


def _pack_const_slab(addend_flat):
    # block-diagonal additive attention mask over all 48 token rows:
    # 0 iff (same sample) and (key row is a real token), else -1e30;
    # pre-tiled for the H stacked heads so the kernel adds it with no broadcast
    tok = jnp.arange(NSP)
    same_sample = (tok[:, None] // S_PAD) == (tok[None, :] // S_PAD)
    real_key = (tok[None, :] % S_PAD) < S
    mask = jnp.where(same_sample & real_key, 0.0, NEG).astype(jnp.float32)
    mask = jnp.tile(mask, (H_HEADS, 1))               # (H*NSP, NSP)
    add = _pad_cols(addend_flat, NSP)                 # (NSP, NSP), cols 0:D used
    return jnp.concatenate([mask, add], axis=0)       # (C_ROWS, NSP)


def temporal_vit_forward(x, params):
    Bx, Tx = x.shape[0], x.shape[1]
    Nn = Bx * Tx
    imgs = x.reshape(Nn, C_IN, IMG, IMG)              # 'b t c h w -> (b t) c h w'
    patches = _extract_patches(imgs)                  # (N, NPATCH, CP2)
    # row 0 zero -> class-token slot; rows S..S_PAD-1 zero -> sublane padding
    patches = jnp.pad(patches, ((0, 0), (1, S_PAD - 1 - NPATCH), (0, 0)))
    patches_flat = patches.reshape(Nn * S_PAD, CP2)   # (48, 192)

    # per-token addend: conv bias + pos embedding (+ class token on row 0)
    addend_tok = jnp.zeros((S_PAD, D), jnp.float32)
    addend_tok = addend_tok.at[0].set(params["pos"][0] + params["cls"][0])
    addend_tok = addend_tok.at[1:S].set(params["pos"][1:] + params["bp"][None, :])
    addend_flat = jnp.tile(addend_tok, (Nn, 1))       # (48, D)

    wslab = _pack_weight_slab(params)                 # (W_ROWS, 32)
    bslab = _pack_bias_slab(params)                   # (B_ROWS, 32)
    cslab = _pack_const_slab(addend_flat)             # (C_ROWS, 48)

    inputs = (patches_flat, wslab, bslab, cslab)      # 4 DMAs total
    in_specs = [pl.BlockSpec(a.shape, lambda i: (0, 0)) for a in inputs]

    out = pl.pallas_call(
        vit_kernel,
        out_shape=jax.ShapeDtypeStruct((NC, Nn * S_PAD), jnp.float32),
        grid_spec=pltpu.PrefetchScalarGridSpec(
            num_scalar_prefetch=0,
            grid=(1,),                                # single step: whole problem in VMEM
            in_specs=in_specs,
            out_specs=pl.BlockSpec((NC, Nn * S_PAD), lambda i: (0, 0)),
        ),
        compiler_params=pltpu.CompilerParams(
            dimension_semantics=("arbitrary",)),      # single-step grid; semantics moot
    )(*inputs)

    logits = out[:, ::S_PAD]                          # class-token columns -> (NC, N)
    return logits.T.reshape(Bx, Tx, NC)               # '(b t) c -> b t c'


# ----------------------------- pure-JAX reference -------------------------------
def reference_forward(x, params):
    Bx, Tx = x.shape[0], x.shape[1]
    Nn = Bx * Tx
    imgs = x.reshape(Nn, C_IN, IMG, IMG)
    pt = _extract_patches(imgs)
    tok = jnp.einsum("npk,kd->npd", pt, params["wp"], precision=HIGH) + params["bp"]
    cls = jnp.broadcast_to(params["cls"][None], (Nn, 1, D))
    tok = jnp.concatenate([cls, tok], axis=1) + params["pos"][None]

    def ln(z, w, b):
        mu = z.mean(-1, keepdims=True)
        var = ((z - mu) ** 2).mean(-1, keepdims=True)
        return (z - mu) / jnp.sqrt(var + EPS) * w + b

    for l in range(L):
        y = ln(tok, params["ln1w"][l], params["ln1b"][l])
        qkv = jnp.einsum("nsd,de->nse", y, params["wqkv"][l], precision=HIGH) + params["bqkv"][l]
        q, k, v = qkv[..., :D], qkv[..., D:2 * D], qkv[..., 2 * D:]

        def split(z):
            return z.reshape(Nn, S, H_HEADS, DH).transpose(0, 2, 1, 3)

        qh, kh, vh = split(q), split(k), split(v)
        sc = jnp.einsum("nhqd,nhkd->nhqk", qh, kh, precision=HIGH) / math.sqrt(DH)
        a = jax.nn.softmax(sc, axis=-1)
        oh = jnp.einsum("nhqk,nhkd->nhqd", a, vh, precision=HIGH)
        oh = oh.transpose(0, 2, 1, 3).reshape(Nn, S, D)
        tok = tok + jnp.einsum("nsd,de->nse", oh, params["wo"][l], precision=HIGH) + params["bo"][l]

        y2 = ln(tok, params["ln2w"][l], params["ln2b"][l])
        hdn = jnp.einsum("nsd,dm->nsm", y2, params["w1"][l], precision=HIGH) + params["b1"][l]
        hdn = 0.5 * hdn * (1.0 + jax.lax.erf(hdn / math.sqrt(2.0)))   # exact GELU
        tok = tok + jnp.einsum("nsm,md->nsd", hdn, params["w2"][l], precision=HIGH) + params["b2"][l]

    tok = ln(tok, params["lnfw"], params["lnfb"])
    out = jnp.einsum("nd,dc->nc", tok[:, 0, :], params["wh"], precision=HIGH) + params["bh"]
    return out.reshape(Bx, Tx, NC)


# ------------------------------- parameter init ---------------------------------
def init_params(key):
    ks = jax.random.split(key, 16)
    n = lambda k, shape, s=0.02: jax.random.normal(k, shape, jnp.float32) * s
    return dict(
        wp=n(ks[0], (CP2, D)), bp=n(ks[1], (D,)),
        cls=n(ks[2], (1, D)), pos=n(ks[3], (S, D)),
        ln1w=jnp.ones((L, 1, D), jnp.float32), ln1b=jnp.zeros((L, 1, D), jnp.float32),
        wqkv=n(ks[4], (L, D, 3 * D)), bqkv=n(ks[5], (L, 1, 3 * D)),
        wo=n(ks[6], (L, D, D)), bo=n(ks[7], (L, 1, D)),
        ln2w=jnp.ones((L, 1, D), jnp.float32), ln2b=jnp.zeros((L, 1, D), jnp.float32),
        w1=n(ks[8], (L, D, MLP)), b1=n(ks[9], (L, 1, MLP)),
        w2=n(ks[10], (L, MLP, D)), b2=n(ks[11], (L, 1, D)),
        lnfw=jnp.ones((1, D), jnp.float32), lnfb=jnp.zeros((1, D), jnp.float32),
        wh=n(ks[12], (D, NC)), bh=n(ks[13], (1, NC)),
    )


if __name__ == "__main__":
    key = jax.random.PRNGKey(0)
    kx, kp = jax.random.split(key)
    x = jax.random.normal(kx, (B, T, C_IN, IMG, IMG), jnp.float32)
    params = init_params(kp)

    out = temporal_vit_forward(x, params)
    out = jax.block_until_ready(out)
    assert out.shape == (B, T, NC), out.shape

    ref = jax.block_until_ready(reference_forward(x, params))
    err = float(jnp.max(jnp.abs(out - ref)))
    # tolerance accounts for default-precision (bf16-pass) matmuls, tanh-GELU
    # and approx reciprocal; estimated combined error is well below 1e-3
    assert err < 2e-3, f"mismatch vs reference: max abs err = {err}"

    print("KERNEL_OK")
</pallas_src>

<mosaic_0001>
module attributes {stable_mosaic.version = 11 : i64} {
  func.func @vit_kernel(%arg0: i32, %arg1: memref<48x192xf32, #tpu.memory_space<vmem>>, %arg2: memref<304x32xf32, #tpu.memory_space<vmem>>, %arg3: memref<24x32xf32, #tpu.memory_space<vmem>>, %arg4: memref<144x48xf32, #tpu.memory_space<vmem>>, %arg5: memref<1x48xf32, #tpu.memory_space<vmem>>) attributes {dimension_semantics = [#tpu.dimension_semantics<arbitrary>], iteration_bounds = array<i64: 1>, scalar_prefetch = 0 : i64, scratch_operands = 0 : i64, tpu.core_type = #tpu.core_type<tc>, window_params = [{pipeline_mode = #tpu.pipeline_mode<synchronous>, transform_indices = @transform_0, window_bounds = array<i64: 48, 192>}, {pipeline_mode = #tpu.pipeline_mode<synchronous>, transform_indices = @transform_1, window_bounds = array<i64: 304, 32>}, {pipeline_mode = #tpu.pipeline_mode<synchronous>, transform_indices = @transform_2, window_bounds = array<i64: 24, 32>}, {pipeline_mode = #tpu.pipeline_mode<synchronous>, transform_indices = @transform_3, window_bounds = array<i64: 144, 48>}, {pipeline_mode = #tpu.pipeline_mode<synchronous>, transform_indices = @transform_4, window_bounds = array<i64: 1, 48>}]} {
    %c0 = arith.constant 0 : index
    %c0_0 = arith.constant 0 : index
    %0 = vector.load %arg4[%c0, %c0_0] : memref<144x48xf32, #tpu.memory_space<vmem>>, vector<96x48xf32>
    %c96 = arith.constant 96 : index
    %c0_1 = arith.constant 0 : index
    %1 = vector.load %arg4[%c96, %c0_1] : memref<144x48xf32, #tpu.memory_space<vmem>>, vector<48x8xf32>
    %c0_2 = arith.constant 0 : index
    %c0_3 = arith.constant 0 : index
    %2 = vector.load %arg1[%c0_2, %c0_3] : memref<48x192xf32, #tpu.memory_space<vmem>>, vector<48x192xf32>
    %c0_4 = arith.constant 0 : index
    %c0_5 = arith.constant 0 : index
    %3 = vector.load %arg2[%c0_4, %c0_5] : memref<304x32xf32, #tpu.memory_space<vmem>>, vector<192x8xf32>
    %cst = arith.constant dense<0.000000e+00> : vector<48x8xf32>
    %4 = tpu.matmul %2, %3, %cst {dimension_numbers = #tpu.dot_dimension_numbers<[1], [0], [0], [1], [0, 0, 1, 1], [], []>} : vector<48x192xf32>, vector<192x8xf32>, vector<48x8xf32> -> vector<48x8xf32>
    %5 = arith.addf %4, %1 : vector<48x8xf32>
    %c8 = arith.constant 8 : index
    %c0_6 = arith.constant 0 : index
    %6 = vector.load %arg3[%c8, %c0_6] : memref<24x32xf32, #tpu.memory_space<vmem>>, vector<1x8xf32>
    %c9 = arith.constant 9 : index
    %c0_7 = arith.constant 0 : index
    %7 = vector.load %arg3[%c9, %c0_7] : memref<24x32xf32, #tpu.memory_space<vmem>>, vector<1x8xf32>
    %cst_8 = arith.constant dense<0.000000e+00> : vector<48xf32>
    %8 = vector.multi_reduction <add>, %5, %cst_8 [1] : vector<48x8xf32> to vector<48xf32>
    %9 = vector.shape_cast %8 : vector<48xf32> to vector<48x1xf32>
    %cst_9 = arith.constant 8.000000e+00 : f32
    %10 = vector.broadcast %cst_9 : f32 to vector<48x1xf32>
    %11 = arith.divf %9, %10 : vector<48x1xf32>
    %12 = arith.mulf %5, %5 : vector<48x8xf32>
    %cst_10 = arith.constant dense<0.000000e+00> : vector<48xf32>
    %13 = vector.multi_reduction <add>, %12, %cst_10 [1] : vector<48x8xf32> to vector<48xf32>
    %14 = vector.shape_cast %13 : vector<48xf32> to vector<48x1xf32>
    %cst_11 = arith.constant 8.000000e+00 : f32
    %15 = vector.broadcast %cst_11 : f32 to vector<48x1xf32>
    %16 = arith.divf %14, %15 : vector<48x1xf32>
    %17 = arith.mulf %11, %11 : vector<48x1xf32>
    %18 = arith.subf %16, %17 : vector<48x1xf32>
    %19 = vector.broadcast %11 : vector<48x1xf32> to vector<48x8xf32>
    %20 = arith.subf %5, %19 : vector<48x8xf32>
    %cst_12 = arith.constant 9.99999997E-7 : f32
    %21 = vector.broadcast %cst_12 : f32 to vector<48x1xf32>
    %22 = arith.addf %18, %21 : vector<48x1xf32>
    %23 = math.rsqrt %22 : vector<48x1xf32>
    %24 = vector.broadcast %23 : vector<48x1xf32> to vector<48x8xf32>
    %25 = arith.mulf %20, %24 : vector<48x8xf32>
    %26 = vector.broadcast %6 : vector<1x8xf32> to vector<48x8xf32>
    %27 = arith.mulf %25, %26 : vector<48x8xf32>
    %28 = vector.broadcast %7 : vector<1x8xf32> to vector<48x8xf32>
    %29 = arith.addf %27, %28 : vector<48x8xf32>
    %c192 = arith.constant 192 : index
    %c0_13 = arith.constant 0 : index
    %30 = vector.load %arg2[%c192, %c0_13] : memref<304x32xf32, #tpu.memory_space<vmem>>, vector<8x24xf32>
    %cst_14 = arith.constant dense<0.000000e+00> : vector<48x24xf32>
    %31 = tpu.matmul %29, %30, %cst_14 {dimension_numbers = #tpu.dot_dimension_numbers<[1], [0], [0], [1], [0, 0, 1, 1], [], []>} : vector<48x8xf32>, vector<8x24xf32>, vector<48x24xf32> -> vector<48x24xf32>
    %c10 = arith.constant 10 : index
    %c0_15 = arith.constant 0 : index
    %32 = vector.load %arg3[%c10, %c0_15] : memref<24x32xf32, #tpu.memory_space<vmem>>, vector<1x24xf32>
    %33 = vector.broadcast %32 : vector<1x24xf32> to vector<48x24xf32>
    %34 = arith.addf %31, %33 : vector<48x24xf32>
    %35 = vector.extract_strided_slice %34 {offsets = [0, 0], sizes = [48, 4], strides = [1, 1]} : vector<48x24xf32> to vector<48x4xf32>
    %cst_16 = arith.constant 5.000000e-01 : f32
    %36 = vector.broadcast %cst_16 : f32 to vector<48x4xf32>
    %37 = arith.mulf %35, %36 : vector<48x4xf32>
    %38 = vector.extract_strided_slice %34 {offsets = [0, 8], sizes = [48, 4], strides = [1, 1]} : vector<48x24xf32> to vector<48x4xf32>
    %39 = vector.extract_strided_slice %34 {offsets = [0, 16], sizes = [48, 4], strides = [1, 1]} : vector<48x24xf32> to vector<48x4xf32>
    %cst_17 = arith.constant dense<0.000000e+00> : vector<48x48xf32>
    %40 = tpu.matmul %37, %38, %cst_17 {dimension_numbers = #tpu.dot_dimension_numbers<[1], [1], [0], [0], [0, 0, 1, 0], [], []>} : vector<48x4xf32>, vector<48x4xf32>, vector<48x48xf32> -> vector<48x48xf32>
    %41 = vector.extract_strided_slice %34 {offsets = [0, 4], sizes = [48, 4], strides = [1, 1]} : vector<48x24xf32> to vector<48x4xf32>
    %cst_18 = arith.constant 5.000000e-01 : f32
    %42 = vector.broadcast %cst_18 : f32 to vector<48x4xf32>
    %43 = arith.mulf %41, %42 : vector<48x4xf32>
    %44 = vector.extract_strided_slice %34 {offsets = [0, 12], sizes = [48, 4], strides = [1, 1]} : vector<48x24xf32> to vector<48x4xf32>
    %45 = vector.extract_strided_slice %34 {offsets = [0, 20], sizes = [48, 4], strides = [1, 1]} : vector<48x24xf32> to vector<48x4xf32>
    %cst_19 = arith.constant dense<0.000000e+00> : vector<48x48xf32>
    %46 = tpu.matmul %43, %44, %cst_19 {dimension_numbers = #tpu.dot_dimension_numbers<[1], [1], [0], [0], [0, 0, 1, 0], [], []>} : vector<48x4xf32>, vector<48x4xf32>, vector<48x48xf32> -> vector<48x48xf32>
    %47 = tpu.concatenate %40, %46 in 0 : vector<48x48xf32>, vector<48x48xf32> -> vector<96x48xf32>
    %48 = arith.addf %47, %0 : vector<96x48xf32>
    %cst_20 = arith.constant dense<0xFF800000> : vector<96xf32>
    %49 = vector.multi_reduction <maximumf>, %48, %cst_20 [1] : vector<96x48xf32> to vector<96xf32>
    %50 = vector.shape_cast %49 : vector<96xf32> to vector<96x1xf32>
    %51 = vector.broadcast %50 : vector<96x1xf32> to vector<96x48xf32>
    %52 = arith.subf %48, %51 : vector<96x48xf32>
    %53 = math.exp %52 : vector<96x48xf32>
    %cst_21 = arith.constant dense<0.000000e+00> : vector<96xf32>
    %54 = vector.multi_reduction <add>, %53, %cst_21 [1] : vector<96x48xf32> to vector<96xf32>
    %55 = vector.shape_cast %54 : vector<96xf32> to vector<96x1xf32>
    %56 = tpu.reciprocal %55 {approx = true} : vector<96x1xf32> -> vector<96x1xf32>
    %57 = vector.broadcast %56 : vector<96x1xf32> to vector<96x48xf32>
    %58 = arith.mulf %53, %57 : vector<96x48xf32>
    %c200 = arith.constant 200 : index
    %c0_22 = arith.constant 0 : index
    %59 = vector.load %arg2[%c200, %c0_22] : memref<304x32xf32, #tpu.memory_space<vmem>>, vector<8x8xf32>
    %60 = vector.extract_strided_slice %58 {offsets = [0, 0], sizes = [48, 48], strides = [1, 1]} : vector<96x48xf32> to vector<48x48xf32>
    %cst_23 = arith.constant dense<0.000000e+00> : vector<48x4xf32>
    %61 = tpu.matmul %60, %39, %cst_23 {dimension_numbers = #tpu.dot_dimension_numbers<[1], [0], [0], [1], [0, 0, 1, 1], [], []>} : vector<48x48xf32>, vector<48x4xf32>, vector<48x4xf32> -> vector<48x4xf32>
    %62 = vector.extract_strided_slice %59 {offsets = [0, 0], sizes = [4, 8], strides = [1, 1]} : vector<8x8xf32> to vector<4x8xf32>
    %cst_24 = arith.constant dense<0.000000e+00> : vector<48x8xf32>
    %63 = tpu.matmul %61, %62, %cst_24 {dimension_numbers = #tpu.dot_dimension_numbers<[1], [0], [0], [1], [0, 0, 1, 1], [], []>} : vector<48x4xf32>, vector<4x8xf32>, vector<48x8xf32> -> vector<48x8xf32>
    %64 = vector.extract_strided_slice %58 {offsets = [48, 0], sizes = [48, 48], strides = [1, 1]} : vector<96x48xf32> to vector<48x48xf32>
    %cst_25 = arith.constant dense<0.000000e+00> : vector<48x4xf32>
    %65 = tpu.matmul %64, %45, %cst_25 {dimension_numbers = #tpu.dot_dimension_numbers<[1], [0], [0], [1], [0, 0, 1, 1], [], []>} : vector<48x48xf32>, vector<48x4xf32>, vector<48x4xf32> -> vector<48x4xf32>
    %66 = vector.extract_strided_slice %59 {offsets = [4, 0], sizes = [4, 8], strides = [1, 1]} : vector<8x8xf32> to vector<4x8xf32>
    %cst_26 = arith.constant dense<0.000000e+00> : vector<48x8xf32>
    %67 = tpu.matmul %65, %66, %cst_26 {dimension_numbers = #tpu.dot_dimension_numbers<[1], [0], [0], [1], [0, 0, 1, 1], [], []>} : vector<48x4xf32>, vector<4x8xf32>, vector<48x8xf32> -> vector<48x8xf32>
    %68 = arith.addf %63, %67 : vector<48x8xf32>
    %69 = arith.addf %5, %68 : vector<48x8xf32>
    %c11 = arith.constant 11 : index
    %c0_27 = arith.constant 0 : index
    %70 = vector.load %arg3[%c11, %c0_27] : memref<24x32xf32, #tpu.memory_space<vmem>>, vector<1x8xf32>
    %71 = vector.broadcast %70 : vector<1x8xf32> to vector<48x8xf32>
    %72 = arith.addf %69, %71 : vector<48x8xf32>
    %c12 = arith.constant 12 : index
    %c0_28 = arith.constant 0 : index
    %73 = vector.load %arg3[%c12, %c0_28] : memref<24x32xf32, #tpu.memory_space<vmem>>, vector<1x8xf32>
    %c13 = arith.constant 13 : index
    %c0_29 = arith.constant 0 : index
    %74 = vector.load %arg3[%c13, %c0_29] : memref<24x32xf32, #tpu.memory_space<vmem>>, vector<1x8xf32>
    %cst_30 = arith.constant dense<0.000000e+00> : vector<48xf32>
    %75 = vector.multi_reduction <add>, %72, %cst_30 [1] : vector<48x8xf32> to vector<48xf32>
    %76 = vector.shape_cast %75 : vector<48xf32> to vector<48x1xf32>
    %cst_31 = arith.constant 8.000000e+00 : f32
    %77 = vector.broadcast %cst_31 : f32 to vector<48x1xf32>
    %78 = arith.divf %76, %77 : vector<48x1xf32>
    %79 = arith.mulf %72, %72 : vector<48x8xf32>
    %cst_32 = arith.constant dense<0.000000e+00> : vector<48xf32>
    %80 = vector.multi_reduction <add>, %79, %cst_32 [1] : vector<48x8xf32> to vector<48xf32>
    %81 = vector.shape_cast %80 : vector<48xf32> to vector<48x1xf32>
    %cst_33 = arith.constant 8.000000e+00 : f32
    %82 = vector.broadcast %cst_33 : f32 to vector<48x1xf32>
    %83 = arith.divf %81, %82 : vector<48x1xf32>
    %84 = arith.mulf %78, %78 : vector<48x1xf32>
    %85 = arith.subf %83, %84 : vector<48x1xf32>
    %86 = vector.broadcast %78 : vector<48x1xf32> to vector<48x8xf32>
    %87 = arith.subf %72, %86 : vector<48x8xf32>
    %cst_34 = arith.constant 9.99999997E-7 : f32
    %88 = vector.broadcast %cst_34 : f32 to vector<48x1xf32>
    %89 = arith.addf %85, %88 : vector<48x1xf32>
    %90 = math.rsqrt %89 : vector<48x1xf32>
    %91 = vector.broadcast %90 : vector<48x1xf32> to vector<48x8xf32>
    %92 = arith.mulf %87, %91 : vector<48x8xf32>
    %93 = vector.broadcast %73 : vector<1x8xf32> to vector<48x8xf32>
    %94 = arith.mulf %92, %93 : vector<48x8xf32>
    %95 = vector.broadcast %74 : vector<1x8xf32> to vector<48x8xf32>
    %96 = arith.addf %94, %95 : vector<48x8xf32>
    %c208 = arith.constant 208 : index
    %c0_35 = arith.constant 0 : index
    %97 = vector.load %arg2[%c208, %c0_35] : memref<304x32xf32, #tpu.memory_space<vmem>>, vector<8x32xf32>
    %cst_36 = arith.constant dense<0.000000e+00> : vector<48x32xf32>
    %98 = tpu.matmul %96, %97, %cst_36 {dimension_numbers = #tpu.dot_dimension_numbers<[1], [0], [0], [1], [0, 0, 1, 1], [], []>} : vector<48x8xf32>, vector<8x32xf32>, vector<48x32xf32> -> vector<48x32xf32>
    %c14 = arith.constant 14 : index
    %c0_37 = arith.constant 0 : index
    %99 = vector.load %arg3[%c14, %c0_37] : memref<24x32xf32, #tpu.memory_space<vmem>>, vector<1x32xf32>
    %100 = vector.broadcast %99 : vector<1x32xf32> to vector<48x32xf32>
    %101 = arith.addf %98, %100 : vector<48x32xf32>
    %cst_38 = arith.constant 5.000000e-01 : f32
    %102 = vector.broadcast %cst_38 : f32 to vector<48x32xf32>
    %103 = arith.mulf %102, %101 : vector<48x32xf32>
    %cst_39 = arith.constant 4.471500e-02 : f32
    %104 = vector.broadcast %cst_39 : f32 to vector<48x32xf32>
    %105 = arith.mulf %104, %101 : vector<48x32xf32>
    %106 = arith.mulf %105, %101 : vector<48x32xf32>
    %107 = arith.mulf %106, %101 : vector<48x32xf32>
    %108 = arith.addf %101, %107 : vector<48x32xf32>
    %cst_40 = arith.constant 0.797884583 : f32
    %109 = vector.broadcast %cst_40 : f32 to vector<48x32xf32>
    %110 = arith.mulf %109, %108 : vector<48x32xf32>
    %111 = math.tanh %110 : vector<48x32xf32>
    %cst_41 = arith.constant 1.000000e+00 : f32
    %112 = vector.broadcast %cst_41 : f32 to vector<48x32xf32>
    %113 = arith.addf %112, %111 : vector<48x32xf32>
    %114 = arith.mulf %103, %113 : vector<48x32xf32>
    %c216 = arith.constant 216 : index
    %c0_42 = arith.constant 0 : index
    %115 = vector.load %arg2[%c216, %c0_42] : memref<304x32xf32, #tpu.memory_space<vmem>>, vector<32x8xf32>
    %cst_43 = arith.constant dense<0.000000e+00> : vector<48x8xf32>
    %116 = tpu.matmul %114, %115, %cst_43 {dimension_numbers = #tpu.dot_dimension_numbers<[1], [0], [0], [1], [0, 0, 1, 1], [], []>} : vector<48x32xf32>, vector<32x8xf32>, vector<48x8xf32> -> vector<48x8xf32>
    %117 = arith.addf %72, %116 : vector<48x8xf32>
    %c15 = arith.constant 15 : index
    %c0_44 = arith.constant 0 : index
    %118 = vector.load %arg3[%c15, %c0_44] : memref<24x32xf32, #tpu.memory_space<vmem>>, vector<1x8xf32>
    %119 = vector.broadcast %118 : vector<1x8xf32> to vector<48x8xf32>
    %120 = arith.addf %117, %119 : vector<48x8xf32>
    %c16 = arith.constant 16 : index
    %c0_45 = arith.constant 0 : index
    %121 = vector.load %arg3[%c16, %c0_45] : memref<24x32xf32, #tpu.memory_space<vmem>>, vector<1x8xf32>
    %c17 = arith.constant 17 : index
    %c0_46 = arith.constant 0 : index
    %122 = vector.load %arg3[%c17, %c0_46] : memref<24x32xf32, #tpu.memory_space<vmem>>, vector<1x8xf32>
    %cst_47 = arith.constant dense<0.000000e+00> : vector<48xf32>
    %123 = vector.multi_reduction <add>, %120, %cst_47 [1] : vector<48x8xf32> to vector<48xf32>
    %124 = vector.shape_cast %123 : vector<48xf32> to vector<48x1xf32>
    %cst_48 = arith.constant 8.000000e+00 : f32
    %125 = vector.broadcast %cst_48 : f32 to vector<48x1xf32>
    %126 = arith.divf %124, %125 : vector<48x1xf32>
    %127 = arith.mulf %120, %120 : vector<48x8xf32>
    %cst_49 = arith.constant dense<0.000000e+00> : vector<48xf32>
    %128 = vector.multi_reduction <add>, %127, %cst_49 [1] : vector<48x8xf32> to vector<48xf32>
    %129 = vector.shape_cast %128 : vector<48xf32> to vector<48x1xf32>
    %cst_50 = arith.constant 8.000000e+00 : f32
    %130 = vector.broadcast %cst_50 : f32 to vector<48x1xf32>
    %131 = arith.divf %129, %130 : vector<48x1xf32>
    %132 = arith.mulf %126, %126 : vector<48x1xf32>
    %133 = arith.subf %131, %132 : vector<48x1xf32>
    %134 = vector.broadcast %126 : vector<48x1xf32> to vector<48x8xf32>
    %135 = arith.subf %120, %134 : vector<48x8xf32>
    %cst_51 = arith.constant 9.99999997E-7 : f32
    %136 = vector.broadcast %cst_51 : f32 to vector<48x1xf32>
    %137 = arith.addf %133, %136 : vector<48x1xf32>
    %138 = math.rsqrt %137 : vector<48x1xf32>
    %139 = vector.broadcast %138 : vector<48x1xf32> to vector<48x8xf32>
    %140 = arith.mulf %135, %139 : vector<48x8xf32>
    %141 = vector.broadcast %121 : vector<1x8xf32> to vector<48x8xf32>
    %142 = arith.mulf %140, %141 : vector<48x8xf32>
    %143 = vector.broadcast %122 : vector<1x8xf32> to vector<48x8xf32>
    %144 = arith.addf %142, %143 : vector<48x8xf32>
    %c248 = arith.constant 248 : index
    %c0_52 = arith.constant 0 : index
    %145 = vector.load %arg2[%c248, %c0_52] : memref<304x32xf32, #tpu.memory_space<vmem>>, vector<8x24xf32>
    %cst_53 = arith.constant dense<0.000000e+00> : vector<48x24xf32>
    %146 = tpu.matmul %144, %145, %cst_53 {dimension_numbers = #tpu.dot_dimension_numbers<[1], [0], [0], [1], [0, 0, 1, 1], [], []>} : vector<48x8xf32>, vector<8x24xf32>, vector<48x24xf32> -> vector<48x24xf32>
    %c18 = arith.constant 18 : index
    %c0_54 = arith.constant 0 : index
    %147 = vector.load %arg3[%c18, %c0_54] : memref<24x32xf32, #tpu.memory_space<vmem>>, vector<1x24xf32>
    %148 = vector.broadcast %147 : vector<1x24xf32> to vector<48x24xf32>
    %149 = arith.addf %146, %148 : vector<48x24xf32>
    %150 = vector.extract_strided_slice %149 {offsets = [0, 0], sizes = [48, 4], strides = [1, 1]} : vector<48x24xf32> to vector<48x4xf32>
    %cst_55 = arith.constant 5.000000e-01 : f32
    %151 = vector.broadcast %cst_55 : f32 to vector<48x4xf32>
    %152 = arith.mulf %150, %151 : vector<48x4xf32>
    %153 = vector.extract_strided_slice %149 {offsets = [0, 8], sizes = [48, 4], strides = [1, 1]} : vector<48x24xf32> to vector<48x4xf32>
    %154 = vector.extract_strided_slice %149 {offsets = [0, 16], sizes = [48, 4], strides = [1, 1]} : vector<48x24xf32> to vector<48x4xf32>
    %cst_56 = arith.constant dense<0.000000e+00> : vector<48x48xf32>
    %155 = tpu.matmul %152, %153, %cst_56 {dimension_numbers = #tpu.dot_dimension_numbers<[1], [1], [0], [0], [0, 0, 1, 0], [], []>} : vector<48x4xf32>, vector<48x4xf32>, vector<48x48xf32> -> vector<48x48xf32>
    %156 = vector.extract_strided_slice %149 {offsets = [0, 4], sizes = [48, 4], strides = [1, 1]} : vector<48x24xf32> to vector<48x4xf32>
    %cst_57 = arith.constant 5.000000e-01 : f32
    %157 = vector.broadcast %cst_57 : f32 to vector<48x4xf32>
    %158 = arith.mulf %156, %157 : vector<48x4xf32>
    %159 = vector.extract_strided_slice %149 {offsets = [0, 12], sizes = [48, 4], strides = [1, 1]} : vector<48x24xf32> to vector<48x4xf32>
    %160 = vector.extract_strided_slice %149 {offsets = [0, 20], sizes = [48, 4], strides = [1, 1]} : vector<48x24xf32> to vector<48x4xf32>
    %cst_58 = arith.constant dense<0.000000e+00> : vector<48x48xf32>
    %161 = tpu.matmul %158, %159, %cst_58 {dimension_numbers = #tpu.dot_dimension_numbers<[1], [1], [0], [0], [0, 0, 1, 0], [], []>} : vector<48x4xf32>, vector<48x4xf32>, vector<48x48xf32> -> vector<48x48xf32>
    %162 = tpu.concatenate %155, %161 in 0 : vector<48x48xf32>, vector<48x48xf32> -> vector<96x48xf32>
    %163 = arith.addf %162, %0 : vector<96x48xf32>
    %cst_59 = arith.constant dense<0xFF800000> : vector<96xf32>
    %164 = vector.multi_reduction <maximumf>, %163, %cst_59 [1] : vector<96x48xf32> to vector<96xf32>
    %165 = vector.shape_cast %164 : vector<96xf32> to vector<96x1xf32>
    %166 = vector.broadcast %165 : vector<96x1xf32> to vector<96x48xf32>
    %167 = arith.subf %163, %166 : vector<96x48xf32>
    %168 = math.exp %167 : vector<96x48xf32>
    %cst_60 = arith.constant dense<0.000000e+00> : vector<96xf32>
    %169 = vector.multi_reduction <add>, %168, %cst_60 [1] : vector<96x48xf32> to vector<96xf32>
    %170 = vector.shape_cast %169 : vector<96xf32> to vector<96x1xf32>
    %171 = tpu.reciprocal %170 {approx = true} : vector<96x1xf32> -> vector<96x1xf32>
    %172 = vector.broadcast %171 : vector<96x1xf32> to vector<96x48xf32>
    %173 = arith.mulf %168, %172 : vector<96x48xf32>
    %c256 = arith.constant 256 : index
    %c0_61 = arith.constant 0 : index
    %174 = vector.load %arg2[%c256, %c0_61] : memref<304x32xf32, #tpu.memory_space<vmem>>, vector<8x8xf32>
    %175 = vector.extract_strided_slice %173 {offsets = [0, 0], sizes = [48, 48], strides = [1, 1]} : vector<96x48xf32> to vector<48x48xf32>
    %cst_62 = arith.constant dense<0.000000e+00> : vector<48x4xf32>
    %176 = tpu.matmul %175, %154, %cst_62 {dimension_numbers = #tpu.dot_dimension_numbers<[1], [0], [0], [1], [0, 0, 1, 1], [], []>} : vector<48x48xf32>, vector<48x4xf32>, vector<48x4xf32> -> vector<48x4xf32>
    %177 = vector.extract_strided_slice %174 {offsets = [0, 0], sizes = [4, 8], strides = [1, 1]} : vector<8x8xf32> to vector<4x8xf32>
    %cst_63 = arith.constant dense<0.000000e+00> : vector<48x8xf32>
    %178 = tpu.matmul %176, %177, %cst_63 {dimension_numbers = #tpu.dot_dimension_numbers<[1], [0], [0], [1], [0, 0, 1, 1], [], []>} : vector<48x4xf32>, vector<4x8xf32>, vector<48x8xf32> -> vector<48x8xf32>
    %179 = vector.extract_strided_slice %173 {offsets = [48, 0], sizes = [48, 48], strides = [1, 1]} : vector<96x48xf32> to vector<48x48xf32>
    %cst_64 = arith.constant dense<0.000000e+00> : vector<48x4xf32>
    %180 = tpu.matmul %179, %160, %cst_64 {dimension_numbers = #tpu.dot_dimension_numbers<[1], [0], [0], [1], [0, 0, 1, 1], [], []>} : vector<48x48xf32>, vector<48x4xf32>, vector<48x4xf32> -> vector<48x4xf32>
    %181 = vector.extract_strided_slice %174 {offsets = [4, 0], sizes = [4, 8], strides = [1, 1]} : vector<8x8xf32> to vector<4x8xf32>
    %cst_65 = arith.constant dense<0.000000e+00> : vector<48x8xf32>
    %182 = tpu.matmul %180, %181, %cst_65 {dimension_numbers = #tpu.dot_dimension_numbers<[1], [0], [0], [1], [0, 0, 1, 1], [], []>} : vector<48x4xf32>, vector<4x8xf32>, vector<48x8xf32> -> vector<48x8xf32>
    %183 = arith.addf %178, %182 : vector<48x8xf32>
    %184 = arith.addf %120, %183 : vector<48x8xf32>
    %c19 = arith.constant 19 : index
    %c0_66 = arith.constant 0 : index
    %185 = vector.load %arg3[%c19, %c0_66] : memref<24x32xf32, #tpu.memory_space<vmem>>, vector<1x8xf32>
    %186 = vector.broadcast %185 : vector<1x8xf32> to vector<48x8xf32>
    %187 = arith.addf %184, %186 : vector<48x8xf32>
    %c20 = arith.constant 20 : index
    %c0_67 = arith.constant 0 : index
    %188 = vector.load %arg3[%c20, %c0_67] : memref<24x32xf32, #tpu.memory_space<vmem>>, vector<1x8xf32>
    %c21 = arith.constant 21 : index
    %c0_68 = arith.constant 0 : index
    %189 = vector.load %arg3[%c21, %c0_68] : memref<24x32xf32, #tpu.memory_space<vmem>>, vector<1x8xf32>
    %cst_69 = arith.constant dense<0.000000e+00> : vector<48xf32>
    %190 = vector.multi_reduction <add>, %187, %cst_69 [1] : vector<48x8xf32> to vector<48xf32>
    %191 = vector.shape_cast %190 : vector<48xf32> to vector<48x1xf32>
    %cst_70 = arith.constant 8.000000e+00 : f32
    %192 = vector.broadcast %cst_70 : f32 to vector<48x1xf32>
    %193 = arith.divf %191, %192 : vector<48x1xf32>
    %194 = arith.mulf %187, %187 : vector<48x8xf32>
    %cst_71 = arith.constant dense<0.000000e+00> : vector<48xf32>
    %195 = vector.multi_reduction <add>, %194, %cst_71 [1] : vector<48x8xf32> to vector<48xf32>
    %196 = vector.shape_cast %195 : vector<48xf32> to vector<48x1xf32>
    %cst_72 = arith.constant 8.000000e+00 : f32
    %197 = vector.broadcast %cst_72 : f32 to vector<48x1xf32>
    %198 = arith.divf %196, %197 : vector<48x1xf32>
    %199 = arith.mulf %193, %193 : vector<48x1xf32>
    %200 = arith.subf %198, %199 : vector<48x1xf32>
    %201 = vector.broadcast %193 : vector<48x1xf32> to vector<48x8xf32>
    %202 = arith.subf %187, %201 : vector<48x8xf32>
    %cst_73 = arith.constant 9.99999997E-7 : f32
    %203 = vector.broadcast %cst_73 : f32 to vector<48x1xf32>
    %204 = arith.addf %200, %203 : vector<48x1xf32>
    %205 = math.rsqrt %204 : vector<48x1xf32>
    %206 = vector.broadcast %205 : vector<48x1xf32> to vector<48x8xf32>
    %207 = arith.mulf %202, %206 : vector<48x8xf32>
    %208 = vector.broadcast %188 : vector<1x8xf32> to vector<48x8xf32>
    %209 = arith.mulf %207, %208 : vector<48x8xf32>
    %210 = vector.broadcast %189 : vector<1x8xf32> to vector<48x8xf32>
    %211 = arith.addf %209, %210 : vector<48x8xf32>
    %c264 = arith.constant 264 : index
    %c0_74 = arith.constant 0 : index
    %212 = vector.load %arg2[%c264, %c0_74] : memref<304x32xf32, #tpu.memory_space<vmem>>, vector<8x32xf32>
    %cst_75 = arith.constant dense<0.000000e+00> : vector<48x32xf32>
    %213 = tpu.matmul %211, %212, %cst_75 {dimension_numbers = #tpu.dot_dimension_numbers<[1], [0], [0], [1], [0, 0, 1, 1], [], []>} : vector<48x8xf32>, vector<8x32xf32>, vector<48x32xf32> -> vector<48x32xf32>
    %c22 = arith.constant 22 : index
    %c0_76 = arith.constant 0 : index
    %214 = vector.load %arg3[%c22, %c0_76] : memref<24x32xf32, #tpu.memory_space<vmem>>, vector<1x32xf32>
    %215 = vector.broadcast %214 : vector<1x32xf32> to vector<48x32xf32>
    %216 = arith.addf %213, %215 : vector<48x32xf32>
    %cst_77 = arith.constant 5.000000e-01 : f32
    %217 = vector.broadcast %cst_77 : f32 to vector<48x32xf32>
    %218 = arith.mulf %217, %216 : vector<48x32xf32>
    %cst_78 = arith.constant 4.471500e-02 : f32
    %219 = vector.broadcast %cst_78 : f32 to vector<48x32xf32>
    %220 = arith.mulf %219, %216 : vector<48x32xf32>
    %221 = arith.mulf %220, %216 : vector<48x32xf32>
    %222 = arith.mulf %221, %216 : vector<48x32xf32>
    %223 = arith.addf %216, %222 : vector<48x32xf32>
    %cst_79 = arith.constant 0.797884583 : f32
    %224 = vector.broadcast %cst_79 : f32 to vector<48x32xf32>
    %225 = arith.mulf %224, %223 : vector<48x32xf32>
    %226 = math.tanh %225 : vector<48x32xf32>
    %cst_80 = arith.constant 1.000000e+00 : f32
    %227 = vector.broadcast %cst_80 : f32 to vector<48x32xf32>
    %228 = arith.addf %227, %226 : vector<48x32xf32>
    %229 = arith.mulf %218, %228 : vector<48x32xf32>
    %c272 = arith.constant 272 : index
    %c0_81 = arith.constant 0 : index
    %230 = vector.load %arg2[%c272, %c0_81] : memref<304x32xf32, #tpu.memory_space<vmem>>, vector<32x8xf32>
    %cst_82 = arith.constant dense<0.000000e+00> : vector<48x8xf32>
    %231 = tpu.matmul %229, %230, %cst_82 {dimension_numbers = #tpu.dot_dimension_numbers<[1], [0], [0], [1], [0, 0, 1, 1], [], []>} : vector<48x32xf32>, vector<32x8xf32>, vector<48x8xf32> -> vector<48x8xf32>
    %232 = arith.addf %187, %231 : vector<48x8xf32>
    %c23 = arith.constant 23 : index
    %c0_83 = arith.constant 0 : index
    %233 = vector.load %arg3[%c23, %c0_83] : memref<24x32xf32, #tpu.memory_space<vmem>>, vector<1x8xf32>
    %234 = vector.broadcast %233 : vector<1x8xf32> to vector<48x8xf32>
    %235 = arith.addf %232, %234 : vector<48x8xf32>
    %c0_84 = arith.constant 0 : index
    %c0_85 = arith.constant 0 : index
    %236 = vector.load %arg3[%c0_84, %c0_85] : memref<24x32xf32, #tpu.memory_space<vmem>>, vector<1x8xf32>
    %c1 = arith.constant 1 : index
    %c0_86 = arith.constant 0 : index
    %237 = vector.load %arg3[%c1, %c0_86] : memref<24x32xf32, #tpu.memory_space<vmem>>, vector<1x8xf32>
    %cst_87 = arith.constant dense<0.000000e+00> : vector<48xf32>
    %238 = vector.multi_reduction <add>, %235, %cst_87 [1] : vector<48x8xf32> to vector<48xf32>
    %239 = vector.shape_cast %238 : vector<48xf32> to vector<48x1xf32>
    %cst_88 = arith.constant 8.000000e+00 : f32
    %240 = vector.broadcast %cst_88 : f32 to vector<48x1xf32>
    %241 = arith.divf %239, %240 : vector<48x1xf32>
    %242 = arith.mulf %235, %235 : vector<48x8xf32>
    %cst_89 = arith.constant dense<0.000000e+00> : vector<48xf32>
    %243 = vector.multi_reduction <add>, %242, %cst_89 [1] : vector<48x8xf32> to vector<48xf32>
    %244 = vector.shape_cast %243 : vector<48xf32> to vector<48x1xf32>
    %cst_90 = arith.constant 8.000000e+00 : f32
    %245 = vector.broadcast %cst_90 : f32 to vector<48x1xf32>
    %246 = arith.divf %244, %245 : vector<48x1xf32>
    %247 = arith.mulf %241, %241 : vector<48x1xf32>
    %248 = arith.subf %246, %247 : vector<48x1xf32>
    %249 = vector.broadcast %241 : vector<48x1xf32> to vector<48x8xf32>
    %250 = arith.subf %235, %249 : vector<48x8xf32>
    %cst_91 = arith.constant 9.99999997E-7 : f32
    %251 = vector.broadcast %cst_91 : f32 to vector<48x1xf32>
    %252 = arith.addf %248, %251 : vector<48x1xf32>
    %253 = math.rsqrt %252 : vector<48x1xf32>
    %254 = vector.broadcast %253 : vector<48x1xf32> to vector<48x8xf32>
    %255 = arith.mulf %250, %254 : vector<48x8xf32>
    %256 = vector.broadcast %236 : vector<1x8xf32> to vector<48x8xf32>
    %257 = arith.mulf %255, %256 : vector<48x8xf32>
    %258 = vector.broadcast %237 : vector<1x8xf32> to vector<48x8xf32>
    %259 = arith.addf %257, %258 : vector<48x8xf32>
    %c2 = arith.constant 2 : index
    %c0_92 = arith.constant 0 : index
    %260 = vector.load %arg3[%c2, %c0_92] : memref<24x32xf32, #tpu.memory_space<vmem>>, vector<1x8xf32>
    %cst_93 = arith.constant dense<0.000000e+00> : vector<1x48xf32>
    %261 = tpu.matmul %260, %259, %cst_93 {dimension_numbers = #tpu.dot_dimension_numbers<[1], [1], [0], [0], [0, 0, 1, 0], [], []>} : vector<1x8xf32>, vector<48x8xf32>, vector<1x48xf32> -> vector<1x48xf32>
    %c3 = arith.constant 3 : index
    %c0_94 = arith.constant 0 : index
    %262 = vector.load %arg3[%c3, %c0_94] : memref<24x32xf32, #tpu.memory_space<vmem>>, vector<1x1xf32>
    %263 = vector.broadcast %262 : vector<1x1xf32> to vector<1x48xf32>
    %264 = arith.addf %261, %263 : vector<1x48xf32>
    %c0_95 = arith.constant 0 : index
    %c0_96 = arith.constant 0 : index
    %265 = vector.load %arg5[%c0_95, %c0_96] : memref<1x48xf32, #tpu.memory_space<vmem>>, vector<1x48xf32>
    tpu.vector_store %arg5[%c0_95, %c0_96], %264 {strides = array<i32>} : memref<1x48xf32, #tpu.memory_space<vmem>>, vector<1x48xf32>,
    return
  }
  func.func @transform_0(%arg0: i32) -> (i32, i32) {
    %c0_i32 = arith.constant 0 : i32
    %c0_i32_0 = arith.constant 0 : i32
    %c0_i32_1 = arith.constant 0 : i32
    return %c0_i32, %c0_i32_0 : i32, i32
  }
  func.func @transform_1(%arg0: i32) -> (i32, i32) {
    %c0_i32 = arith.constant 0 : i32
    %c0_i32_0 = arith.constant 0 : i32
    %c0_i32_1 = arith.constant 0 : i32
    return %c0_i32, %c0_i32_0 : i32, i32
  }
  func.func @transform_2(%arg0: i32) -> (i32, i32) {
    %c0_i32 = arith.constant 0 : i32
    %c0_i32_0 = arith.constant 0 : i32
    %c0_i32_1 = arith.constant 0 : i32
    return %c0_i32, %c0_i32_0 : i32, i32
  }
  func.func @transform_3(%arg0: i32) -> (i32, i32) {
    %c0_i32 = arith.constant 0 : i32
    %c0_i32_0 = arith.constant 0 : i32
    %c0_i32_1 = arith.constant 0 : i32
    return %c0_i32, %c0_i32_0 : i32, i32
  }
  func.func @transform_4(%arg0: i32) -> (i32, i32) {
    %c0_i32 = arith.constant 0 : i32
    %c0_i32_0 = arith.constant 0 : i32
    %c0_i32_1 = arith.constant 0 : i32
    return %c0_i32, %c0_i32_0 : i32, i32
  }
}

</mosaic_0001>

<llo_original>
// kernel: tpu_custom_call.1
$region0: #{tpu_custom_call.1}
  #allocation0 [shape = 'u32[]', space=smem, size = 0x4, offset = 0x4, fixed_abs, tag = 'smem constant byte address 0x4 - core index']
  #allocation1 [shape = 'u32[144,128]{1,0:T(1,128)}', space=vmem, size = 0x12000, scoped, tag = 'internal scratch']
  %s0 = inlined_call_operand.vmem [shape: f32[48,192], index: 0, kind: input, shape index: {}]
  %s1 = inlined_call_operand.vmem [shape: f32[304,32], index: 1, kind: input, shape index: {}]
  %s2 = inlined_call_operand.vmem [shape: f32[24,32], index: 2, kind: input, shape index: {}]
  %s3 = inlined_call_operand.vmem [shape: f32[144,48], index: 3, kind: input, shape index: {}]
  %s4 = inlined_call_operand.hbm [shape: f32[1,48], index: 4, kind: output, shape index: {}]
  %s5 = sld [smem:[#allocation0]]
  $region26: #{tpu_custom_call.1} parent=0
    _
  %s7 = ssub.s32 1, %s5
  %s8 = scalar_select 0, %s7, %s5
  $region1: #{tpu_custom_call.1} parent=0
    #allocation2 [shape = 'u8[512]{0}', space=vmem, size = 0x400, scoped, tag = 'output window, operand 0, single buffered']
    #allocation3 [shape = 's32[1]{0}', space=sflag, size = 0x4, scoped, tag = 'scoped memory for tpu_custom_call.1']
    %9 = vsyncpa [#allocation3], 0
    // Predicated region
    $region2: #{tpu_custom_call.1} parent=1 // pred_check
      _
    $region3: #{tpu_custom_call.1} parent=1 // pred_check_branch
      %11 = sbr.rel (0) target = $region5
    $region4: #{tpu_custom_call.1} parent=1 // pred_region
      _
    $region5: #{tpu_custom_call.1} parent=1 // pred_fallthru
      _
    // Predicated region
    $region6: #{tpu_custom_call.1} parent=1 // pred_check
      _
    $region7: #{tpu_custom_call.1} parent=1 // pred_check_branch
      %13 = sbr.rel (0) target = $region9
    $region8: #{tpu_custom_call.1} parent=1 // pred_region
      _
    $region9: #{tpu_custom_call.1} parent=1 // pred_fallthru
      _
    // Predicated region
    $region10: #{tpu_custom_call.1} parent=1 // pred_check
      _
    $region11: #{tpu_custom_call.1} parent=1 // pred_check_branch
      %15 = sbr.rel (0) target = $region13
    $region12: #{tpu_custom_call.1} parent=1 // pred_region
      _
    $region13: #{tpu_custom_call.1} parent=1 // pred_fallthru
      _
    // Predicated region
    $region14: #{tpu_custom_call.1} parent=1 // pred_check
      _
    $region15: #{tpu_custom_call.1} parent=1 // pred_check_branch
      %17 = sbr.rel (0) target = $region17
    $region16: #{tpu_custom_call.1} parent=1 // pred_region
      _
    $region17: #{tpu_custom_call.1} parent=1 // pred_fallthru
      _
    %v18 = vld [vmem:[%s3] sm:$0xff]
    %v19 = vld [vmem:[%s3 + $0x8] sm:$0xff]
    %v20 = vld [vmem:[%s3 + $0x10] sm:$0xff]
    %v21 = vld [vmem:[%s3 + $0x18] sm:$0xff]
    %v22 = vld [vmem:[%s3 + $0x20] sm:$0xff]
    %v23 = vld [vmem:[%s3 + $0x28] sm:$0xff]
    %v24 = vld [vmem:[%s3 + $0x30] sm:$0xff]
    %v25 = vld [vmem:[%s3 + $0x38] sm:$0xff]
    %v26 = vld [vmem:[%s3 + $0x40] sm:$0xff]
    %v27 = vld [vmem:[%s3 + $0x48] sm:$0xff]
    %v28 = vld [vmem:[%s3 + $0x50] sm:$0xff]
    %v29 = vld [vmem:[%s3 + $0x58] sm:$0xff]
    %v30 = vld [vmem:[%s3 + $0x60] sm:$0xff]
    %v31 = vld [vmem:[%s3 + $0x68] sm:$0xff]
    %v32 = vld [vmem:[%s3 + $0x70] sm:$0xff]
    %v33 = vld [vmem:[%s3 + $0x78] sm:$0xff]
    %v34 = vld [vmem:[%s3 + $0x80] sm:$0xff]
    %v35 = vld [vmem:[%s3 + $0x88] sm:$0xff]
    %v36 = vld [vmem:[%s0] sm:$0xff]
    %v37 = vld [vmem:[%s0 + $0x8] sm:$0xff]
    %v38 = vld [vmem:[%s0 + $0x10] sm:$0xff]
    %v39 = vld [vmem:[%s0 + $0x18] sm:$0xff]
    %v40 = vld [vmem:[%s0 + $0x20] sm:$0xff]
    %v41 = vld [vmem:[%s0 + $0x28] sm:$0xff]
    %v42 = vld [vmem:[%s0 + $0x30] sm:$0xff]
    %v43 = vld [vmem:[%s0 + $0x38] sm:$0xff]
    %v44 = vld [vmem:[%s0 + $0x40] sm:$0xff]
    %v45 = vld [vmem:[%s0 + $0x48] sm:$0xff]
    %v46 = vld [vmem:[%s0 + $0x50] sm:$0xff]
    %v47 = vld [vmem:[%s0 + $0x58] sm:$0xff]
    %v48 = vld [vmem:[%s1] sm:$0xff]
    %v49 = vld [vmem:[%s1 + $0x8] sm:$0xff]
    %v50 = vld [vmem:[%s1 + $0x10] sm:$0xff]
    %v51 = vld [vmem:[%s1 + $0x18] sm:$0xff]
    %v52 = vld [vmem:[%s1 + $0x20] sm:$0xff]
    %v53 = vld [vmem:[%s1 + $0x28] sm:$0xff]
    %v54 = vld [vmem:[%s1 + $0x30] sm:$0xff]
    %v55 = vld [vmem:[%s1 + $0x38] sm:$0xff]
    %v56 = vld [vmem:[%s1 + $0x40] sm:$0xff]
    %v57 = vld [vmem:[%s1 + $0x48] sm:$0xff]
    %v58 = vld [vmem:[%s1 + $0x50] sm:$0xff]
    %v59 = vld [vmem:[%s1 + $0x58] sm:$0xff]
    %v60 = vld [vmem:[%s1 + $0x60] sm:$0xff]
    %v61 = vld [vmem:[%s1 + $0x68] sm:$0xff]
    %v62 = vld [vmem:[%s1 + $0x70] sm:$0xff]
    %v63 = vld [vmem:[%s1 + $0x78] sm:$0xff]
    %v64 = vld [vmem:[%s1 + $0x80] sm:$0xff]
    %v65 = vld [vmem:[%s1 + $0x88] sm:$0xff]
    %v66 = vld [vmem:[%s1 + $0x90] sm:$0xff]
    %v67 = vld [vmem:[%s1 + $0x98] sm:$0xff]
    %v68 = vld [vmem:[%s1 + $0xa0] sm:$0xff]
    %v69 = vld [vmem:[%s1 + $0xa8] sm:$0xff]
    %v70 = vld [vmem:[%s1 + $0xb0] sm:$0xff]
    %v71 = vld [vmem:[%s1 + $0xb8] sm:$0xff]
    %vm72 = vcmask 523264
    %v74 = vsel %vm72, %v37, 0
    %v77 = vsel %vm72, %v39, 0
    %v80 = vsel %vm72, %v41, 0
    %v83 = vsel %vm72, %v43, 0
    %v86 = vsel %vm72, %v45, 0
    %v89 = vsel %vm72, %v47, 0
    %91 = vmatprep.subr.mxu0 0.0
    %92 = vmatpush1.msra.mxu0 %v63
    %93 = vmatprep.subr.mxu0 0.0
    %94 = vmatpush1.msra.mxu0 %v62
    %95 = vmatprep.subr.mxu0 0.0
    %96 = vmatpush1.msra.mxu0 %v61
    %97 = vmatprep.subr.mxu0 0.0
    %98 = vmatpush1.msra.mxu0 %v60
    %99 = vmatprep.subr.mxu0 0.0
    %100 = vmatpush1.msra.mxu0 %v59
    %101 = vmatprep.subr.mxu0 0.0
    %102 = vmatpush1.msra.mxu0 %v58
    %103 = vmatprep.subr.mxu0 0.0
    %104 = vmatpush1.msra.mxu0 %v57
    %105 = vmatprep.subr.mxu0 0.0
    %106 = vmatpush1.msra.mxu0 %v56
    %107 = vmatprep.subr.mxu0 0.0
    %108 = vmatpush1.msra.mxu0 %v55
    %109 = vmatprep.subr.mxu0 0.0
    %110 = vmatpush1.msra.mxu0 %v54
    %111 = vmatprep.subr.mxu0 0.0
    %112 = vmatpush1.msra.mxu0 %v53
    %113 = vmatprep.subr.mxu0 0.0
    %114 = vmatpush1.msra.mxu0 %v52
    %115 = vmatprep.subr.mxu0 0.0
    %116 = vmatpush1.msra.mxu0 %v51
    %117 = vmatprep.subr.mxu0 0.0
    %118 = vmatpush1.msra.mxu0 %v50
    %119 = vmatprep.subr.mxu0 0.0
    %120 = vmatpush1.msra.mxu0 %v49
    %121 = vmatprep.subr.mxu0 0.0
    %122 = vmatpush1.msra.mxu0 %v48
    %123 = vmatprep.subr.mxu0 0.0
    %124 = vmatpush2.msra.mxu0 0.0
    %125 = vmatprep.subr.mxu0 0.0
    %126 = vmatpush2.msra.mxu0 0.0
    %127 = vmatprep.subr.mxu0 0.0
    %128 = vmatpush2.msra.mxu0 0.0
    %129 = vmatprep.subr.mxu0 0.0
    %130 = vmatpush2.msra.mxu0 0.0
    %131 = vmatprep.subr.mxu0 0.0
    %132 = vmatpush2.msra.mxu0 0.0
    %133 = vmatprep.subr.mxu0 0.0
    %134 = vmatpush2.msra.mxu0 0.0
    %135 = vmatprep.subr.mxu0 0.0
    %136 = vmatpush2.msra.mxu0 0.0
    %137 = vmatprep.subr.mxu0 0.0
    %138 = vmatpush2.msra.mxu0 0.0
    %139 = vmatprep.subr.mxu0 0.0
    %140 = vmatpush2.msra.mxu0 %v71
    %141 = vmatprep.subr.mxu0 0.0
    %142 = vmatpush2.msra.mxu0 %v70
    %143 = vmatprep.subr.mxu0 0.0
    %144 = vmatpush2.msra.mxu0 %v69
    %145 = vmatprep.subr.mxu0 0.0
    %146 = vmatpush2.msra.mxu0 %v68
    %147 = vmatprep.subr.mxu0 0.0
    %148 = vmatpush2.msra.mxu0 %v67
    %149 = vmatprep.subr.mxu0 0.0
    %150 = vmatpush2.msra.mxu0 %v66
    %151 = vmatprep.subr.mxu0 0.0
    %152 = vmatpush2.msra.mxu0 %v65
    %153 = vmatprep.subr.mxu0 0.0
    %154 = vmatpush2.msra.mxu0 %v64
    %155 = vmatprep.mubr.f32.mxu0 %v74
    %156 = vmatmul.mubr.f32.gmra.mxu0 %v36
    %v157 = vpop.f32.mrf.mxu0
    %v158 = vadd.f32 %v30, %v157
    %v159 = vpop.f32.mrf.mxu0
    %160 = vmatprep.mubr.f32.mxu0 %v77
    %161 = vmatmul.mubr.f32.gmra.mxu0 %v38
    %v162 = vpop.f32.mrf.mxu0
    %v163 = vadd.f32 %v31, %v162
    %v164 = vpop.f32.mrf.mxu0
    %165 = vmatprep.mubr.f32.mxu0 %v80
    %166 = vmatmul.mubr.f32.gmra.mxu0 %v40
    %v167 = vpop.f32.mrf.mxu0
    %v168 = vadd.f32 %v32, %v167
    %v169 = vpop.f32.mrf.mxu0
    %170 = vmatprep.mubr.f32.mxu0 %v83
    %171 = vmatmul.mubr.f32.gmra.mxu0 %v42
    %v172 = vpop.f32.mrf.mxu0
    %v173 = vadd.f32 %v33, %v172
    %v174 = vpop.f32.mrf.mxu0
    %175 = vmatprep.mubr.f32.mxu0 %v86
    %176 = vmatmul.mubr.f32.gmra.mxu0 %v44
    %v177 = vpop.f32.mrf.mxu0
    %v178 = vadd.f32 %v34, %v177
    %v179 = vpop.f32.mrf.mxu0
    %180 = vmatprep.mubr.f32.mxu0 %v89
    %181 = vmatmul.mubr.f32.gmra.mxu0 %v46
    %v182 = vpop.f32.mrf.mxu0
    %v183 = vadd.f32 %v35, %v182
    %v184 = vpop.f32.mrf.mxu0
    %185 = vdwg.mxu0
    %v186 = vld [vmem:[%s2 + $0x8] sm:$0x1]
    %v187 = vld [vmem:[%s2 + $0x9] sm:$0x1]
    %vm188 = vcmask 64512
    %v189 = vsel %vm188, %v158, 0.0
    %190 = vadd.xlane.f32.xlu0 %v189
    %v191 = vpop.xlane.xlu0 %190
    %v192 = vsel %vm188, %v163, 0.0
    %193 = vadd.xlane.f32.xlu0 %v192
    %v194 = vpop.xlane.xlu0 %193
    %v195 = vsel %vm188, %v168, 0.0
    %196 = vadd.xlane.f32.xlu0 %v195
    %v197 = vpop.xlane.xlu0 %196
    %v198 = vsel %vm188, %v173, 0.0
    %199 = vadd.xlane.f32.xlu0 %v198
    %v200 = vpop.xlane.xlu0 %199
    %v201 = vsel %vm188, %v178, 0.0
    %202 = vadd.xlane.f32.xlu0 %v201
    %v203 = vpop.xlane.xlu0 %202
    %v204 = vsel %vm188, %v183, 0.0
    %205 = vadd.xlane.f32.xlu0 %v204
    %v206 = vpop.xlane.xlu0 %205
    %v207 = vrcp.pop 8.0
    %v208 = vmul.f32 %v191, %v207
    %v209 = vmul.f32 %v194, %v207
    %v210 = vmul.f32 %v197, %v207
    %v211 = vmul.f32 %v200, %v207
    %v212 = vmul.f32 %v203, %v207
    %v213 = vmul.f32 %v206, %v207
    %v214 = vmul.f32 %v158, %v158
    %v215 = vmul.f32 %v163, %v163
    %v216 = vmul.f32 %v168, %v168
    %v217 = vmul.f32 %v173, %v173
    %v218 = vmul.f32 %v178, %v178
    %v219 = vmul.f32 %v183, %v183
    %v220 = vsel %vm188, %v214, 0.0
    %221 = vadd.xlane.f32.xlu0 %v220
    %v222 = vpop.xlane.xlu0 %221
    %v223 = vsel %vm188, %v215, 0.0
    %224 = vadd.xlane.f32.xlu0 %v223
    %v225 = vpop.xlane.xlu0 %224
    %v226 = vsel %vm188, %v216, 0.0
    %227 = vadd.xlane.f32.xlu0 %v226
    %v228 = vpop.xlane.xlu0 %227
    %v229 = vsel %vm188, %v217, 0.0
    %230 = vadd.xlane.f32.xlu0 %v229
    %v231 = vpop.xlane.xlu0 %230
    %v232 = vsel %vm188, %v218, 0.0
    %233 = vadd.xlane.f32.xlu0 %v232
    %v234 = vpop.xlane.xlu0 %233
    %v235 = vsel %vm188, %v219, 0.0
    %236 = vadd.xlane.f32.xlu0 %v235
    %v237 = vpop.xlane.xlu0 %236
    %v238 = vmul.f32 %v222, %v207
    %v239 = vmul.f32 %v225, %v207
    %v240 = vmul.f32 %v228, %v207
    %v241 = vmul.f32 %v231, %v207
    %v242 = vmul.f32 %v234, %v207
    %v243 = vmul.f32 %v237, %v207
    %v244 = vmul.f32 %v208, %v208
    %v245 = vmul.f32 %v209, %v209
    %v246 = vmul.f32 %v210, %v210
    %v247 = vmul.f32 %v211, %v211
    %v248 = vmul.f32 %v212, %v212
    %v249 = vmul.f32 %v213, %v213
    %v250 = vsub.f32 %v238, %v244
    %v251 = vsub.f32 %v239, %v245
    %v252 = vsub.f32 %v240, %v246
    %v253 = vsub.f32 %v241, %v247
    %v254 = vsub.f32 %v242, %v248
    %v255 = vsub.f32 %v243, %v249
    %v256 = vsub.f32 %v158, %v208
    %v257 = vsub.f32 %v163, %v209
    %v258 = vsub.f32 %v168, %v210
    %v259 = vsub.f32 %v173, %v211
    %v260 = vsub.f32 %v178, %v212
    %v261 = vsub.f32 %v183, %v213
    %v262 = vadd.f32 %v250, 1e-06
    %v263 = vadd.f32 %v251, 1e-06
    %v264 = vadd.f32 %v252, 1e-06
    %v265 = vadd.f32 %v253, 1e-06
    %v266 = vadd.f32 %v254, 1e-06
    %v267 = vadd.f32 %v255, 1e-06
    %v268 = vrsqrt.pop %v262
    %v269 = vrsqrt.pop %v263
    %v270 = vrsqrt.pop %v264
    %v271 = vrsqrt.pop %v265
    %v272 = vrsqrt.pop %v266
    %v273 = vrsqrt.pop %v267
    %v274 = vmul.f32 %v256, %v268
    %v275 = vmul.f32 %v257, %v269
    %v276 = vmul.f32 %v258, %v270
    %v277 = vmul.f32 %v259, %v271
    %v278 = vmul.f32 %v260, %v272
    %v279 = vmul.f32 %v261, %v273
    %v280 = vlaneseq
    %v281 = vshrl.u32 %v280, 7
    %v282 = vsub.s32 0, %v281
    %v283 = vrot.slane %v186, %v282
    %v284 = vmul.f32 %v274, %v283
    %v285 = vmul.f32 %v275, %v283
    %v286 = vmul.f32 %v276, %v283
    %v287 = vmul.f32 %v277, %v283
    %v288 = vmul.f32 %v278, %v283
    %v289 = vmul.f32 %v279, %v283
    %v290 = vlaneseq
    %v291 = vshrl.u32 %v290, 7
    %v292 = vsub.s32 0, %v291
    %v293 = vrot.slane %v187, %v292
    %v294 = vadd.f32 %v284, %v293
    %v295 = vadd.f32 %v285, %v293
    %v296 = vadd.f32 %v286, %v293
    %v297 = vadd.f32 %v287, %v293
    %v298 = vadd.f32 %v288, %v293
    %v299 = vadd.f32 %v289, %v293
    %v300 = vld [vmem:[%s1 + $0xc0] sm:$0xff]
    %v301 = vld [vmem:[%s2 + $0xa] sm:$0x1]
    %v302 = vlaneseq
    %v303 = vshrl.u32 %v302, 7
    %v304 = vsub.s32 0, %v303
    %v305 = vrot.slane %v301, %v304
    %v307 = vsel %vm188, %v294, 0
    %v310 = vsel %vm188, %v295, 0
    %v313 = vsel %vm188, %v296, 0
    %v316 = vsel %vm188, %v297, 0
    %v319 = vsel %vm188, %v298, 0
    %v322 = vsel %vm188, %v299, 0
    %324 = vmatprep.subr.mxu0 0.0
    %325 = vmatpush1.msra.mxu0 0.0
    %326 = vmatprep.subr.mxu0 0.0
    %327 = vmatpush1.msra.mxu0 0.0
    %328 = vmatprep.subr.mxu0 0.0
    %329 = vmatpush1.msra.mxu0 0.0
    %330 = vmatprep.subr.mxu0 0.0
    %331 = vmatpush1.msra.mxu0 0.0
    %332 = vmatprep.subr.mxu0 0.0
    %333 = vmatpush1.msra.mxu0 0.0
    %334 = vmatprep.subr.mxu0 0.0
    %335 = vmatpush1.msra.mxu0 0.0
    %336 = vmatprep.subr.mxu0 0.0
    %337 = vmatpush1.msra.mxu0 0.0
    %338 = vmatprep.subr.mxu0 0.0
    %339 = vmatpush1.msra.mxu0 0.0
    %340 = vmatprep.subr.mxu0 0.0
    %341 = vmatpush1.msra.mxu0 0.0
    %342 = vmatprep.subr.mxu0 0.0
    %343 = vmatpush1.msra.mxu0 0.0
    %344 = vmatprep.subr.mxu0 0.0
    %345 = vmatpush1.msra.mxu0 0.0
    %346 = vmatprep.subr.mxu0 0.0
    %347 = vmatpush1.msra.mxu0 0.0
    %348 = vmatprep.subr.mxu0 0.0
    %349 = vmatpush1.msra.mxu0 0.0
    %350 = vmatprep.subr.mxu0 0.0
    %351 = vmatpush1.msra.mxu0 0.0
    %352 = vmatprep.subr.mxu0 0.0
    %353 = vmatpush1.msra.mxu0 0.0
    %354 = vmatprep.subr.mxu0 0.0
    %355 = vmatpush1.msra.mxu0 %v300
    %356 = vmatprep.subr.mxu0 0.0
    %357 = vmatpush2.msra.mxu0 0.0
    %358 = vmatprep.subr.mxu0 0.0
    %359 = vmatpush2.msra.mxu0 0.0
    %360 = vmatprep.subr.mxu0 0.0
    %361 = vmatpush2.msra.mxu0 0.0
    %362 = vmatprep.subr.mxu0 0.0
    %363 = vmatpush2.msra.mxu0 0.0
    %364 = vmatprep.subr.mxu0 0.0
    %365 = vmatpush2.msra.mxu0 0.0
    %366 = vmatprep.subr.mxu0 0.0
    %367 = vmatpush2.msra.mxu0 0.0
    %368 = vmatprep.subr.mxu0 0.0
    %369 = vmatpush2.msra.mxu0 0.0
    %370 = vmatprep.subr.mxu0 0.0
    %371 = vmatpush2.msra.mxu0 0.0
    %372 = vmatprep.subr.mxu0 0.0
    %373 = vmatpush2.msra.mxu0 0.0
    %374 = vmatprep.subr.mxu0 0.0
    %375 = vmatpush2.msra.mxu0 0.0
    %376 = vmatprep.subr.mxu0 0.0
    %377 = vmatpush2.msra.mxu0 0.0
    %378 = vmatprep.subr.mxu0 0.0
    %379 = vmatpush2.msra.mxu0 0.0
    %380 = vmatprep.subr.mxu0 0.0
    %381 = vmatpush2.msra.mxu0 0.0
    %382 = vmatprep.subr.mxu0 0.0
    %383 = vmatpush2.msra.mxu0 0.0
    %384 = vmatprep.subr.mxu0 0.0
    %385 = vmatpush2.msra.mxu0 0.0
    %386 = vmatprep.subr.mxu0 0.0
    %387 = vmatpush2.msra.mxu0 0.0
    %388 = vmatprep.mubr.f32.mxu0 0.0
    %389 = vmatmul.mubr.f32.gmra.mxu0 %v307
    %v390 = vpop.f32.mrf.mxu0
    %v391 = vadd.f32 %v305, %v390
    %v392 = vpop.f32.mrf.mxu0
    %393 = vmatprep.mubr.f32.mxu0 0.0
    %394 = vmatmul.mubr.f32.gmra.mxu0 %v310
    %v395 = vpop.f32.mrf.mxu0
    %v396 = vadd.f32 %v305, %v395
    %v397 = vpop.f32.mrf.mxu0
    %398 = vmatprep.mubr.f32.mxu0 0.0
    %399 = vmatmul.mubr.f32.gmra.mxu0 %v313
    %v400 = vpop.f32.mrf.mxu0
    %v401 = vadd.f32 %v305, %v400
    %v402 = vpop.f32.mrf.mxu0
    %403 = vmatprep.mubr.f32.mxu0 0.0
    %404 = vmatmul.mubr.f32.gmra.mxu0 %v316
    %v405 = vpop.f32.mrf.mxu0
    %v406 = vadd.f32 %v305, %v405
    %v407 = vpop.f32.mrf.mxu0
    %408 = vmatprep.mubr.f32.mxu0 0.0
    %409 = vmatmul.mubr.f32.gmra.mxu0 %v319
    %v410 = vpop.f32.mrf.mxu0
    %v411 = vadd.f32 %v305, %v410
    %v412 = vpop.f32.mrf.mxu0
    %413 = vmatprep.mubr.f32.mxu0 0.0
    %414 = vmatmul.mubr.f32.gmra.mxu0 %v322
    %v415 = vpop.f32.mrf.mxu0
    %v416 = vadd.f32 %v305, %v415
    %v417 = vpop.f32.mrf.mxu0
    %418 = vdwg.mxu0
    %v419 = vmul.f32 %v391, 0.5
    %v420 = vmul.f32 %v396, 0.5
    %v421 = vmul.f32 %v401, 0.5
    %v422 = vmul.f32 %v406, 0.5
    %v423 = vmul.f32 %v411, 0.5
    %v424 = vmul.f32 %v416, 0.5
    %431 = vrot.lane.b32.xlu0 %v391, 120
    %v432 = vpop.permute.xlu0 %431
    %433 = vrot.lane.b32.xlu0 %v396, 120
    %v434 = vpop.permute.xlu0 %433
    %435 = vrot.lane.b32.xlu0 %v401, 120
    %v436 = vpop.permute.xlu0 %435
    %437 = vrot.lane.b32.xlu0 %v406, 120
    %v438 = vpop.permute.xlu0 %437
    %439 = vrot.lane.b32.xlu0 %v411, 120
    %v440 = vpop.permute.xlu0 %439
    %441 = vrot.lane.b32.xlu0 %v416, 120
    %v442 = vpop.permute.xlu0 %441
    %vm443 = vcmask 31744
    %v445 = vsel %vm443, %v419, 0
    %v448 = vsel %vm443, %v420, 0
    %v451 = vsel %vm443, %v421, 0
    %v454 = vsel %vm443, %v422, 0
    %v457 = vsel %vm443, %v423, 0
    %v460 = vsel %vm443, %v424, 0
    %v462 = vsel %vm443, %v432, 0
    %v464 = vsel %vm443, %v434, 0
    %v466 = vsel %vm443, %v436, 0
    %v468 = vsel %vm443, %v438, 0
    %v470 = vsel %vm443, %v440, 0
    %v472 = vsel %vm443, %v442, 0
    %474 = vmatprep.subr.mxu0 0.0
    %475 = vmatpush1.xpose.msra.mxu0 0.0
    %476 = vmatprep.subr.mxu0 0.0
    %477 = vmatpush1.xpose.msra.mxu0 0.0
    %478 = vmatprep.subr.mxu0 0.0
    %479 = vmatpush1.xpose.msra.mxu0 0.0
    %480 = vmatprep.subr.mxu0 0.0
    %481 = vmatpush1.xpose.msra.mxu0 0.0
    %482 = vmatprep.subr.mxu0 0.0
    %483 = vmatpush1.xpose.msra.mxu0 0.0
    %484 = vmatprep.subr.mxu0 0.0
    %485 = vmatpush1.xpose.msra.mxu0 0.0
    %486 = vmatprep.subr.mxu0 0.0
    %487 = vmatpush1.xpose.msra.mxu0 0.0
    %488 = vmatprep.subr.mxu0 0.0
    %489 = vmatpush1.xpose.msra.mxu0 0.0
    %490 = vmatprep.subr.mxu0 0.0
    %491 = vmatpush1.xpose.msra.mxu0 0.0
    %492 = vmatprep.subr.mxu0 0.0
    %493 = vmatpush1.xpose.msra.mxu0 0.0
    %494 = vmatprep.subr.mxu0 0.0
    %495 = vmatpush1.xpose.msra.mxu0 %v472
    %496 = vmatprep.subr.mxu0 0.0
    %497 = vmatpush1.xpose.msra.mxu0 %v470
    %498 = vmatprep.subr.mxu0 0.0
    %499 = vmatpush1.xpose.msra.mxu0 %v468
    %500 = vmatprep.subr.mxu0 0.0
    %501 = vmatpush1.xpose.msra.mxu0 %v466
    %502 = vmatprep.subr.mxu0 0.0
    %503 = vmatpush1.xpose.msra.mxu0 %v464
    %504 = vmatprep.subr.mxu0 0.0
    %505 = vmatpush1.xpose.msra.mxu0 %v462
    %506 = vmatprep.subr.mxu0 0.0
    %507 = vmatpush2.xpose.msra.mxu0 0.0
    %508 = vmatprep.subr.mxu0 0.0
    %509 = vmatpush2.xpose.msra.mxu0 0.0
    %510 = vmatprep.subr.mxu0 0.0
    %511 = vmatpush2.xpose.msra.mxu0 0.0
    %512 = vmatprep.subr.mxu0 0.0
    %513 = vmatpush2.xpose.msra.mxu0 0.0
    %514 = vmatprep.subr.mxu0 0.0
    %515 = vmatpush2.xpose.msra.mxu0 0.0
    %516 = vmatprep.subr.mxu0 0.0
    %517 = vmatpush2.xpose.msra.mxu0 0.0
    %518 = vmatprep.subr.mxu0 0.0
    %519 = vmatpush2.xpose.msra.mxu0 0.0
    %520 = vmatprep.subr.mxu0 0.0
    %521 = vmatpush2.xpose.msra.mxu0 0.0
    %522 = vmatprep.subr.mxu0 0.0
    %523 = vmatpush2.xpose.msra.mxu0 0.0
    %524 = vmatprep.subr.mxu0 0.0
    %525 = vmatpush2.xpose.msra.mxu0 0.0
    %526 = vmatprep.subr.mxu0 0.0
    %527 = vmatpush2.xpose.msra.mxu0 0.0
    %528 = vmatprep.subr.mxu0 0.0
    %529 = vmatpush2.xpose.msra.mxu0 0.0
    %530 = vmatprep.subr.mxu0 0.0
    %531 = vmatpush2.xpose.msra.mxu0 0.0
    %532 = vmatprep.subr.mxu0 0.0
    %533 = vmatpush2.xpose.msra.mxu0 0.0
    %534 = vmatprep.subr.mxu0 0.0
    %535 = vmatpush2.xpose.msra.mxu0 0.0
    %536 = vmatprep.subr.mxu0 0.0
    %537 = vmatpush2.xpose.msra.mxu0 0.0
    %538 = vmatprep.mubr.f32.mxu0 0.0
    %539 = vmatmul.mubr.f32.gmra.mxu0 %v445
    %v540 = vpop.f32.mrf.mxu0
    %v541 = vadd.f32 0.0, %v540
    %v542 = vpop.f32.mrf.mxu0
    %543 = vmatprep.mubr.f32.mxu0 0.0
    %544 = vmatmul.mubr.f32.gmra.mxu0 %v448
    %v545 = vpop.f32.mrf.mxu0
    %v546 = vadd.f32 0.0, %v545
    %v547 = vpop.f32.mrf.mxu0
    %548 = vmatprep.mubr.f32.mxu0 0.0
    %549 = vmatmul.mubr.f32.gmra.mxu0 %v451
    %v550 = vpop.f32.mrf.mxu0
    %v551 = vadd.f32 0.0, %v550
    %v552 = vpop.f32.mrf.mxu0
    %553 = vmatprep.mubr.f32.mxu0 0.0
    %554 = vmatmul.mubr.f32.gmra.mxu0 %v454
    %v555 = vpop.f32.mrf.mxu0
    %v556 = vadd.f32 0.0, %v555
    %v557 = vpop.f32.mrf.mxu0
    %558 = vmatprep.mubr.f32.mxu0 0.0
    %559 = vmatmul.mubr.f32.gmra.mxu0 %v457
    %v560 = vpop.f32.mrf.mxu0
    %v561 = vadd.f32 0.0, %v560
    %v562 = vpop.f32.mrf.mxu0
    %563 = vmatprep.mubr.f32.mxu0 0.0
    %564 = vmatmul.mubr.f32.gmra.mxu0 %v460
    %v565 = vpop.f32.mrf.mxu0
    %v566 = vadd.f32 0.0, %v565
    %v567 = vpop.f32.mrf.mxu0
    %568 = vdwg.mxu0
    %569 = vrot.lane.b32.xlu0 %v419, 124
    %v570 = vpop.permute.xlu0 %569
    %571 = vrot.lane.b32.xlu0 %v420, 124
    %v572 = vpop.permute.xlu0 %571
    %573 = vrot.lane.b32.xlu0 %v421, 124
    %v574 = vpop.permute.xlu0 %573
    %575 = vrot.lane.b32.xlu0 %v422, 124
    %v576 = vpop.permute.xlu0 %575
    %577 = vrot.lane.b32.xlu0 %v423, 124
    %v578 = vpop.permute.xlu0 %577
    %579 = vrot.lane.b32.xlu0 %v424, 124
    %v580 = vpop.permute.xlu0 %579
    %581 = vrot.lane.b32.xlu0 %v391, 116
    %v582 = vpop.permute.xlu0 %581
    %583 = vrot.lane.b32.xlu0 %v396, 116
    %v584 = vpop.permute.xlu0 %583
    %585 = vrot.lane.b32.xlu0 %v401, 116
    %v586 = vpop.permute.xlu0 %585
    %587 = vrot.lane.b32.xlu0 %v406, 116
    %v588 = vpop.permute.xlu0 %587
    %589 = vrot.lane.b32.xlu0 %v411, 116
    %v590 = vpop.permute.xlu0 %589
    %591 = vrot.lane.b32.xlu0 %v416, 116
    %v592 = vpop.permute.xlu0 %591
    %v593 = vsel %vm443, %v570, 0
    %v595 = vsel %vm443, %v572, 0
    %v597 = vsel %vm443, %v574, 0
    %v599 = vsel %vm443, %v576, 0
    %v601 = vsel %vm443, %v578, 0
    %v603 = vsel %vm443, %v580, 0
    %v605 = vsel %vm443, %v582, 0
    %v607 = vsel %vm443, %v584, 0
    %v609 = vsel %vm443, %v586, 0
    %v611 = vsel %vm443, %v588, 0
    %v613 = vsel %vm443, %v590, 0
    %v615 = vsel %vm443, %v592, 0
    %617 = vmatprep.subr.mxu0 0.0
    %618 = vmatpush1.xpose.msra.mxu0 0.0
    %619 = vmatprep.subr.mxu0 0.0
    %620 = vmatpush1.xpose.msra.mxu0 0.0
    %621 = vmatprep.subr.mxu0 0.0
    %622 = vmatpush1.xpose.msra.mxu0 0.0
    %623 = vmatprep.subr.mxu0 0.0
    %624 = vmatpush1.xpose.msra.mxu0 0.0
    %625 = vmatprep.subr.mxu0 0.0
    %626 = vmatpush1.xpose.msra.mxu0 0.0
    %627 = vmatprep.subr.mxu0 0.0
    %628 = vmatpush1.xpose.msra.mxu0 0.0
    %629 = vmatprep.subr.mxu0 0.0
    %630 = vmatpush1.xpose.msra.mxu0 0.0
    %631 = vmatprep.subr.mxu0 0.0
    %632 = vmatpush1.xpose.msra.mxu0 0.0
    %633 = vmatprep.subr.mxu0 0.0
    %634 = vmatpush1.xpose.msra.mxu0 0.0
    %635 = vmatprep.subr.mxu0 0.0
    %636 = vmatpush1.xpose.msra.mxu0 0.0
    %637 = vmatprep.subr.mxu0 0.0
    %638 = vmatpush1.xpose.msra.mxu0 %v615
    %639 = vmatprep.subr.mxu0 0.0
    %640 = vmatpush1.xpose.msra.mxu0 %v613
    %641 = vmatprep.subr.mxu0 0.0
    %642 = vmatpush1.xpose.msra.mxu0 %v611
    %643 = vmatprep.subr.mxu0 0.0
    %644 = vmatpush1.xpose.msra.mxu0 %v609
    %645 = vmatprep.subr.mxu0 0.0
    %646 = vmatpush1.xpose.msra.mxu0 %v607
    %647 = vmatprep.subr.mxu0 0.0
    %648 = vmatpush1.xpose.msra.mxu0 %v605
    %649 = vmatprep.subr.mxu0 0.0
    %650 = vmatpush2.xpose.msra.mxu0 0.0
    %651 = vmatprep.subr.mxu0 0.0
    %652 = vmatpush2.xpose.msra.mxu0 0.0
    %653 = vmatprep.subr.mxu0 0.0
    %654 = vmatpush2.xpose.msra.mxu0 0.0
    %655 = vmatprep.subr.mxu0 0.0
    %656 = vmatpush2.xpose.msra.mxu0 0.0
    %657 = vmatprep.subr.mxu0 0.0
    %658 = vmatpush2.xpose.msra.mxu0 0.0
    %659 = vmatprep.subr.mxu0 0.0
    %660 = vmatpush2.xpose.msra.mxu0 0.0
    %661 = vmatprep.subr.mxu0 0.0
    %662 = vmatpush2.xpose.msra.mxu0 0.0
    %663 = vmatprep.subr.mxu0 0.0
    %664 = vmatpush2.xpose.msra.mxu0 0.0
    %665 = vmatprep.subr.mxu0 0.0
    %666 = vmatpush2.xpose.msra.mxu0 0.0
    %667 = vmatprep.subr.mxu0 0.0
    %668 = vmatpush2.xpose.msra.mxu0 0.0
    %669 = vmatprep.subr.mxu0 0.0
    %670 = vmatpush2.xpose.msra.mxu0 0.0
    %671 = vmatprep.subr.mxu0 0.0
    %672 = vmatpush2.xpose.msra.mxu0 0.0
    %673 = vmatprep.subr.mxu0 0.0
    %674 = vmatpush2.xpose.msra.mxu0 0.0
    %675 = vmatprep.subr.mxu0 0.0
    %676 = vmatpush2.xpose.msra.mxu0 0.0
    %677 = vmatprep.subr.mxu0 0.0
    %678 = vmatpush2.xpose.msra.mxu0 0.0
    %679 = vmatprep.subr.mxu0 0.0
    %680 = vmatpush2.xpose.msra.mxu0 0.0
    %681 = vmatprep.mubr.f32.mxu0 0.0
    %682 = vmatmul.mubr.f32.gmra.mxu0 %v593
    %v683 = vpop.f32.mrf.mxu0
    %v684 = vadd.f32 0.0, %v683
    %v685 = vpop.f32.mrf.mxu0
    %686 = vmatprep.mubr.f32.mxu0 0.0
    %687 = vmatmul.mubr.f32.gmra.mxu0 %v595
    %v688 = vpop.f32.mrf.mxu0
    %v689 = vadd.f32 0.0, %v688
    %v690 = vpop.f32.mrf.mxu0
    %691 = vmatprep.mubr.f32.mxu0 0.0
    %692 = vmatmul.mubr.f32.gmra.mxu0 %v597
    %v693 = vpop.f32.mrf.mxu0
    %v694 = vadd.f32 0.0, %v693
    %v695 = vpop.f32.mrf.mxu0
    %696 = vmatprep.mubr.f32.mxu0 0.0
    %697 = vmatmul.mubr.f32.gmra.mxu0 %v599
    %v698 = vpop.f32.mrf.mxu0
    %v699 = vadd.f32 0.0, %v698
    %v700 = vpop.f32.mrf.mxu0
    %701 = vmatprep.mubr.f32.mxu0 0.0
    %702 = vmatmul.mubr.f32.gmra.mxu0 %v601
    %v703 = vpop.f32.mrf.mxu0
    %v704 = vadd.f32 0.0, %v703
    %v705 = vpop.f32.mrf.mxu0
    %706 = vmatprep.mubr.f32.mxu0 0.0
    %707 = vmatmul.mubr.f32.gmra.mxu0 %v603
    %v708 = vpop.f32.mrf.mxu0
    %v709 = vadd.f32 0.0, %v708
    %v710 = vpop.f32.mrf.mxu0
    %711 = vdwg.mxu0
    %v712 = vadd.f32 %v541, %v18
    %v713 = vadd.f32 %v546, %v19
    %v714 = vadd.f32 %v551, %v20
    %v715 = vadd.f32 %v556, %v21
    %v716 = vadd.f32 %v561, %v22
    %v717 = vadd.f32 %v566, %v23
    %v718 = vadd.f32 %v684, %v24
    %v719 = vadd.f32 %v689, %v25
    %v720 = vadd.f32 %v694, %v26
    %v721 = vadd.f32 %v699, %v27
    %v722 = vadd.f32 %v704, %v28
    %v723 = vadd.f32 %v709, %v29
    %vm724 = vcmask 392192
    %v725 = vsel %vm724, %v712, -inf
    %726 = vmax.xlane.f32.xlu0 %v725
    %v727 = vpop.xlane.xlu0 %726
    %v728 = vsel %vm724, %v713, -inf
    %729 = vmax.xlane.f32.xlu0 %v728
    %v730 = vpop.xlane.xlu0 %729
    %v731 = vsel %vm724, %v714, -inf
    %732 = vmax.xlane.f32.xlu0 %v731
    %v733 = vpop.xlane.xlu0 %732
    %v734 = vsel %vm724, %v715, -inf
    %735 = vmax.xlane.f32.xlu0 %v734
    %v736 = vpop.xlane.xlu0 %735
    %v737 = vsel %vm724, %v716, -inf
    %738 = vmax.xlane.f32.xlu0 %v737
    %v739 = vpop.xlane.xlu0 %738
    %v740 = vsel %vm724, %v717, -inf
    %741 = vmax.xlane.f32.xlu0 %v740
    %v742 = vpop.xlane.xlu0 %741
    %v743 = vsel %vm724, %v718, -inf
    %744 = vmax.xlane.f32.xlu0 %v743
    %v745 = vpop.xlane.xlu0 %744
    %v746 = vsel %vm724, %v719, -inf
    %747 = vmax.xlane.f32.xlu0 %v746
    %v748 = vpop.xlane.xlu0 %747
    %v749 = vsel %vm724, %v720, -inf
    %750 = vmax.xlane.f32.xlu0 %v749
    %v751 = vpop.xlane.xlu0 %750
    %v752 = vsel %vm724, %v721, -inf
    %753 = vmax.xlane.f32.xlu0 %v752
    %v754 = vpop.xlane.xlu0 %753
    %v755 = vsel %vm724, %v722, -inf
    %756 = vmax.xlane.f32.xlu0 %v755
    %v757 = vpop.xlane.xlu0 %756
    %v758 = vsel %vm724, %v723, -inf
    %759 = vmax.xlane.f32.xlu0 %v758
    %v760 = vpop.xlane.xlu0 %759
    %v761 = vsub.f32 %v712, %v727
    %v762 = vsub.f32 %v713, %v730
    %v763 = vsub.f32 %v714, %v733
    %v764 = vsub.f32 %v715, %v736
    %v765 = vsub.f32 %v716, %v739
    %v766 = vsub.f32 %v717, %v742
    %v767 = vsub.f32 %v718, %v745
    %v768 = vsub.f32 %v719, %v748
    %v769 = vsub.f32 %v720, %v751
    %v770 = vsub.f32 %v721, %v754
    %v771 = vsub.f32 %v722, %v757
    %v772 = vsub.f32 %v723, %v760
    %v773 = vmul.f32 %v761, 1.442695
    %v774 = vpow.pop %v773
    %v775 = vmul.f32 %v762, 1.442695
    %v776 = vpow.pop %v775
    %v777 = vmul.f32 %v763, 1.442695
    %v778 = vpow.pop %v777
    %v779 = vmul.f32 %v764, 1.442695
    %v780 = vpow.pop %v779
    %v781 = vmul.f32 %v765, 1.442695
    %v782 = vpow.pop %v781
    %v783 = vmul.f32 %v766, 1.442695
    %v784 = vpow.pop %v783
    %v785 = vmul.f32 %v767, 1.442695
    %v786 = vpow.pop %v785
    %v787 = vmul.f32 %v768, 1.442695
    %v788 = vpow.pop %v787
    %v789 = vmul.f32 %v769, 1.442695
    %v790 = vpow.pop %v789
    %v791 = vmul.f32 %v770, 1.442695
    %v792 = vpow.pop %v791
    %v793 = vmul.f32 %v771, 1.442695
    %v794 = vpow.pop %v793
    %v795 = vmul.f32 %v772, 1.442695
    %v796 = vpow.pop %v795
    %v797 = vsel %vm724, %v774, 0.0
    %798 = vadd.xlane.f32.xlu0 %v797
    %v799 = vpop.xlane.xlu0 %798
    %v800 = vsel %vm724, %v776, 0.0
    %801 = vadd.xlane.f32.xlu0 %v800
    %v802 = vpop.xlane.xlu0 %801
    %v803 = vsel %vm724, %v778, 0.0
    %804 = vadd.xlane.f32.xlu0 %v803
    %v805 = vpop.xlane.xlu0 %804
    %v806 = vsel %vm724, %v780, 0.0
    %807 = vadd.xlane.f32.xlu0 %v806
    %v808 = vpop.xlane.xlu0 %807
    %v809 = vsel %vm724, %v782, 0.0
    %810 = vadd.xlane.f32.xlu0 %v809
    %v811 = vpop.xlane.xlu0 %810
    %v812 = vsel %vm724, %v784, 0.0
    %813 = vadd.xlane.f32.xlu0 %v812
    %v814 = vpop.xlane.xlu0 %813
    %v815 = vsel %vm724, %v786, 0.0
    %816 = vadd.xlane.f32.xlu0 %v815
    %v817 = vpop.xlane.xlu0 %816
    %v818 = vsel %vm724, %v788, 0.0
    %819 = vadd.xlane.f32.xlu0 %v818
    %v820 = vpop.xlane.xlu0 %819
    %v821 = vsel %vm724, %v790, 0.0
    %822 = vadd.xlane.f32.xlu0 %v821
    %v823 = vpop.xlane.xlu0 %822
    %v824 = vsel %vm724, %v792, 0.0
    %825 = vadd.xlane.f32.xlu0 %v824
    %v826 = vpop.xlane.xlu0 %825
    %v827 = vsel %vm724, %v794, 0.0
    %828 = vadd.xlane.f32.xlu0 %v827
    %v829 = vpop.xlane.xlu0 %828
    %v830 = vsel %vm724, %v796, 0.0
    %831 = vadd.xlane.f32.xlu0 %v830
    %v832 = vpop.xlane.xlu0 %831
    %v833 = vrcp.pop %v799
    %v834 = vrcp.pop %v802
    %v835 = vrcp.pop %v805
    %v836 = vrcp.pop %v808
    %v837 = vrcp.pop %v811
    %v838 = vrcp.pop %v814
    %v839 = vrcp.pop %v817
    %v840 = vrcp.pop %v820
    %v841 = vrcp.pop %v823
    %v842 = vrcp.pop %v826
    %v843 = vrcp.pop %v829
    %v844 = vrcp.pop %v832
    %v845 = vmul.f32 %v774, %v833
    %v846 = vmul.f32 %v776, %v834
    %v847 = vmul.f32 %v778, %v835
    %v848 = vmul.f32 %v780, %v836
    %v849 = vmul.f32 %v782, %v837
    %v850 = vmul.f32 %v784, %v838
    %v851 = vmul.f32 %v786, %v839
    %v852 = vmul.f32 %v788, %v840
    %v853 = vmul.f32 %v790, %v841
    %v854 = vmul.f32 %v792, %v842
    %v855 = vmul.f32 %v794, %v843
    %v856 = vmul.f32 %v796, %v844
    %v857 = vld [vmem:[%s1 + $0xc8] sm:$0xff]
    %858 = vrot.lane.b32.xlu0 %v391, 112
    %v859 = vpop.permute.xlu0 %858
    %860 = vrot.lane.b32.xlu0 %v396, 112
    %v861 = vpop.permute.xlu0 %860
    %862 = vrot.lane.b32.xlu0 %v401, 112
    %v863 = vpop.permute.xlu0 %862
    %864 = vrot.lane.b32.xlu0 %v406, 112
    %v865 = vpop.permute.xlu0 %864
    %866 = vrot.lane.b32.xlu0 %v411, 112
    %v867 = vpop.permute.xlu0 %866
    %868 = vrot.lane.b32.xlu0 %v416, 112
    %v869 = vpop.permute.xlu0 %868
    %v877 = vsel %vm724, %v845, 0
    %v880 = vsel %vm724, %v846, 0
    %v883 = vsel %vm724, %v847, 0
    %v886 = vsel %vm724, %v848, 0
    %v889 = vsel %vm724, %v849, 0
    %v892 = vsel %vm724, %v850, 0
    %894 = vmatprep.subr.mxu0 0.0
    %895 = vmatpush1.msra.mxu0 0.0
    %896 = vmatprep.subr.mxu0 0.0
    %897 = vmatpush1.msra.mxu0 0.0
    %898 = vmatprep.subr.mxu0 0.0
    %899 = vmatpush1.msra.mxu0 0.0
    %900 = vmatprep.subr.mxu0 0.0
    %901 = vmatpush1.msra.mxu0 0.0
    %902 = vmatprep.subr.mxu0 0.0
    %903 = vmatpush1.msra.mxu0 0.0
    %904 = vmatprep.subr.mxu0 0.0
    %905 = vmatpush1.msra.mxu0 0.0
    %906 = vmatprep.subr.mxu0 0.0
    %907 = vmatpush1.msra.mxu0 0.0
    %908 = vmatprep.subr.mxu0 0.0
    %909 = vmatpush1.msra.mxu0 0.0
    %910 = vmatprep.subr.mxu0 0.0
    %911 = vmatpush1.msra.mxu0 0.0
    %912 = vmatprep.subr.mxu0 0.0
    %913 = vmatpush1.msra.mxu0 0.0
    %914 = vmatprep.subr.mxu0 0.0
    %915 = vmatpush1.msra.mxu0 %v869
    %916 = vmatprep.subr.mxu0 0.0
    %917 = vmatpush1.msra.mxu0 %v867
    %918 = vmatprep.subr.mxu0 0.0
    %919 = vmatpush1.msra.mxu0 %v865
    %920 = vmatprep.subr.mxu0 0.0
    %921 = vmatpush1.msra.mxu0 %v863
    %922 = vmatprep.subr.mxu0 0.0
    %923 = vmatpush1.msra.mxu0 %v861
    %924 = vmatprep.subr.mxu0 0.0
    %925 = vmatpush1.msra.mxu0 %v859
    %926 = vmatprep.subr.mxu0 0.0
    %927 = vmatpush2.msra.mxu0 0.0
    %928 = vmatprep.subr.mxu0 0.0
    %929 = vmatpush2.msra.mxu0 0.0
    %930 = vmatprep.subr.mxu0 0.0
    %931 = vmatpush2.msra.mxu0 0.0
    %932 = vmatprep.subr.mxu0 0.0
    %933 = vmatpush2.msra.mxu0 0.0
    %934 = vmatprep.subr.mxu0 0.0
    %935 = vmatpush2.msra.mxu0 0.0
    %936 = vmatprep.subr.mxu0 0.0
    %937 = vmatpush2.msra.mxu0 0.0
    %938 = vmatprep.subr.mxu0 0.0
    %939 = vmatpush2.msra.mxu0 0.0
    %940 = vmatprep.subr.mxu0 0.0
    %941 = vmatpush2.msra.mxu0 0.0
    %942 = vmatprep.subr.mxu0 0.0
    %943 = vmatpush2.msra.mxu0 0.0
    %944 = vmatprep.subr.mxu0 0.0
    %945 = vmatpush2.msra.mxu0 0.0
    %946 = vmatprep.subr.mxu0 0.0
    %947 = vmatpush2.msra.mxu0 0.0
    %948 = vmatprep.subr.mxu0 0.0
    %949 = vmatpush2.msra.mxu0 0.0
    %950 = vmatprep.subr.mxu0 0.0
    %951 = vmatpush2.msra.mxu0 0.0
    %952 = vmatprep.subr.mxu0 0.0
    %953 = vmatpush2.msra.mxu0 0.0
    %954 = vmatprep.subr.mxu0 0.0
    %955 = vmatpush2.msra.mxu0 0.0
    %956 = vmatprep.subr.mxu0 0.0
    %957 = vmatpush2.msra.mxu0 0.0
    %958 = vmatprep.mubr.f32.mxu0 0.0
    %959 = vmatmul.mubr.f32.gmra.mxu0 %v877
    %v960 = vpop.f32.mrf.mxu0
    %v961 = vadd.f32 0.0, %v960
    %v962 = vpop.f32.mrf.mxu0
    %963 = vmatprep.mubr.f32.mxu0 0.0
    %964 = vmatmul.mubr.f32.gmra.mxu0 %v880
    %v965 = vpop.f32.mrf.mxu0
    %v966 = vadd.f32 0.0, %v965
    %v967 = vpop.f32.mrf.mxu0
    %968 = vmatprep.mubr.f32.mxu0 0.0
    %969 = vmatmul.mubr.f32.gmra.mxu0 %v883
    %v970 = vpop.f32.mrf.mxu0
    %v971 = vadd.f32 0.0, %v970
    %v972 = vpop.f32.mrf.mxu0
    %973 = vmatprep.mubr.f32.mxu0 0.0
    %974 = vmatmul.mubr.f32.gmra.mxu0 %v886
    %v975 = vpop.f32.mrf.mxu0
    %v976 = vadd.f32 0.0, %v975
    %v977 = vpop.f32.mrf.mxu0
    %978 = vmatprep.mubr.f32.mxu0 0.0
    %979 = vmatmul.mubr.f32.gmra.mxu0 %v889
    %v980 = vpop.f32.mrf.mxu0
    %v981 = vadd.f32 0.0, %v980
    %v982 = vpop.f32.mrf.mxu0
    %983 = vmatprep.mubr.f32.mxu0 0.0
    %984 = vmatmul.mubr.f32.gmra.mxu0 %v892
    %v985 = vpop.f32.mrf.mxu0
    %v986 = vadd.f32 0.0, %v985
    %v987 = vpop.f32.mrf.mxu0
    %988 = vdwg.mxu0
    %989 = vrot.lane.b32.xlu0 %v391, 108
    %v990 = vpop.permute.xlu0 %989
    %991 = vrot.lane.b32.xlu0 %v396, 108
    %v992 = vpop.permute.xlu0 %991
    %993 = vrot.lane.b32.xlu0 %v401, 108
    %v994 = vpop.permute.xlu0 %993
    %995 = vrot.lane.b32.xlu0 %v406, 108
    %v996 = vpop.permute.xlu0 %995
    %997 = vrot.lane.b32.xlu0 %v411, 108
    %v998 = vpop.permute.xlu0 %997
    %999 = vrot.lane.b32.xlu0 %v416, 108
    %v1000 = vpop.permute.xlu0 %999
    %v1008 = vsel %vm724, %v851, 0
    %v1011 = vsel %vm724, %v852, 0
    %v1014 = vsel %vm724, %v853, 0
    %v1017 = vsel %vm724, %v854, 0
    %v1020 = vsel %vm724, %v855, 0
    %v1023 = vsel %vm724, %v856, 0
    %1025 = vmatprep.subr.mxu0 0.0
    %1026 = vmatpush1.msra.mxu0 0.0
    %1027 = vmatprep.subr.mxu0 0.0
    %1028 = vmatpush1.msra.mxu0 0.0
    %1029 = vmatprep.subr.mxu0 0.0
    %1030 = vmatpush1.msra.mxu0 0.0
    %1031 = vmatprep.subr.mxu0 0.0
    %1032 = vmatpush1.msra.mxu0 0.0
    %1033 = vmatprep.subr.mxu0 0.0
    %1034 = vmatpush1.msra.mxu0 0.0
    %1035 = vmatprep.subr.mxu0 0.0
    %1036 = vmatpush1.msra.mxu0 0.0
    %1037 = vmatprep.subr.mxu0 0.0
    %1038 = vmatpush1.msra.mxu0 0.0
    %1039 = vmatprep.subr.mxu0 0.0
    %1040 = vmatpush1.msra.mxu0 0.0
    %1041 = vmatprep.subr.mxu0 0.0
    %1042 = vmatpush1.msra.mxu0 0.0
    %1043 = vmatprep.subr.mxu0 0.0
    %1044 = vmatpush1.msra.mxu0 0.0
    %1045 = vmatprep.subr.mxu0 0.0
    %1046 = vmatpush1.msra.mxu0 %v1000
    %1047 = vmatprep.subr.mxu0 0.0
    %1048 = vmatpush1.msra.mxu0 %v998
    %1049 = vmatprep.subr.mxu0 0.0
    %1050 = vmatpush1.msra.mxu0 %v996
    %1051 = vmatprep.subr.mxu0 0.0
    %1052 = vmatpush1.msra.mxu0 %v994
    %1053 = vmatprep.subr.mxu0 0.0
    %1054 = vmatpush1.msra.mxu0 %v992
    %1055 = vmatprep.subr.mxu0 0.0
    %1056 = vmatpush1.msra.mxu0 %v990
    %1057 = vmatprep.subr.mxu0 0.0
    %1058 = vmatpush2.msra.mxu0 0.0
    %1059 = vmatprep.subr.mxu0 0.0
    %1060 = vmatpush2.msra.mxu0 0.0
    %1061 = vmatprep.subr.mxu0 0.0
    %1062 = vmatpush2.msra.mxu0 0.0
    %1063 = vmatprep.subr.mxu0 0.0
    %1064 = vmatpush2.msra.mxu0 0.0
    %1065 = vmatprep.subr.mxu0 0.0
    %1066 = vmatpush2.msra.mxu0 0.0
    %1067 = vmatprep.subr.mxu0 0.0
    %1068 = vmatpush2.msra.mxu0 0.0
    %1069 = vmatprep.subr.mxu0 0.0
    %1070 = vmatpush2.msra.mxu0 0.0
    %1071 = vmatprep.subr.mxu0 0.0
    %1072 = vmatpush2.msra.mxu0 0.0
    %1073 = vmatprep.subr.mxu0 0.0
    %1074 = vmatpush2.msra.mxu0 0.0
    %1075 = vmatprep.subr.mxu0 0.0
    %1076 = vmatpush2.msra.mxu0 0.0
    %1077 = vmatprep.subr.mxu0 0.0
    %1078 = vmatpush2.msra.mxu0 0.0
    %1079 = vmatprep.subr.mxu0 0.0
    %1080 = vmatpush2.msra.mxu0 0.0
    %1081 = vmatprep.subr.mxu0 0.0
    %1082 = vmatpush2.msra.mxu0 0.0
    %1083 = vmatprep.subr.mxu0 0.0
    %1084 = vmatpush2.msra.mxu0 0.0
    %1085 = vmatprep.subr.mxu0 0.0
    %1086 = vmatpush2.msra.mxu0 0.0
    %1087 = vmatprep.subr.mxu0 0.0
    %1088 = vmatpush2.msra.mxu0 0.0
    %1089 = vmatprep.mubr.f32.mxu0 0.0
    %1090 = vmatmul.mubr.f32.gmra.mxu0 %v1008
    %v1091 = vpop.f32.mrf.mxu0
    %v1092 = vadd.f32 0.0, %v1091
    %v1093 = vpop.f32.mrf.mxu0
    %1094 = vmatprep.mubr.f32.mxu0 0.0
    %1095 = vmatmul.mubr.f32.gmra.mxu0 %v1011
    %v1096 = vpop.f32.mrf.mxu0
    %v1097 = vadd.f32 0.0, %v1096
    %v1098 = vpop.f32.mrf.mxu0
    %1099 = vmatprep.mubr.f32.mxu0 0.0
    %1100 = vmatmul.mubr.f32.gmra.mxu0 %v1014
    %v1101 = vpop.f32.mrf.mxu0
    %v1102 = vadd.f32 0.0, %v1101
    %v1103 = vpop.f32.mrf.mxu0
    %1104 = vmatprep.mubr.f32.mxu0 0.0
    %1105 = vmatmul.mubr.f32.gmra.mxu0 %v1017
    %v1106 = vpop.f32.mrf.mxu0
    %v1107 = vadd.f32 0.0, %v1106
    %v1108 = vpop.f32.mrf.mxu0
    %1109 = vmatprep.mubr.f32.mxu0 0.0
    %1110 = vmatmul.mubr.f32.gmra.mxu0 %v1020
    %v1111 = vpop.f32.mrf.mxu0
    %v1112 = vadd.f32 0.0, %v1111
    %v1113 = vpop.f32.mrf.mxu0
    %1114 = vmatprep.mubr.f32.mxu0 0.0
    %1115 = vmatmul.mubr.f32.gmra.mxu0 %v1023
    %v1116 = vpop.f32.mrf.mxu0
    %v1117 = vadd.f32 0.0, %v1116
    %v1118 = vpop.f32.mrf.mxu0
    %1119 = vdwg.mxu0
    %v1121 = vrot.slane %v857, 4
    %v1123 = vsel %vm443, %v1092, 0
    %v1126 = vsel %vm443, %v1097, 0
    %v1129 = vsel %vm443, %v1102, 0
    %v1132 = vsel %vm443, %v1107, 0
    %v1135 = vsel %vm443, %v1112, 0
    %v1138 = vsel %vm443, %v1117, 0
    %vm1140 = vcmask 1043456
    %v1141 = vsel %vm1140, %v1121, 0
    %1143 = vmatprep.subr.mxu0 0.0
    %1144 = vmatpush1.msra.mxu0 0.0
    %1145 = vmatprep.subr.mxu0 0.0
    %1146 = vmatpush1.msra.mxu0 0.0
    %1147 = vmatprep.subr.mxu0 0.0
    %1148 = vmatpush1.msra.mxu0 0.0
    %1149 = vmatprep.subr.mxu0 0.0
    %1150 = vmatpush1.msra.mxu0 0.0
    %1151 = vmatprep.subr.mxu0 0.0
    %1152 = vmatpush1.msra.mxu0 0.0
    %1153 = vmatprep.subr.mxu0 0.0
    %1154 = vmatpush1.msra.mxu0 0.0
    %1155 = vmatprep.subr.mxu0 0.0
    %1156 = vmatpush1.msra.mxu0 0.0
    %1157 = vmatprep.subr.mxu0 0.0
    %1158 = vmatpush1.msra.mxu0 0.0
    %1159 = vmatprep.subr.mxu0 0.0
    %1160 = vmatpush1.msra.mxu0 0.0
    %1161 = vmatprep.subr.mxu0 0.0
    %1162 = vmatpush1.msra.mxu0 0.0
    %1163 = vmatprep.subr.mxu0 0.0
    %1164 = vmatpush1.msra.mxu0 0.0
    %1165 = vmatprep.subr.mxu0 0.0
    %1166 = vmatpush1.msra.mxu0 0.0
    %1167 = vmatprep.subr.mxu0 0.0
    %1168 = vmatpush1.msra.mxu0 0.0
    %1169 = vmatprep.subr.mxu0 0.0
    %1170 = vmatpush1.msra.mxu0 0.0
    %1171 = vmatprep.subr.mxu0 0.0
    %1172 = vmatpush1.msra.mxu0 0.0
    %1173 = vmatprep.subr.mxu0 0.0
    %1174 = vmatpush1.msra.mxu0 %v1141
    %1175 = vmatprep.subr.mxu0 0.0
    %1176 = vmatpush2.msra.mxu0 0.0
    %1177 = vmatprep.subr.mxu0 0.0
    %1178 = vmatpush2.msra.mxu0 0.0
    %1179 = vmatprep.subr.mxu0 0.0
    %1180 = vmatpush2.msra.mxu0 0.0
    %1181 = vmatprep.subr.mxu0 0.0
    %1182 = vmatpush2.msra.mxu0 0.0
    %1183 = vmatprep.subr.mxu0 0.0
    %1184 = vmatpush2.msra.mxu0 0.0
    %1185 = vmatprep.subr.mxu0 0.0
    %1186 = vmatpush2.msra.mxu0 0.0
    %1187 = vmatprep.subr.mxu0 0.0
    %1188 = vmatpush2.msra.mxu0 0.0
    %1189 = vmatprep.subr.mxu0 0.0
    %1190 = vmatpush2.msra.mxu0 0.0
    %1191 = vmatprep.subr.mxu0 0.0
    %1192 = vmatpush2.msra.mxu0 0.0
    %1193 = vmatprep.subr.mxu0 0.0
    %1194 = vmatpush2.msra.mxu0 0.0
    %1195 = vmatprep.subr.mxu0 0.0
    %1196 = vmatpush2.msra.mxu0 0.0
    %1197 = vmatprep.subr.mxu0 0.0
    %1198 = vmatpush2.msra.mxu0 0.0
    %1199 = vmatprep.subr.mxu0 0.0
    %1200 = vmatpush2.msra.mxu0 0.0
    %1201 = vmatprep.subr.mxu0 0.0
    %1202 = vmatpush2.msra.mxu0 0.0
    %1203 = vmatprep.subr.mxu0 0.0
    %1204 = vmatpush2.msra.mxu0 0.0
    %1205 = vmatprep.subr.mxu0 0.0
    %1206 = vmatpush2.msra.mxu0 0.0
    %1207 = vmatprep.mubr.f32.mxu0 0.0
    %1208 = vmatmul.mubr.f32.gmra.mxu0 %v1123
    %v1209 = vpop.f32.mrf.mxu0
    %v1210 = vadd.f32 0.0, %v1209
    %v1211 = vpop.f32.mrf.mxu0
    %1212 = vmatprep.mubr.f32.mxu0 0.0
    %1213 = vmatmul.mubr.f32.gmra.mxu0 %v1126
    %v1214 = vpop.f32.mrf.mxu0
    %v1215 = vadd.f32 0.0, %v1214
    %v1216 = vpop.f32.mrf.mxu0
    %1217 = vmatprep.mubr.f32.mxu0 0.0
    %1218 = vmatmul.mubr.f32.gmra.mxu0 %v1129
    %v1219 = vpop.f32.mrf.mxu0
    %v1220 = vadd.f32 0.0, %v1219
    %v1221 = vpop.f32.mrf.mxu0
    %1222 = vmatprep.mubr.f32.mxu0 0.0
    %1223 = vmatmul.mubr.f32.gmra.mxu0 %v1132
    %v1224 = vpop.f32.mrf.mxu0
    %v1225 = vadd.f32 0.0, %v1224
    %v1226 = vpop.f32.mrf.mxu0
    %1227 = vmatprep.mubr.f32.mxu0 0.0
    %1228 = vmatmul.mubr.f32.gmra.mxu0 %v1135
    %v1229 = vpop.f32.mrf.mxu0
    %v1230 = vadd.f32 0.0, %v1229
    %v1231 = vpop.f32.mrf.mxu0
    %1232 = vmatprep.mubr.f32.mxu0 0.0
    %1233 = vmatmul.mubr.f32.gmra.mxu0 %v1138
    %v1234 = vpop.f32.mrf.mxu0
    %v1235 = vadd.f32 0.0, %v1234
    %v1236 = vpop.f32.mrf.mxu0
    %1237 = vdwg.mxu0
    %v1239 = vsel %vm443, %v961, 0
    %v1242 = vsel %vm443, %v966, 0
    %v1245 = vsel %vm443, %v971, 0
    %v1248 = vsel %vm443, %v976, 0
    %v1251 = vsel %vm443, %v981, 0
    %v1254 = vsel %vm443, %v986, 0
    %v1256 = vsel %vm1140, %v857, 0
    %1258 = vmatprep.subr.mxu0 0.0
    %1259 = vmatpush1.msra.mxu0 0.0
    %1260 = vmatprep.subr.mxu0 0.0
    %1261 = vmatpush1.msra.mxu0 0.0
    %1262 = vmatprep.subr.mxu0 0.0
    %1263 = vmatpush1.msra.mxu0 0.0
    %1264 = vmatprep.subr.mxu0 0.0
    %1265 = vmatpush1.msra.mxu0 0.0
    %1266 = vmatprep.subr.mxu0 0.0
    %1267 = vmatpush1.msra.mxu0 0.0
    %1268 = vmatprep.subr.mxu0 0.0
    %1269 = vmatpush1.msra.mxu0 0.0
    %1270 = vmatprep.subr.mxu0 0.0
    %1271 = vmatpush1.msra.mxu0 0.0
    %1272 = vmatprep.subr.mxu0 0.0
    %1273 = vmatpush1.msra.mxu0 0.0
    %1274 = vmatprep.subr.mxu0 0.0
    %1275 = vmatpush1.msra.mxu0 0.0
    %1276 = vmatprep.subr.mxu0 0.0
    %1277 = vmatpush1.msra.mxu0 0.0
    %1278 = vmatprep.subr.mxu0 0.0
    %1279 = vmatpush1.msra.mxu0 0.0
    %1280 = vmatprep.subr.mxu0 0.0
    %1281 = vmatpush1.msra.mxu0 0.0
    %1282 = vmatprep.subr.mxu0 0.0
    %1283 = vmatpush1.msra.mxu0 0.0
    %1284 = vmatprep.subr.mxu0 0.0
    %1285 = vmatpush1.msra.mxu0 0.0
    %1286 = vmatprep.subr.mxu0 0.0
    %1287 = vmatpush1.msra.mxu0 0.0
    %1288 = vmatprep.subr.mxu0 0.0
    %1289 = vmatpush1.msra.mxu0 %v1256
    %1290 = vmatprep.subr.mxu0 0.0
    %1291 = vmatpush2.msra.mxu0 0.0
    %1292 = vmatprep.subr.mxu0 0.0
    %1293 = vmatpush2.msra.mxu0 0.0
    %1294 = vmatprep.subr.mxu0 0.0
    %1295 = vmatpush2.msra.mxu0 0.0
    %1296 = vmatprep.subr.mxu0 0.0
    %1297 = vmatpush2.msra.mxu0 0.0
    %1298 = vmatprep.subr.mxu0 0.0
    %1299 = vmatpush2.msra.mxu0 0.0
    %1300 = vmatprep.subr.mxu0 0.0
    %1301 = vmatpush2.msra.mxu0 0.0
    %1302 = vmatprep.subr.mxu0 0.0
    %1303 = vmatpush2.msra.mxu0 0.0
    %1304 = vmatprep.subr.mxu0 0.0
    %1305 = vmatpush2.msra.mxu0 0.0
    %1306 = vmatprep.subr.mxu0 0.0
    %1307 = vmatpush2.msra.mxu0 0.0
    %1308 = vmatprep.subr.mxu0 0.0
    %1309 = vmatpush2.msra.mxu0 0.0
    %1310 = vmatprep.subr.mxu0 0.0
    %1311 = vmatpush2.msra.mxu0 0.0
    %1312 = vmatprep.subr.mxu0 0.0
    %1313 = vmatpush2.msra.mxu0 0.0
    %1314 = vmatprep.subr.mxu0 0.0
    %1315 = vmatpush2.msra.mxu0 0.0
    %1316 = vmatprep.subr.mxu0 0.0
    %1317 = vmatpush2.msra.mxu0 0.0
    %1318 = vmatprep.subr.mxu0 0.0
    %1319 = vmatpush2.msra.mxu0 0.0
    %1320 = vmatprep.subr.mxu0 0.0
    %1321 = vmatpush2.msra.mxu0 0.0
    %1322 = vmatprep.mubr.f32.mxu0 0.0
    %1323 = vmatmul.mubr.f32.gmra.mxu0 %v1239
    %v1324 = vpop.f32.mrf.mxu0
    %v1325 = vadd.f32 %v1210, %v1324
    %v1326 = vpop.f32.mrf.mxu0
    %1327 = vmatprep.mubr.f32.mxu0 0.0
    %1328 = vmatmul.mubr.f32.gmra.mxu0 %v1242
    %v1329 = vpop.f32.mrf.mxu0
    %v1330 = vadd.f32 %v1215, %v1329
    %v1331 = vpop.f32.mrf.mxu0
    %1332 = vmatprep.mubr.f32.mxu0 0.0
    %1333 = vmatmul.mubr.f32.gmra.mxu0 %v1245
    %v1334 = vpop.f32.mrf.mxu0
    %v1335 = vadd.f32 %v1220, %v1334
    %v1336 = vpop.f32.mrf.mxu0
    %1337 = vmatprep.mubr.f32.mxu0 0.0
    %1338 = vmatmul.mubr.f32.gmra.mxu0 %v1248
    %v1339 = vpop.f32.mrf.mxu0
    %v1340 = vadd.f32 %v1225, %v1339
    %v1341 = vpop.f32.mrf.mxu0
    %1342 = vmatprep.mubr.f32.mxu0 0.0
    %1343 = vmatmul.mubr.f32.gmra.mxu0 %v1251
    %v1344 = vpop.f32.mrf.mxu0
    %v1345 = vadd.f32 %v1230, %v1344
    %v1346 = vpop.f32.mrf.mxu0
    %1347 = vmatprep.mubr.f32.mxu0 0.0
    %1348 = vmatmul.mubr.f32.gmra.mxu0 %v1254
    %v1349 = vpop.f32.mrf.mxu0
    %v1350 = vadd.f32 %v1235, %v1349
    %v1351 = vpop.f32.mrf.mxu0
    %1352 = vdwg.mxu0
    %v1353 = vadd.f32 %v158, %v1325
    %v1354 = vadd.f32 %v163, %v1330
    %v1355 = vadd.f32 %v168, %v1335
    %v1356 = vadd.f32 %v173, %v1340
    %v1357 = vadd.f32 %v178, %v1345
    %v1358 = vadd.f32 %v183, %v1350
    %v1359 = vld [vmem:[%s2 + $0xb] sm:$0x1]
    %v1360 = vlaneseq
    %v1361 = vshrl.u32 %v1360, 7
    %v1362 = vsub.s32 0, %v1361
    %v1363 = vrot.slane %v1359, %v1362
    %v1364 = vadd.f32 %v1353, %v1363
    %v1365 = vadd.f32 %v1354, %v1363
    %v1366 = vadd.f32 %v1355, %v1363
    %v1367 = vadd.f32 %v1356, %v1363
    %v1368 = vadd.f32 %v1357, %v1363
    %v1369 = vadd.f32 %v1358, %v1363
    %v1370 = vld [vmem:[%s2 + $0xc] sm:$0x1]
    %v1371 = vld [vmem:[%s2 + $0xd] sm:$0x1]
    %v1372 = vsel %vm188, %v1364, 0.0
    %1373 = vadd.xlane.f32.xlu0 %v1372
    %v1374 = vpop.xlane.xlu0 %1373
    %v1375 = vsel %vm188, %v1365, 0.0
    %1376 = vadd.xlane.f32.xlu0 %v1375
    %v1377 = vpop.xlane.xlu0 %1376
    %v1378 = vsel %vm188, %v1366, 0.0
    %1379 = vadd.xlane.f32.xlu0 %v1378
    %v1380 = vpop.xlane.xlu0 %1379
    %v1381 = vsel %vm188, %v1367, 0.0
    %1382 = vadd.xlane.f32.xlu0 %v1381
    %v1383 = vpop.xlane.xlu0 %1382
    %v1384 = vsel %vm188, %v1368, 0.0
    %1385 = vadd.xlane.f32.xlu0 %v1384
    %v1386 = vpop.xlane.xlu0 %1385
    %v1387 = vsel %vm188, %v1369, 0.0
    %1388 = vadd.xlane.f32.xlu0 %v1387
    %v1389 = vpop.xlane.xlu0 %1388
    %v1390 = vmul.f32 %v1374, %v207
    %v1391 = vmul.f32 %v1377, %v207
    %v1392 = vmul.f32 %v1380, %v207
    %v1393 = vmul.f32 %v1383, %v207
    %v1394 = vmul.f32 %v1386, %v207
    %v1395 = vmul.f32 %v1389, %v207
    %v1396 = vmul.f32 %v1364, %v1364
    %v1397 = vmul.f32 %v1365, %v1365
    %v1398 = vmul.f32 %v1366, %v1366
    %v1399 = vmul.f32 %v1367, %v1367
    %v1400 = vmul.f32 %v1368, %v1368
    %v1401 = vmul.f32 %v1369, %v1369
    %v1402 = vsel %vm188, %v1396, 0.0
    %1403 = vadd.xlane.f32.xlu0 %v1402
    %v1404 = vpop.xlane.xlu0 %1403
    %v1405 = vsel %vm188, %v1397, 0.0
    %1406 = vadd.xlane.f32.xlu0 %v1405
    %v1407 = vpop.xlane.xlu0 %1406
    %v1408 = vsel %vm188, %v1398, 0.0
    %1409 = vadd.xlane.f32.xlu0 %v1408
    %v1410 = vpop.xlane.xlu0 %1409
    %v1411 = vsel %vm188, %v1399, 0.0
    %1412 = vadd.xlane.f32.xlu0 %v1411
    %v1413 = vpop.xlane.xlu0 %1412
    %v1414 = vsel %vm188, %v1400, 0.0
    %1415 = vadd.xlane.f32.xlu0 %v1414
    %v1416 = vpop.xlane.xlu0 %1415
    %v1417 = vsel %vm188, %v1401, 0.0
    %1418 = vadd.xlane.f32.xlu0 %v1417
    %v1419 = vpop.xlane.xlu0 %1418
    %v1420 = vmul.f32 %v1404, %v207
    %v1421 = vmul.f32 %v1407, %v207
    %v1422 = vmul.f32 %v1410, %v207
    %v1423 = vmul.f32 %v1413, %v207
    %v1424 = vmul.f32 %v1416, %v207
    %v1425 = vmul.f32 %v1419, %v207
    %v1426 = vmul.f32 %v1390, %v1390
    %v1427 = vmul.f32 %v1391, %v1391
    %v1428 = vmul.f32 %v1392, %v1392
    %v1429 = vmul.f32 %v1393, %v1393
    %v1430 = vmul.f32 %v1394, %v1394
    %v1431 = vmul.f32 %v1395, %v1395
    %v1432 = vsub.f32 %v1420, %v1426
    %v1433 = vsub.f32 %v1421, %v1427
    %v1434 = vsub.f32 %v1422, %v1428
    %v1435 = vsub.f32 %v1423, %v1429
    %v1436 = vsub.f32 %v1424, %v1430
    %v1437 = vsub.f32 %v1425, %v1431
    %v1438 = vsub.f32 %v1364, %v1390
    %v1439 = vsub.f32 %v1365, %v1391
    %v1440 = vsub.f32 %v1366, %v1392
    %v1441 = vsub.f32 %v1367, %v1393
    %v1442 = vsub.f32 %v1368, %v1394
    %v1443 = vsub.f32 %v1369, %v1395
    %v1444 = vadd.f32 %v1432, 1e-06
    %v1445 = vadd.f32 %v1433, 1e-06
    %v1446 = vadd.f32 %v1434, 1e-06
    %v1447 = vadd.f32 %v1435, 1e-06
    %v1448 = vadd.f32 %v1436, 1e-06
    %v1449 = vadd.f32 %v1437, 1e-06
    %v1450 = vrsqrt.pop %v1444
    %v1451 = vrsqrt.pop %v1445
    %v1452 = vrsqrt.pop %v1446
    %v1453 = vrsqrt.pop %v1447
    %v1454 = vrsqrt.pop %v1448
    %v1455 = vrsqrt.pop %v1449
    %v1456 = vmul.f32 %v1438, %v1450
    %v1457 = vmul.f32 %v1439, %v1451
    %v1458 = vmul.f32 %v1440, %v1452
    %v1459 = vmul.f32 %v1441, %v1453
    %v1460 = vmul.f32 %v1442, %v1454
    %v1461 = vmul.f32 %v1443, %v1455
    %v1462 = vlaneseq
    %v1463 = vshrl.u32 %v1462, 7
    %v1464 = vsub.s32 0, %v1463
    %v1465 = vrot.slane %v1370, %v1464
    %v1466 = vmul.f32 %v1456, %v1465
    %v1467 = vmul.f32 %v1457, %v1465
    %v1468 = vmul.f32 %v1458, %v1465
    %v1469 = vmul.f32 %v1459, %v1465
    %v1470 = vmul.f32 %v1460, %v1465
    %v1471 = vmul.f32 %v1461, %v1465
    %v1472 = vlaneseq
    %v1473 = vshrl.u32 %v1472, 7
    %v1474 = vsub.s32 0, %v1473
    %v1475 = vrot.slane %v1371, %v1474
    %v1476 = vadd.f32 %v1466, %v1475
    %v1477 = vadd.f32 %v1467, %v1475
    %v1478 = vadd.f32 %v1468, %v1475
    %v1479 = vadd.f32 %v1469, %v1475
    %v1480 = vadd.f32 %v1470, %v1475
    %v1481 = vadd.f32 %v1471, %v1475
    %v1482 = vld [vmem:[%s1 + $0xd0] sm:$0xff]
    %v1483 = vld [vmem:[%s2 + $0xe] sm:$0x1]
    %v1484 = vlaneseq
    %v1485 = vshrl.u32 %v1484, 7
    %v1486 = vsub.s32 0, %v1485
    %v1487 = vrot.slane %v1483, %v1486
    %v1489 = vsel %vm188, %v1476, 0
    %v1492 = vsel %vm188, %v1477, 0
    %v1495 = vsel %vm188, %v1478, 0
    %v1498 = vsel %vm188, %v1479, 0
    %v1501 = vsel %vm188, %v1480, 0
    %v1504 = vsel %vm188, %v1481, 0
    %1506 = vmatprep.subr.mxu0 0.0
    %1507 = vmatpush1.msra.mxu0 0.0
    %1508 = vmatprep.subr.mxu0 0.0
    %1509 = vmatpush1.msra.mxu0 0.0
    %1510 = vmatprep.subr.mxu0 0.0
    %1511 = vmatpush1.msra.mxu0 0.0
    %1512 = vmatprep.subr.mxu0 0.0
    %1513 = vmatpush1.msra.mxu0 0.0
    %1514 = vmatprep.subr.mxu0 0.0
    %1515 = vmatpush1.msra.mxu0 0.0
    %1516 = vmatprep.subr.mxu0 0.0
    %1517 = vmatpush1.msra.mxu0 0.0
    %1518 = vmatprep.subr.mxu0 0.0
    %1519 = vmatpush1.msra.mxu0 0.0
    %1520 = vmatprep.subr.mxu0 0.0
    %1521 = vmatpush1.msra.mxu0 0.0
    %1522 = vmatprep.subr.mxu0 0.0
    %1523 = vmatpush1.msra.mxu0 0.0
    %1524 = vmatprep.subr.mxu0 0.0
    %1525 = vmatpush1.msra.mxu0 0.0
    %1526 = vmatprep.subr.mxu0 0.0
    %1527 = vmatpush1.msra.mxu0 0.0
    %1528 = vmatprep.subr.mxu0 0.0
    %1529 = vmatpush1.msra.mxu0 0.0
    %1530 = vmatprep.subr.mxu0 0.0
    %1531 = vmatpush1.msra.mxu0 0.0
    %1532 = vmatprep.subr.mxu0 0.0
    %1533 = vmatpush1.msra.mxu0 0.0
    %1534 = vmatprep.subr.mxu0 0.0
    %1535 = vmatpush1.msra.mxu0 0.0
    %1536 = vmatprep.subr.mxu0 0.0
    %1537 = vmatpush1.msra.mxu0 %v1482
    %1538 = vmatprep.subr.mxu0 0.0
    %1539 = vmatpush2.msra.mxu0 0.0
    %1540 = vmatprep.subr.mxu0 0.0
    %1541 = vmatpush2.msra.mxu0 0.0
    %1542 = vmatprep.subr.mxu0 0.0
    %1543 = vmatpush2.msra.mxu0 0.0
    %1544 = vmatprep.subr.mxu0 0.0
    %1545 = vmatpush2.msra.mxu0 0.0
    %1546 = vmatprep.subr.mxu0 0.0
    %1547 = vmatpush2.msra.mxu0 0.0
    %1548 = vmatprep.subr.mxu0 0.0
    %1549 = vmatpush2.msra.mxu0 0.0
    %1550 = vmatprep.subr.mxu0 0.0
    %1551 = vmatpush2.msra.mxu0 0.0
    %1552 = vmatprep.subr.mxu0 0.0
    %1553 = vmatpush2.msra.mxu0 0.0
    %1554 = vmatprep.subr.mxu0 0.0
    %1555 = vmatpush2.msra.mxu0 0.0
    %1556 = vmatprep.subr.mxu0 0.0
    %1557 = vmatpush2.msra.mxu0 0.0
    %1558 = vmatprep.subr.mxu0 0.0
    %1559 = vmatpush2.msra.mxu0 0.0
    %1560 = vmatprep.subr.mxu0 0.0
    %1561 = vmatpush2.msra.mxu0 0.0
    %1562 = vmatprep.subr.mxu0 0.0
    %1563 = vmatpush2.msra.mxu0 0.0
    %1564 = vmatprep.subr.mxu0 0.0
    %1565 = vmatpush2.msra.mxu0 0.0
    %1566 = vmatprep.subr.mxu0 0.0
    %1567 = vmatpush2.msra.mxu0 0.0
    %1568 = vmatprep.subr.mxu0 0.0
    %1569 = vmatpush2.msra.mxu0 0.0
    %1570 = vmatprep.mubr.f32.mxu0 0.0
    %1571 = vmatmul.mubr.f32.gmra.mxu0 %v1489
    %v1572 = vpop.f32.mrf.mxu0
    %v1573 = vadd.f32 %v1487, %v1572
    %v1574 = vpop.f32.mrf.mxu0
    %1575 = vmatprep.mubr.f32.mxu0 0.0
    %1576 = vmatmul.mubr.f32.gmra.mxu0 %v1492
    %v1577 = vpop.f32.mrf.mxu0
    %v1578 = vadd.f32 %v1487, %v1577
    %v1579 = vpop.f32.mrf.mxu0
    %1580 = vmatprep.mubr.f32.mxu0 0.0
    %1581 = vmatmul.mubr.f32.gmra.mxu0 %v1495
    %v1582 = vpop.f32.mrf.mxu0
    %v1583 = vadd.f32 %v1487, %v1582
    %v1584 = vpop.f32.mrf.mxu0
    %1585 = vmatprep.mubr.f32.mxu0 0.0
    %1586 = vmatmul.mubr.f32.gmra.mxu0 %v1498
    %v1587 = vpop.f32.mrf.mxu0
    %v1588 = vadd.f32 %v1487, %v1587
    %v1589 = vpop.f32.mrf.mxu0
    %1590 = vmatprep.mubr.f32.mxu0 0.0
    %1591 = vmatmul.mubr.f32.gmra.mxu0 %v1501
    %v1592 = vpop.f32.mrf.mxu0
    %v1593 = vadd.f32 %v1487, %v1592
    %v1594 = vpop.f32.mrf.mxu0
    %1595 = vmatprep.mubr.f32.mxu0 0.0
    %1596 = vmatmul.mubr.f32.gmra.mxu0 %v1504
    %v1597 = vpop.f32.mrf.mxu0
    %v1598 = vadd.f32 %v1487, %v1597
    %v1599 = vpop.f32.mrf.mxu0
    %1600 = vdwg.mxu0
    %v1601 = vmul.f32 %v1573, 0.5
    %v1602 = vmul.f32 %v1578, 0.5
    %v1603 = vmul.f32 %v1583, 0.5
    %v1604 = vmul.f32 %v1588, 0.5
    %v1605 = vmul.f32 %v1593, 0.5
    %v1606 = vmul.f32 %v1598, 0.5
    %v1607 = vmul.f32 %v1573, 0.044715
    %v1608 = vmul.f32 %v1578, 0.044715
    %v1609 = vmul.f32 %v1583, 0.044715
    %v1610 = vmul.f32 %v1588, 0.044715
    %v1611 = vmul.f32 %v1593, 0.044715
    %v1612 = vmul.f32 %v1598, 0.044715
    %v1613 = vmul.f32 %v1607, %v1573
    %v1614 = vmul.f32 %v1608, %v1578
    %v1615 = vmul.f32 %v1609, %v1583
    %v1616 = vmul.f32 %v1610, %v1588
    %v1617 = vmul.f32 %v1611, %v1593
    %v1618 = vmul.f32 %v1612, %v1598
    %v1619 = vmul.f32 %v1613, %v1573
    %v1620 = vmul.f32 %v1614, %v1578
    %v1621 = vmul.f32 %v1615, %v1583
    %v1622 = vmul.f32 %v1616, %v1588
    %v1623 = vmul.f32 %v1617, %v1593
    %v1624 = vmul.f32 %v1618, %v1598
    %v1625 = vadd.f32 %v1573, %v1619
    %v1626 = vadd.f32 %v1578, %v1620
    %v1627 = vadd.f32 %v1583, %v1621
    %v1628 = vadd.f32 %v1588, %v1622
    %v1629 = vadd.f32 %v1593, %v1623
    %v1630 = vadd.f32 %v1598, %v1624
    %v1631 = vmul.f32 %v1625, 0.7978846
    %v1632 = vmul.f32 %v1626, 0.7978846
    %v1633 = vmul.f32 %v1627, 0.7978846
    %v1634 = vmul.f32 %v1628, 0.7978846
    %v1635 = vmul.f32 %v1629, 0.7978846
    %v1636 = vmul.f32 %v1630, 0.7978846
    %v1637 = vtanh.pop %v1631
    %v1638 = vtanh.pop %v1632
    %v1639 = vtanh.pop %v1633
    %v1640 = vtanh.pop %v1634
    %v1641 = vtanh.pop %v1635
    %v1642 = vtanh.pop %v1636
    %v1643 = vadd.f32 %v1637, 1.0
    %v1644 = vadd.f32 %v1638, 1.0
    %v1645 = vadd.f32 %v1639, 1.0
    %v1646 = vadd.f32 %v1640, 1.0
    %v1647 = vadd.f32 %v1641, 1.0
    %v1648 = vadd.f32 %v1642, 1.0
    %v1649 = vmul.f32 %v1601, %v1643
    %v1650 = vmul.f32 %v1602, %v1644
    %v1651 = vmul.f32 %v1603, %v1645
    %v1652 = vmul.f32 %v1604, %v1646
    %v1653 = vmul.f32 %v1605, %v1647
    %v1654 = vmul.f32 %v1606, %v1648
    %v1655 = vld [vmem:[%s1 + $0xd8] sm:$0xff]
    %v1656 = vld [vmem:[%s1 + $0xe0] sm:$0xff]
    %v1657 = vld [vmem:[%s1 + $0xe8] sm:$0xff]
    %v1658 = vld [vmem:[%s1 + $0xf0] sm:$0xff]
    %vm1659 = vcmask 261120
    %v1661 = vsel %vm1659, %v1649, 0
    %v1664 = vsel %vm1659, %v1650, 0
    %v1667 = vsel %vm1659, %v1651, 0
    %v1670 = vsel %vm1659, %v1652, 0
    %v1673 = vsel %vm1659, %v1653, 0
    %v1676 = vsel %vm1659, %v1654, 0
    %1678 = vmatprep.subr.mxu0 0.0
    %1679 = vmatpush1.msra.mxu0 0.0
    %1680 = vmatprep.subr.mxu0 0.0
    %1681 = vmatpush1.msra.mxu0 0.0
    %1682 = vmatprep.subr.mxu0 0.0
    %1683 = vmatpush1.msra.mxu0 0.0
    %1684 = vmatprep.subr.mxu0 0.0
    %1685 = vmatpush1.msra.mxu0 0.0
    %1686 = vmatprep.subr.mxu0 0.0
    %1687 = vmatpush1.msra.mxu0 0.0
    %1688 = vmatprep.subr.mxu0 0.0
    %1689 = vmatpush1.msra.mxu0 0.0
    %1690 = vmatprep.subr.mxu0 0.0
    %1691 = vmatpush1.msra.mxu0 0.0
    %1692 = vmatprep.subr.mxu0 0.0
    %1693 = vmatpush1.msra.mxu0 0.0
    %1694 = vmatprep.subr.mxu0 0.0
    %1695 = vmatpush1.msra.mxu0 0.0
    %1696 = vmatprep.subr.mxu0 0.0
    %1697 = vmatpush1.msra.mxu0 0.0
    %1698 = vmatprep.subr.mxu0 0.0
    %1699 = vmatpush1.msra.mxu0 0.0
    %1700 = vmatprep.subr.mxu0 0.0
    %1701 = vmatpush1.msra.mxu0 0.0
    %1702 = vmatprep.subr.mxu0 0.0
    %1703 = vmatpush1.msra.mxu0 %v1658
    %1704 = vmatprep.subr.mxu0 0.0
    %1705 = vmatpush1.msra.mxu0 %v1657
    %1706 = vmatprep.subr.mxu0 0.0
    %1707 = vmatpush1.msra.mxu0 %v1656
    %1708 = vmatprep.subr.mxu0 0.0
    %1709 = vmatpush1.msra.mxu0 %v1655
    %1710 = vmatprep.subr.mxu0 0.0
    %1711 = vmatpush2.msra.mxu0 0.0
    %1712 = vmatprep.subr.mxu0 0.0
    %1713 = vmatpush2.msra.mxu0 0.0
    %1714 = vmatprep.subr.mxu0 0.0
    %1715 = vmatpush2.msra.mxu0 0.0
    %1716 = vmatprep.subr.mxu0 0.0
    %1717 = vmatpush2.msra.mxu0 0.0
    %1718 = vmatprep.subr.mxu0 0.0
    %1719 = vmatpush2.msra.mxu0 0.0
    %1720 = vmatprep.subr.mxu0 0.0
    %1721 = vmatpush2.msra.mxu0 0.0
    %1722 = vmatprep.subr.mxu0 0.0
    %1723 = vmatpush2.msra.mxu0 0.0
    %1724 = vmatprep.subr.mxu0 0.0
    %1725 = vmatpush2.msra.mxu0 0.0
    %1726 = vmatprep.subr.mxu0 0.0
    %1727 = vmatpush2.msra.mxu0 0.0
    %1728 = vmatprep.subr.mxu0 0.0
    %1729 = vmatpush2.msra.mxu0 0.0
    %1730 = vmatprep.subr.mxu0 0.0
    %1731 = vmatpush2.msra.mxu0 0.0
    %1732 = vmatprep.subr.mxu0 0.0
    %1733 = vmatpush2.msra.mxu0 0.0
    %1734 = vmatprep.subr.mxu0 0.0
    %1735 = vmatpush2.msra.mxu0 0.0
    %1736 = vmatprep.subr.mxu0 0.0
    %1737 = vmatpush2.msra.mxu0 0.0
    %1738 = vmatprep.subr.mxu0 0.0
    %1739 = vmatpush2.msra.mxu0 0.0
    %1740 = vmatprep.subr.mxu0 0.0
    %1741 = vmatpush2.msra.mxu0 0.0
    %1742 = vmatprep.mubr.f32.mxu0 0.0
    %1743 = vmatmul.mubr.f32.gmra.mxu0 %v1661
    %v1744 = vpop.f32.mrf.mxu0
    %v1745 = vadd.f32 0.0, %v1744
    %v1746 = vpop.f32.mrf.mxu0
    %1747 = vmatprep.mubr.f32.mxu0 0.0
    %1748 = vmatmul.mubr.f32.gmra.mxu0 %v1664
    %v1749 = vpop.f32.mrf.mxu0
    %v1750 = vadd.f32 0.0, %v1749
    %v1751 = vpop.f32.mrf.mxu0
    %1752 = vmatprep.mubr.f32.mxu0 0.0
    %1753 = vmatmul.mubr.f32.gmra.mxu0 %v1667
    %v1754 = vpop.f32.mrf.mxu0
    %v1755 = vadd.f32 0.0, %v1754
    %v1756 = vpop.f32.mrf.mxu0
    %1757 = vmatprep.mubr.f32.mxu0 0.0
    %1758 = vmatmul.mubr.f32.gmra.mxu0 %v1670
    %v1759 = vpop.f32.mrf.mxu0
    %v1760 = vadd.f32 0.0, %v1759
    %v1761 = vpop.f32.mrf.mxu0
    %1762 = vmatprep.mubr.f32.mxu0 0.0
    %1763 = vmatmul.mubr.f32.gmra.mxu0 %v1673
    %v1764 = vpop.f32.mrf.mxu0
    %v1765 = vadd.f32 0.0, %v1764
    %v1766 = vpop.f32.mrf.mxu0
    %1767 = vmatprep.mubr.f32.mxu0 0.0
    %1768 = vmatmul.mubr.f32.gmra.mxu0 %v1676
    %v1769 = vpop.f32.mrf.mxu0
    %v1770 = vadd.f32 0.0, %v1769
    %v1771 = vpop.f32.mrf.mxu0
    %1772 = vdwg.mxu0
    %v1773 = vadd.f32 %v1364, %v1745
    %v1774 = vadd.f32 %v1365, %v1750
    %v1775 = vadd.f32 %v1366, %v1755
    %v1776 = vadd.f32 %v1367, %v1760
    %v1777 = vadd.f32 %v1368, %v1765
    %v1778 = vadd.f32 %v1369, %v1770
    %v1779 = vld [vmem:[%s2 + $0xf] sm:$0x1]
    %v1780 = vlaneseq
    %v1781 = vshrl.u32 %v1780, 7
    %v1782 = vsub.s32 0, %v1781
    %v1783 = vrot.slane %v1779, %v1782
    %v1784 = vadd.f32 %v1773, %v1783
    %v1785 = vadd.f32 %v1774, %v1783
    %v1786 = vadd.f32 %v1775, %v1783
    %v1787 = vadd.f32 %v1776, %v1783
    %v1788 = vadd.f32 %v1777, %v1783
    %v1789 = vadd.f32 %v1778, %v1783
    %v1790 = vld [vmem:[%s2 + $0x10] sm:$0x1]
    %v1791 = vld [vmem:[%s2 + $0x11] sm:$0x1]
    %v1792 = vsel %vm188, %v1784, 0.0
    %1793 = vadd.xlane.f32.xlu0 %v1792
    %v1794 = vpop.xlane.xlu0 %1793
    %v1795 = vsel %vm188, %v1785, 0.0
    %1796 = vadd.xlane.f32.xlu0 %v1795
    %v1797 = vpop.xlane.xlu0 %1796
    %v1798 = vsel %vm188, %v1786, 0.0
    %1799 = vadd.xlane.f32.xlu0 %v1798
    %v1800 = vpop.xlane.xlu0 %1799
    %v1801 = vsel %vm188, %v1787, 0.0
    %1802 = vadd.xlane.f32.xlu0 %v1801
    %v1803 = vpop.xlane.xlu0 %1802
    %v1804 = vsel %vm188, %v1788, 0.0
    %1805 = vadd.xlane.f32.xlu0 %v1804
    %v1806 = vpop.xlane.xlu0 %1805
    %v1807 = vsel %vm188, %v1789, 0.0
    %1808 = vadd.xlane.f32.xlu0 %v1807
    %v1809 = vpop.xlane.xlu0 %1808
    %v1810 = vmul.f32 %v1794, %v207
    %v1811 = vmul.f32 %v1797, %v207
    %v1812 = vmul.f32 %v1800, %v207
    %v1813 = vmul.f32 %v1803, %v207
    %v1814 = vmul.f32 %v1806, %v207
    %v1815 = vmul.f32 %v1809, %v207
    %v1816 = vmul.f32 %v1784, %v1784
    %v1817 = vmul.f32 %v1785, %v1785
    %v1818 = vmul.f32 %v1786, %v1786
    %v1819 = vmul.f32 %v1787, %v1787
    %v1820 = vmul.f32 %v1788, %v1788
    %v1821 = vmul.f32 %v1789, %v1789
    %v1822 = vsel %vm188, %v1816, 0.0
    %1823 = vadd.xlane.f32.xlu0 %v1822
    %v1824 = vpop.xlane.xlu0 %1823
    %v1825 = vsel %vm188, %v1817, 0.0
    %1826 = vadd.xlane.f32.xlu0 %v1825
    %v1827 = vpop.xlane.xlu0 %1826
    %v1828 = vsel %vm188, %v1818, 0.0
    %1829 = vadd.xlane.f32.xlu0 %v1828
    %v1830 = vpop.xlane.xlu0 %1829
    %v1831 = vsel %vm188, %v1819, 0.0
    %1832 = vadd.xlane.f32.xlu0 %v1831
    %v1833 = vpop.xlane.xlu0 %1832
    %v1834 = vsel %vm188, %v1820, 0.0
    %1835 = vadd.xlane.f32.xlu0 %v1834
    %v1836 = vpop.xlane.xlu0 %1835
    %v1837 = vsel %vm188, %v1821, 0.0
    %1838 = vadd.xlane.f32.xlu0 %v1837
    %v1839 = vpop.xlane.xlu0 %1838
    %v1840 = vmul.f32 %v1824, %v207
    %v1841 = vmul.f32 %v1827, %v207
    %v1842 = vmul.f32 %v1830, %v207
    %v1843 = vmul.f32 %v1833, %v207
    %v1844 = vmul.f32 %v1836, %v207
    %v1845 = vmul.f32 %v1839, %v207
    %v1846 = vmul.f32 %v1810, %v1810
    %v1847 = vmul.f32 %v1811, %v1811
    %v1848 = vmul.f32 %v1812, %v1812
    %v1849 = vmul.f32 %v1813, %v1813
    %v1850 = vmul.f32 %v1814, %v1814
    %v1851 = vmul.f32 %v1815, %v1815
    %v1852 = vsub.f32 %v1840, %v1846
    %v1853 = vsub.f32 %v1841, %v1847
    %v1854 = vsub.f32 %v1842, %v1848
    %v1855 = vsub.f32 %v1843, %v1849
    %v1856 = vsub.f32 %v1844, %v1850
    %v1857 = vsub.f32 %v1845, %v1851
    %v1858 = vsub.f32 %v1784, %v1810
    %v1859 = vsub.f32 %v1785, %v1811
    %v1860 = vsub.f32 %v1786, %v1812
    %v1861 = vsub.f32 %v1787, %v1813
    %v1862 = vsub.f32 %v1788, %v1814
    %v1863 = vsub.f32 %v1789, %v1815
    %v1864 = vadd.f32 %v1852, 1e-06
    %v1865 = vadd.f32 %v1853, 1e-06
    %v1866 = vadd.f32 %v1854, 1e-06
    %v1867 = vadd.f32 %v1855, 1e-06
    %v1868 = vadd.f32 %v1856, 1e-06
    %v1869 = vadd.f32 %v1857, 1e-06
    %v1870 = vrsqrt.pop %v1864
    %v1871 = vrsqrt.pop %v1865
    %v1872 = vrsqrt.pop %v1866
    %v1873 = vrsqrt.pop %v1867
    %v1874 = vrsqrt.pop %v1868
    %v1875 = vrsqrt.pop %v1869
    %v1876 = vmul.f32 %v1858, %v1870
    %v1877 = vmul.f32 %v1859, %v1871
    %v1878 = vmul.f32 %v1860, %v1872
    %v1879 = vmul.f32 %v1861, %v1873
    %v1880 = vmul.f32 %v1862, %v1874
    %v1881 = vmul.f32 %v1863, %v1875
    %v1882 = vlaneseq
    %v1883 = vshrl.u32 %v1882, 7
    %v1884 = vsub.s32 0, %v1883
    %v1885 = vrot.slane %v1790, %v1884
    %v1886 = vmul.f32 %v1876, %v1885
    %v1887 = vmul.f32 %v1877, %v1885
    %v1888 = vmul.f32 %v1878, %v1885
    %v1889 = vmul.f32 %v1879, %v1885
    %v1890 = vmul.f32 %v1880, %v1885
    %v1891 = vmul.f32 %v1881, %v1885
    %v1892 = vlaneseq
    %v1893 = vshrl.u32 %v1892, 7
    %v1894 = vsub.s32 0, %v1893
    %v1895 = vrot.slane %v1791, %v1894
    %v1896 = vadd.f32 %v1886, %v1895
    %v1897 = vadd.f32 %v1887, %v1895
    %v1898 = vadd.f32 %v1888, %v1895
    %v1899 = vadd.f32 %v1889, %v1895
    %v1900 = vadd.f32 %v1890, %v1895
    %v1901 = vadd.f32 %v1891, %v1895
    %v1902 = vld [vmem:[%s1 + $0xf8] sm:$0xff]
    %v1903 = vld [vmem:[%s2 + $0x12] sm:$0x1]
    %v1904 = vlaneseq
    %v1905 = vshrl.u32 %v1904, 7
    %v1906 = vsub.s32 0, %v1905
    %v1907 = vrot.slane %v1903, %v1906
    %v1909 = vsel %vm188, %v1896, 0
    %v1912 = vsel %vm188, %v1897, 0
    %v1915 = vsel %vm188, %v1898, 0
    %v1918 = vsel %vm188, %v1899, 0
    %v1921 = vsel %vm188, %v1900, 0
    %v1924 = vsel %vm188, %v1901, 0
    %1926 = vmatprep.subr.mxu0 0.0
    %1927 = vmatpush1.msra.mxu0 0.0
    %1928 = vmatprep.subr.mxu0 0.0
    %1929 = vmatpush1.msra.mxu0 0.0
    %1930 = vmatprep.subr.mxu0 0.0
    %1931 = vmatpush1.msra.mxu0 0.0
    %1932 = vmatprep.subr.mxu0 0.0
    %1933 = vmatpush1.msra.mxu0 0.0
    %1934 = vmatprep.subr.mxu0 0.0
    %1935 = vmatpush1.msra.mxu0 0.0
    %1936 = vmatprep.subr.mxu0 0.0
    %1937 = vmatpush1.msra.mxu0 0.0
    %1938 = vmatprep.subr.mxu0 0.0
    %1939 = vmatpush1.msra.mxu0 0.0
    %1940 = vmatprep.subr.mxu0 0.0
    %1941 = vmatpush1.msra.mxu0 0.0
    %1942 = vmatprep.subr.mxu0 0.0
    %1943 = vmatpush1.msra.mxu0 0.0
    %1944 = vmatprep.subr.mxu0 0.0
    %1945 = vmatpush1.msra.mxu0 0.0
    %1946 = vmatprep.subr.mxu0 0.0
    %1947 = vmatpush1.msra.mxu0 0.0
    %1948 = vmatprep.subr.mxu0 0.0
    %1949 = vmatpush1.msra.mxu0 0.0
    %1950 = vmatprep.subr.mxu0 0.0
    %1951 = vmatpush1.msra.mxu0 0.0
    %1952 = vmatprep.subr.mxu0 0.0
    %1953 = vmatpush1.msra.mxu0 0.0
    %1954 = vmatprep.subr.mxu0 0.0
    %1955 = vmatpush1.msra.mxu0 0.0
    %1956 = vmatprep.subr.mxu0 0.0
    %1957 = vmatpush1.msra.mxu0 %v1902
    %1958 = vmatprep.subr.mxu0 0.0
    %1959 = vmatpush2.msra.mxu0 0.0
    %1960 = vmatprep.subr.mxu0 0.0
    %1961 = vmatpush2.msra.mxu0 0.0
    %1962 = vmatprep.subr.mxu0 0.0
    %1963 = vmatpush2.msra.mxu0 0.0
    %1964 = vmatprep.subr.mxu0 0.0
    %1965 = vmatpush2.msra.mxu0 0.0
    %1966 = vmatprep.subr.mxu0 0.0
    %1967 = vmatpush2.msra.mxu0 0.0
    %1968 = vmatprep.subr.mxu0 0.0
    %1969 = vmatpush2.msra.mxu0 0.0
    %1970 = vmatprep.subr.mxu0 0.0
    %1971 = vmatpush2.msra.mxu0 0.0
    %1972 = vmatprep.subr.mxu0 0.0
    %1973 = vmatpush2.msra.mxu0 0.0
    %1974 = vmatprep.subr.mxu0 0.0
    %1975 = vmatpush2.msra.mxu0 0.0
    %1976 = vmatprep.subr.mxu0 0.0
    %1977 = vmatpush2.msra.mxu0 0.0
    %1978 = vmatprep.subr.mxu0 0.0
    %1979 = vmatpush2.msra.mxu0 0.0
    %1980 = vmatprep.subr.mxu0 0.0
    %1981 = vmatpush2.msra.mxu0 0.0
    %1982 = vmatprep.subr.mxu0 0.0
    %1983 = vmatpush2.msra.mxu0 0.0
    %1984 = vmatprep.subr.mxu0 0.0
    %1985 = vmatpush2.msra.mxu0 0.0
    %1986 = vmatprep.subr.mxu0 0.0
    %1987 = vmatpush2.msra.mxu0 0.0
    %1988 = vmatprep.subr.mxu0 0.0
    %1989 = vmatpush2.msra.mxu0 0.0
    %1990 = vmatprep.mubr.f32.mxu0 0.0
    %1991 = vmatmul.mubr.f32.gmra.mxu0 %v1909
    %v1992 = vpop.f32.mrf.mxu0
    %v1993 = vadd.f32 %v1907, %v1992
    %v1994 = vpop.f32.mrf.mxu0
    %1995 = vmatprep.mubr.f32.mxu0 0.0
    %1996 = vmatmul.mubr.f32.gmra.mxu0 %v1912
    %v1997 = vpop.f32.mrf.mxu0
    %v1998 = vadd.f32 %v1907, %v1997
    %v1999 = vpop.f32.mrf.mxu0
    %2000 = vmatprep.mubr.f32.mxu0 0.0
    %2001 = vmatmul.mubr.f32.gmra.mxu0 %v1915
    %v2002 = vpop.f32.mrf.mxu0
    %v2003 = vadd.f32 %v1907, %v2002
    %v2004 = vpop.f32.mrf.mxu0
    %2005 = vmatprep.mubr.f32.mxu0 0.0
    %2006 = vmatmul.mubr.f32.gmra.mxu0 %v1918
    %v2007 = vpop.f32.mrf.mxu0
    %v2008 = vadd.f32 %v1907, %v2007
    %v2009 = vpop.f32.mrf.mxu0
    %2010 = vmatprep.mubr.f32.mxu0 0.0
    %2011 = vmatmul.mubr.f32.gmra.mxu0 %v1921
    %v2012 = vpop.f32.mrf.mxu0
    %v2013 = vadd.f32 %v1907, %v2012
    %v2014 = vpop.f32.mrf.mxu0
    %2015 = vmatprep.mubr.f32.mxu0 0.0
    %2016 = vmatmul.mubr.f32.gmra.mxu0 %v1924
    %v2017 = vpop.f32.mrf.mxu0
    %v2018 = vadd.f32 %v1907, %v2017
    %v2019 = vpop.f32.mrf.mxu0
    %2020 = vdwg.mxu0
    %v2021 = vmul.f32 %v1993, 0.5
    %v2022 = vmul.f32 %v1998, 0.5
    %v2023 = vmul.f32 %v2003, 0.5
    %v2024 = vmul.f32 %v2008, 0.5
    %v2025 = vmul.f32 %v2013, 0.5
    %v2026 = vmul.f32 %v2018, 0.5
    %2033 = vrot.lane.b32.xlu0 %v1993, 120
    %v2034 = vpop.permute.xlu0 %2033
    %2035 = vrot.lane.b32.xlu0 %v1998, 120
    %v2036 = vpop.permute.xlu0 %2035
    %2037 = vrot.lane.b32.xlu0 %v2003, 120
    %v2038 = vpop.permute.xlu0 %2037
    %2039 = vrot.lane.b32.xlu0 %v2008, 120
    %v2040 = vpop.permute.xlu0 %2039
    %2041 = vrot.lane.b32.xlu0 %v2013, 120
    %v2042 = vpop.permute.xlu0 %2041
    %2043 = vrot.lane.b32.xlu0 %v2018, 120
    %v2044 = vpop.permute.xlu0 %2043
    %v2046 = vsel %vm443, %v2021, 0
    %v2049 = vsel %vm443, %v2022, 0
    %v2052 = vsel %vm443, %v2023, 0
    %v2055 = vsel %vm443, %v2024, 0
    %v2058 = vsel %vm443, %v2025, 0
    %v2061 = vsel %vm443, %v2026, 0
    %v2063 = vsel %vm443, %v2034, 0
    %v2065 = vsel %vm443, %v2036, 0
    %v2067 = vsel %vm443, %v2038, 0
    %v2069 = vsel %vm443, %v2040, 0
    %v2071 = vsel %vm443, %v2042, 0
    %v2073 = vsel %vm443, %v2044, 0
    %2075 = vmatprep.subr.mxu0 0.0
    %2076 = vmatpush1.xpose.msra.mxu0 0.0
    %2077 = vmatprep.subr.mxu0 0.0
    %2078 = vmatpush1.xpose.msra.mxu0 0.0
    %2079 = vmatprep.subr.mxu0 0.0
    %2080 = vmatpush1.xpose.msra.mxu0 0.0
    %2081 = vmatprep.subr.mxu0 0.0
    %2082 = vmatpush1.xpose.msra.mxu0 0.0
    %2083 = vmatprep.subr.mxu0 0.0
    %2084 = vmatpush1.xpose.msra.mxu0 0.0
    %2085 = vmatprep.subr.mxu0 0.0
    %2086 = vmatpush1.xpose.msra.mxu0 0.0
    %2087 = vmatprep.subr.mxu0 0.0
    %2088 = vmatpush1.xpose.msra.mxu0 0.0
    %2089 = vmatprep.subr.mxu0 0.0
    %2090 = vmatpush1.xpose.msra.mxu0 0.0
    %2091 = vmatprep.subr.mxu0 0.0
    %2092 = vmatpush1.xpose.msra.mxu0 0.0
    %2093 = vmatprep.subr.mxu0 0.0
    %2094 = vmatpush1.xpose.msra.mxu0 0.0
    %2095 = vmatprep.subr.mxu0 0.0
    %2096 = vmatpush1.xpose.msra.mxu0 %v2073
    %2097 = vmatprep.subr.mxu0 0.0
    %2098 = vmatpush1.xpose.msra.mxu0 %v2071
    %2099 = vmatprep.subr.mxu0 0.0
    %2100 = vmatpush1.xpose.msra.mxu0 %v2069
    %2101 = vmatprep.subr.mxu0 0.0
    %2102 = vmatpush1.xpose.msra.mxu0 %v2067
    %2103 = vmatprep.subr.mxu0 0.0
    %2104 = vmatpush1.xpose.msra.mxu0 %v2065
    %2105 = vmatprep.subr.mxu0 0.0
    %2106 = vmatpush1.xpose.msra.mxu0 %v2063
    %2107 = vmatprep.subr.mxu0 0.0
    %2108 = vmatpush2.xpose.msra.mxu0 0.0
    %2109 = vmatprep.subr.mxu0 0.0
    %2110 = vmatpush2.xpose.msra.mxu0 0.0
    %2111 = vmatprep.subr.mxu0 0.0
    %2112 = vmatpush2.xpose.msra.mxu0 0.0
    %2113 = vmatprep.subr.mxu0 0.0
    %2114 = vmatpush2.xpose.msra.mxu0 0.0
    %2115 = vmatprep.subr.mxu0 0.0
    %2116 = vmatpush2.xpose.msra.mxu0 0.0
    %2117 = vmatprep.subr.mxu0 0.0
    %2118 = vmatpush2.xpose.msra.mxu0 0.0
    %2119 = vmatprep.subr.mxu0 0.0
    %2120 = vmatpush2.xpose.msra.mxu0 0.0
    %2121 = vmatprep.subr.mxu0 0.0
    %2122 = vmatpush2.xpose.msra.mxu0 0.0
    %2123 = vmatprep.subr.mxu0 0.0
    %2124 = vmatpush2.xpose.msra.mxu0 0.0
    %2125 = vmatprep.subr.mxu0 0.0
    %2126 = vmatpush2.xpose.msra.mxu0 0.0
    %2127 = vmatprep.subr.mxu0 0.0
    %2128 = vmatpush2.xpose.msra.mxu0 0.0
    %2129 = vmatprep.subr.mxu0 0.0
    %2130 = vmatpush2.xpose.msra.mxu0 0.0
    %2131 = vmatprep.subr.mxu0 0.0
    %2132 = vmatpush2.xpose.msra.mxu0 0.0
    %2133 = vmatprep.subr.mxu0 0.0
    %2134 = vmatpush2.xpose.msra.mxu0 0.0
    %2135 = vmatprep.subr.mxu0 0.0
    %2136 = vmatpush2.xpose.msra.mxu0 0.0
    %2137 = vmatprep.subr.mxu0 0.0
    %2138 = vmatpush2.xpose.msra.mxu0 0.0
    %2139 = vmatprep.mubr.f32.mxu0 0.0
    %2140 = vmatmul.mubr.f32.gmra.mxu0 %v2046
    %v2141 = vpop.f32.mrf.mxu0
    %v2142 = vadd.f32 0.0, %v2141
    %v2143 = vpop.f32.mrf.mxu0
    %2144 = vmatprep.mubr.f32.mxu0 0.0
    %2145 = vmatmul.mubr.f32.gmra.mxu0 %v2049
    %v2146 = vpop.f32.mrf.mxu0
    %v2147 = vadd.f32 0.0, %v2146
    %v2148 = vpop.f32.mrf.mxu0
    %2149 = vmatprep.mubr.f32.mxu0 0.0
    %2150 = vmatmul.mubr.f32.gmra.mxu0 %v2052
    %v2151 = vpop.f32.mrf.mxu0
    %v2152 = vadd.f32 0.0, %v2151
    %v2153 = vpop.f32.mrf.mxu0
    %2154 = vmatprep.mubr.f32.mxu0 0.0
    %2155 = vmatmul.mubr.f32.gmra.mxu0 %v2055
    %v2156 = vpop.f32.mrf.mxu0
    %v2157 = vadd.f32 0.0, %v2156
    %v2158 = vpop.f32.mrf.mxu0
    %2159 = vmatprep.mubr.f32.mxu0 0.0
    %2160 = vmatmul.mubr.f32.gmra.mxu0 %v2058
    %v2161 = vpop.f32.mrf.mxu0
    %v2162 = vadd.f32 0.0, %v2161
    %v2163 = vpop.f32.mrf.mxu0
    %2164 = vmatprep.mubr.f32.mxu0 0.0
    %2165 = vmatmul.mubr.f32.gmra.mxu0 %v2061
    %v2166 = vpop.f32.mrf.mxu0
    %v2167 = vadd.f32 0.0, %v2166
    %v2168 = vpop.f32.mrf.mxu0
    %2169 = vdwg.mxu0
    %2170 = vrot.lane.b32.xlu0 %v2021, 124
    %v2171 = vpop.permute.xlu0 %2170
    %2172 = vrot.lane.b32.xlu0 %v2022, 124
    %v2173 = vpop.permute.xlu0 %2172
    %2174 = vrot.lane.b32.xlu0 %v2023, 124
    %v2175 = vpop.permute.xlu0 %2174
    %2176 = vrot.lane.b32.xlu0 %v2024, 124
    %v2177 = vpop.permute.xlu0 %2176
    %2178 = vrot.lane.b32.xlu0 %v2025, 124
    %v2179 = vpop.permute.xlu0 %2178
    %2180 = vrot.lane.b32.xlu0 %v2026, 124
    %v2181 = vpop.permute.xlu0 %2180
    %2182 = vrot.lane.b32.xlu0 %v1993, 116
    %v2183 = vpop.permute.xlu0 %2182
    %2184 = vrot.lane.b32.xlu0 %v1998, 116
    %v2185 = vpop.permute.xlu0 %2184
    %2186 = vrot.lane.b32.xlu0 %v2003, 116
    %v2187 = vpop.permute.xlu0 %2186
    %2188 = vrot.lane.b32.xlu0 %v2008, 116
    %v2189 = vpop.permute.xlu0 %2188
    %2190 = vrot.lane.b32.xlu0 %v2013, 116
    %v2191 = vpop.permute.xlu0 %2190
    %2192 = vrot.lane.b32.xlu0 %v2018, 116
    %v2193 = vpop.permute.xlu0 %2192
    %v2194 = vsel %vm443, %v2171, 0
    %v2196 = vsel %vm443, %v2173, 0
    %v2198 = vsel %vm443, %v2175, 0
    %v2200 = vsel %vm443, %v2177, 0
    %v2202 = vsel %vm443, %v2179, 0
    %v2204 = vsel %vm443, %v2181, 0
    %v2206 = vsel %vm443, %v2183, 0
    %v2208 = vsel %vm443, %v2185, 0
    %v2210 = vsel %vm443, %v2187, 0
    %v2212 = vsel %vm443, %v2189, 0
    %v2214 = vsel %vm443, %v2191, 0
    %v2216 = vsel %vm443, %v2193, 0
    %2218 = vmatprep.subr.mxu0 0.0
    %2219 = vmatpush1.xpose.msra.mxu0 0.0
    %2220 = vmatprep.subr.mxu0 0.0
    %2221 = vmatpush1.xpose.msra.mxu0 0.0
    %2222 = vmatprep.subr.mxu0 0.0
    %2223 = vmatpush1.xpose.msra.mxu0 0.0
    %2224 = vmatprep.subr.mxu0 0.0
    %2225 = vmatpush1.xpose.msra.mxu0 0.0
    %2226 = vmatprep.subr.mxu0 0.0
    %2227 = vmatpush1.xpose.msra.mxu0 0.0
    %2228 = vmatprep.subr.mxu0 0.0
    %2229 = vmatpush1.xpose.msra.mxu0 0.0
    %2230 = vmatprep.subr.mxu0 0.0
    %2231 = vmatpush1.xpose.msra.mxu0 0.0
    %2232 = vmatprep.subr.mxu0 0.0
    %2233 = vmatpush1.xpose.msra.mxu0 0.0
    %2234 = vmatprep.subr.mxu0 0.0
    %2235 = vmatpush1.xpose.msra.mxu0 0.0
    %2236 = vmatprep.subr.mxu0 0.0
    %2237 = vmatpush1.xpose.msra.mxu0 0.0
    %2238 = vmatprep.subr.mxu0 0.0
    %2239 = vmatpush1.xpose.msra.mxu0 %v2216
    %2240 = vmatprep.subr.mxu0 0.0
    %2241 = vmatpush1.xpose.msra.mxu0 %v2214
    %2242 = vmatprep.subr.mxu0 0.0
    %2243 = vmatpush1.xpose.msra.mxu0 %v2212
    %2244 = vmatprep.subr.mxu0 0.0
    %2245 = vmatpush1.xpose.msra.mxu0 %v2210
    %2246 = vmatprep.subr.mxu0 0.0
    %2247 = vmatpush1.xpose.msra.mxu0 %v2208
    %2248 = vmatprep.subr.mxu0 0.0
    %2249 = vmatpush1.xpose.msra.mxu0 %v2206
    %2250 = vmatprep.subr.mxu0 0.0
    %2251 = vmatpush2.xpose.msra.mxu0 0.0
    %2252 = vmatprep.subr.mxu0 0.0
    %2253 = vmatpush2.xpose.msra.mxu0 0.0
    %2254 = vmatprep.subr.mxu0 0.0
    %2255 = vmatpush2.xpose.msra.mxu0 0.0
    %2256 = vmatprep.subr.mxu0 0.0
    %2257 = vmatpush2.xpose.msra.mxu0 0.0
    %2258 = vmatprep.subr.mxu0 0.0
    %2259 = vmatpush2.xpose.msra.mxu0 0.0
    %2260 = vmatprep.subr.mxu0 0.0
    %2261 = vmatpush2.xpose.msra.mxu0 0.0
    %2262 = vmatprep.subr.mxu0 0.0
    %2263 = vmatpush2.xpose.msra.mxu0 0.0
    %2264 = vmatprep.subr.mxu0 0.0
    %2265 = vmatpush2.xpose.msra.mxu0 0.0
    %2266 = vmatprep.subr.mxu0 0.0
    %2267 = vmatpush2.xpose.msra.mxu0 0.0
    %2268 = vmatprep.subr.mxu0 0.0
    %2269 = vmatpush2.xpose.msra.mxu0 0.0
    %2270 = vmatprep.subr.mxu0 0.0
    %2271 = vmatpush2.xpose.msra.mxu0 0.0
    %2272 = vmatprep.subr.mxu0 0.0
    %2273 = vmatpush2.xpose.msra.mxu0 0.0
    %2274 = vmatprep.subr.mxu0 0.0
    %2275 = vmatpush2.xpose.msra.mxu0 0.0
    %2276 = vmatprep.subr.mxu0 0.0
    %2277 = vmatpush2.xpose.msra.mxu0 0.0
    %2278 = vmatprep.subr.mxu0 0.0
    %2279 = vmatpush2.xpose.msra.mxu0 0.0
    %2280 = vmatprep.subr.mxu0 0.0
    %2281 = vmatpush2.xpose.msra.mxu0 0.0
    %2282 = vmatprep.mubr.f32.mxu0 0.0
    %2283 = vmatmul.mubr.f32.gmra.mxu0 %v2194
    %v2284 = vpop.f32.mrf.mxu0
    %v2285 = vadd.f32 0.0, %v2284
    %v2286 = vpop.f32.mrf.mxu0
    %2287 = vmatprep.mubr.f32.mxu0 0.0
    %2288 = vmatmul.mubr.f32.gmra.mxu0 %v2196
    %v2289 = vpop.f32.mrf.mxu0
    %v2290 = vadd.f32 0.0, %v2289
    %v2291 = vpop.f32.mrf.mxu0
    %2292 = vmatprep.mubr.f32.mxu0 0.0
    %2293 = vmatmul.mubr.f32.gmra.mxu0 %v2198
    %v2294 = vpop.f32.mrf.mxu0
    %v2295 = vadd.f32 0.0, %v2294
    %v2296 = vpop.f32.mrf.mxu0
    %2297 = vmatprep.mubr.f32.mxu0 0.0
    %2298 = vmatmul.mubr.f32.gmra.mxu0 %v2200
    %v2299 = vpop.f32.mrf.mxu0
    %v2300 = vadd.f32 0.0, %v2299
    %v2301 = vpop.f32.mrf.mxu0
    %2302 = vmatprep.mubr.f32.mxu0 0.0
    %2303 = vmatmul.mubr.f32.gmra.mxu0 %v2202
    %v2304 = vpop.f32.mrf.mxu0
    %v2305 = vadd.f32 0.0, %v2304
    %v2306 = vpop.f32.mrf.mxu0
    %2307 = vmatprep.mubr.f32.mxu0 0.0
    %2308 = vmatmul.mubr.f32.gmra.mxu0 %v2204
    %v2309 = vpop.f32.mrf.mxu0
    %v2310 = vadd.f32 0.0, %v2309
    %v2311 = vpop.f32.mrf.mxu0
    %2312 = vdwg.mxu0
    %v2313 = vadd.f32 %v2142, %v18
    %v2314 = vadd.f32 %v2147, %v19
    %v2315 = vadd.f32 %v2152, %v20
    %v2316 = vadd.f32 %v2157, %v21
    %v2317 = vadd.f32 %v2162, %v22
    %v2318 = vadd.f32 %v2167, %v23
    %v2319 = vadd.f32 %v2285, %v24
    %v2320 = vadd.f32 %v2290, %v25
    %v2321 = vadd.f32 %v2295, %v26
    %v2322 = vadd.f32 %v2300, %v27
    %v2323 = vadd.f32 %v2305, %v28
    %v2324 = vadd.f32 %v2310, %v29
    %v2325 = vsel %vm724, %v2313, -inf
    %2326 = vmax.xlane.f32.xlu0 %v2325
    %v2327 = vpop.xlane.xlu0 %2326
    %v2328 = vsel %vm724, %v2314, -inf
    %2329 = vmax.xlane.f32.xlu0 %v2328
    %v2330 = vpop.xlane.xlu0 %2329
    %v2331 = vsel %vm724, %v2315, -inf
    %2332 = vmax.xlane.f32.xlu0 %v2331
    %v2333 = vpop.xlane.xlu0 %2332
    %v2334 = vsel %vm724, %v2316, -inf
    %2335 = vmax.xlane.f32.xlu0 %v2334
    %v2336 = vpop.xlane.xlu0 %2335
    %v2337 = vsel %vm724, %v2317, -inf
    %2338 = vmax.xlane.f32.xlu0 %v2337
    %v2339 = vpop.xlane.xlu0 %2338
    %v2340 = vsel %vm724, %v2318, -inf
    %2341 = vmax.xlane.f32.xlu0 %v2340
    %v2342 = vpop.xlane.xlu0 %2341
    %v2343 = vsel %vm724, %v2319, -inf
    %2344 = vmax.xlane.f32.xlu0 %v2343
    %v2345 = vpop.xlane.xlu0 %2344
    %v2346 = vsel %vm724, %v2320, -inf
    %2347 = vmax.xlane.f32.xlu0 %v2346
    %v2348 = vpop.xlane.xlu0 %2347
    %v2349 = vsel %vm724, %v2321, -inf
    %2350 = vmax.xlane.f32.xlu0 %v2349
    %v2351 = vpop.xlane.xlu0 %2350
    %v2352 = vsel %vm724, %v2322, -inf
    %2353 = vmax.xlane.f32.xlu0 %v2352
    %v2354 = vpop.xlane.xlu0 %2353
    %v2355 = vsel %vm724, %v2323, -inf
    %2356 = vmax.xlane.f32.xlu0 %v2355
    %v2357 = vpop.xlane.xlu0 %2356
    %v2358 = vsel %vm724, %v2324, -inf
    %2359 = vmax.xlane.f32.xlu0 %v2358
    %v2360 = vpop.xlane.xlu0 %2359
    %v2361 = vsub.f32 %v2313, %v2327
    %v2362 = vsub.f32 %v2314, %v2330
    %v2363 = vsub.f32 %v2315, %v2333
    %v2364 = vsub.f32 %v2316, %v2336
    %v2365 = vsub.f32 %v2317, %v2339
    %v2366 = vsub.f32 %v2318, %v2342
    %v2367 = vsub.f32 %v2319, %v2345
    %v2368 = vsub.f32 %v2320, %v2348
    %v2369 = vsub.f32 %v2321, %v2351
    %v2370 = vsub.f32 %v2322, %v2354
    %v2371 = vsub.f32 %v2323, %v2357
    %v2372 = vsub.f32 %v2324, %v2360
    %v2373 = vmul.f32 %v2361, 1.442695
    %v2374 = vpow.pop %v2373
    %v2375 = vmul.f32 %v2362, 1.442695
    %v2376 = vpow.pop %v2375
    %v2377 = vmul.f32 %v2363, 1.442695
    %v2378 = vpow.pop %v2377
    %v2379 = vmul.f32 %v2364, 1.442695
    %v2380 = vpow.pop %v2379
    %v2381 = vmul.f32 %v2365, 1.442695
    %v2382 = vpow.pop %v2381
    %v2383 = vmul.f32 %v2366, 1.442695
    %v2384 = vpow.pop %v2383
    %v2385 = vmul.f32 %v2367, 1.442695
    %v2386 = vpow.pop %v2385
    %v2387 = vmul.f32 %v2368, 1.442695
    %v2388 = vpow.pop %v2387
    %v2389 = vmul.f32 %v2369, 1.442695
    %v2390 = vpow.pop %v2389
    %v2391 = vmul.f32 %v2370, 1.442695
    %v2392 = vpow.pop %v2391
    %v2393 = vmul.f32 %v2371, 1.442695
    %v2394 = vpow.pop %v2393
    %v2395 = vmul.f32 %v2372, 1.442695
    %v2396 = vpow.pop %v2395
    %v2397 = vsel %vm724, %v2374, 0.0
    %2398 = vadd.xlane.f32.xlu0 %v2397
    %v2399 = vpop.xlane.xlu0 %2398
    %v2400 = vsel %vm724, %v2376, 0.0
    %2401 = vadd.xlane.f32.xlu0 %v2400
    %v2402 = vpop.xlane.xlu0 %2401
    %v2403 = vsel %vm724, %v2378, 0.0
    %2404 = vadd.xlane.f32.xlu0 %v2403
    %v2405 = vpop.xlane.xlu0 %2404
    %v2406 = vsel %vm724, %v2380, 0.0
    %2407 = vadd.xlane.f32.xlu0 %v2406
    %v2408 = vpop.xlane.xlu0 %2407
    %v2409 = vsel %vm724, %v2382, 0.0
    %2410 = vadd.xlane.f32.xlu0 %v2409
    %v2411 = vpop.xlane.xlu0 %2410
    %v2412 = vsel %vm724, %v2384, 0.0
    %2413 = vadd.xlane.f32.xlu0 %v2412
    %v2414 = vpop.xlane.xlu0 %2413
    %v2415 = vsel %vm724, %v2386, 0.0
    %2416 = vadd.xlane.f32.xlu0 %v2415
    %v2417 = vpop.xlane.xlu0 %2416
    %v2418 = vsel %vm724, %v2388, 0.0
    %2419 = vadd.xlane.f32.xlu0 %v2418
    %v2420 = vpop.xlane.xlu0 %2419
    %v2421 = vsel %vm724, %v2390, 0.0
    %2422 = vadd.xlane.f32.xlu0 %v2421
    %v2423 = vpop.xlane.xlu0 %2422
    %v2424 = vsel %vm724, %v2392, 0.0
    %2425 = vadd.xlane.f32.xlu0 %v2424
    %v2426 = vpop.xlane.xlu0 %2425
    %v2427 = vsel %vm724, %v2394, 0.0
    %2428 = vadd.xlane.f32.xlu0 %v2427
    %v2429 = vpop.xlane.xlu0 %2428
    %v2430 = vsel %vm724, %v2396, 0.0
    %2431 = vadd.xlane.f32.xlu0 %v2430
    %v2432 = vpop.xlane.xlu0 %2431
    %v2433 = vrcp.pop %v2399
    %v2434 = vrcp.pop %v2402
    %v2435 = vrcp.pop %v2405
    %v2436 = vrcp.pop %v2408
    %v2437 = vrcp.pop %v2411
    %v2438 = vrcp.pop %v2414
    %v2439 = vrcp.pop %v2417
    %v2440 = vrcp.pop %v2420
    %v2441 = vrcp.pop %v2423
    %v2442 = vrcp.pop %v2426
    %v2443 = vrcp.pop %v2429
    %v2444 = vrcp.pop %v2432
    %v2445 = vmul.f32 %v2374, %v2433
    %v2446 = vmul.f32 %v2376, %v2434
    %v2447 = vmul.f32 %v2378, %v2435
    %v2448 = vmul.f32 %v2380, %v2436
    %v2449 = vmul.f32 %v2382, %v2437
    %v2450 = vmul.f32 %v2384, %v2438
    %v2451 = vmul.f32 %v2386, %v2439
    %v2452 = vmul.f32 %v2388, %v2440
    %v2453 = vmul.f32 %v2390, %v2441
    %v2454 = vmul.f32 %v2392, %v2442
    %v2455 = vmul.f32 %v2394, %v2443
    %v2456 = vmul.f32 %v2396, %v2444
    %v2457 = vld [vmem:[%s1 + $0x100] sm:$0xff]
    %2458 = vrot.lane.b32.xlu0 %v1993, 112
    %v2459 = vpop.permute.xlu0 %2458
    %2460 = vrot.lane.b32.xlu0 %v1998, 112
    %v2461 = vpop.permute.xlu0 %2460
    %2462 = vrot.lane.b32.xlu0 %v2003, 112
    %v2463 = vpop.permute.xlu0 %2462
    %2464 = vrot.lane.b32.xlu0 %v2008, 112
    %v2465 = vpop.permute.xlu0 %2464
    %2466 = vrot.lane.b32.xlu0 %v2013, 112
    %v2467 = vpop.permute.xlu0 %2466
    %2468 = vrot.lane.b32.xlu0 %v2018, 112
    %v2469 = vpop.permute.xlu0 %2468
    %v2477 = vsel %vm724, %v2445, 0
    %v2480 = vsel %vm724, %v2446, 0
    %v2483 = vsel %vm724, %v2447, 0
    %v2486 = vsel %vm724, %v2448, 0
    %v2489 = vsel %vm724, %v2449, 0
    %v2492 = vsel %vm724, %v2450, 0
    %2494 = vmatprep.subr.mxu0 0.0
    %2495 = vmatpush1.msra.mxu0 0.0
    %2496 = vmatprep.subr.mxu0 0.0
    %2497 = vmatpush1.msra.mxu0 0.0
    %2498 = vmatprep.subr.mxu0 0.0
    %2499 = vmatpush1.msra.mxu0 0.0
    %2500 = vmatprep.subr.mxu0 0.0
    %2501 = vmatpush1.msra.mxu0 0.0
    %2502 = vmatprep.subr.mxu0 0.0
    %2503 = vmatpush1.msra.mxu0 0.0
    %2504 = vmatprep.subr.mxu0 0.0
    %2505 = vmatpush1.msra.mxu0 0.0
    %2506 = vmatprep.subr.mxu0 0.0
    %2507 = vmatpush1.msra.mxu0 0.0
    %2508 = vmatprep.subr.mxu0 0.0
    %2509 = vmatpush1.msra.mxu0 0.0
    %2510 = vmatprep.subr.mxu0 0.0
    %2511 = vmatpush1.msra.mxu0 0.0
    %2512 = vmatprep.subr.mxu0 0.0
    %2513 = vmatpush1.msra.mxu0 0.0
    %2514 = vmatprep.subr.mxu0 0.0
    %2515 = vmatpush1.msra.mxu0 %v2469
    %2516 = vmatprep.subr.mxu0 0.0
    %2517 = vmatpush1.msra.mxu0 %v2467
    %2518 = vmatprep.subr.mxu0 0.0
    %2519 = vmatpush1.msra.mxu0 %v2465
    %2520 = vmatprep.subr.mxu0 0.0
    %2521 = vmatpush1.msra.mxu0 %v2463
    %2522 = vmatprep.subr.mxu0 0.0
    %2523 = vmatpush1.msra.mxu0 %v2461
    %2524 = vmatprep.subr.mxu0 0.0
    %2525 = vmatpush1.msra.mxu0 %v2459
    %2526 = vmatprep.subr.mxu0 0.0
    %2527 = vmatpush2.msra.mxu0 0.0
    %2528 = vmatprep.subr.mxu0 0.0
    %2529 = vmatpush2.msra.mxu0 0.0
    %2530 = vmatprep.subr.mxu0 0.0
    %2531 = vmatpush2.msra.mxu0 0.0
    %2532 = vmatprep.subr.mxu0 0.0
    %2533 = vmatpush2.msra.mxu0 0.0
    %2534 = vmatprep.subr.mxu0 0.0
    %2535 = vmatpush2.msra.mxu0 0.0
    %2536 = vmatprep.subr.mxu0 0.0
    %2537 = vmatpush2.msra.mxu0 0.0
    %2538 = vmatprep.subr.mxu0 0.0
    %2539 = vmatpush2.msra.mxu0 0.0
    %2540 = vmatprep.subr.mxu0 0.0
    %2541 = vmatpush2.msra.mxu0 0.0
    %2542 = vmatprep.subr.mxu0 0.0
    %2543 = vmatpush2.msra.mxu0 0.0
    %2544 = vmatprep.subr.mxu0 0.0
    %2545 = vmatpush2.msra.mxu0 0.0
    %2546 = vmatprep.subr.mxu0 0.0
    %2547 = vmatpush2.msra.mxu0 0.0
    %2548 = vmatprep.subr.mxu0 0.0
    %2549 = vmatpush2.msra.mxu0 0.0
    %2550 = vmatprep.subr.mxu0 0.0
    %2551 = vmatpush2.msra.mxu0 0.0
    %2552 = vmatprep.subr.mxu0 0.0
    %2553 = vmatpush2.msra.mxu0 0.0
    %2554 = vmatprep.subr.mxu0 0.0
    %2555 = vmatpush2.msra.mxu0 0.0
    %2556 = vmatprep.subr.mxu0 0.0
    %2557 = vmatpush2.msra.mxu0 0.0
    %2558 = vmatprep.mubr.f32.mxu0 0.0
    %2559 = vmatmul.mubr.f32.gmra.mxu0 %v2477
    %v2560 = vpop.f32.mrf.mxu0
    %v2561 = vadd.f32 0.0, %v2560
    %v2562 = vpop.f32.mrf.mxu0
    %2563 = vmatprep.mubr.f32.mxu0 0.0
    %2564 = vmatmul.mubr.f32.gmra.mxu0 %v2480
    %v2565 = vpop.f32.mrf.mxu0
    %v2566 = vadd.f32 0.0, %v2565
    %v2567 = vpop.f32.mrf.mxu0
    %2568 = vmatprep.mubr.f32.mxu0 0.0
    %2569 = vmatmul.mubr.f32.gmra.mxu0 %v2483
    %v2570 = vpop.f32.mrf.mxu0
    %v2571 = vadd.f32 0.0, %v2570
    %v2572 = vpop.f32.mrf.mxu0
    %2573 = vmatprep.mubr.f32.mxu0 0.0
    %2574 = vmatmul.mubr.f32.gmra.mxu0 %v2486
    %v2575 = vpop.f32.mrf.mxu0
    %v2576 = vadd.f32 0.0, %v2575
    %v2577 = vpop.f32.mrf.mxu0
    %2578 = vmatprep.mubr.f32.mxu0 0.0
    %2579 = vmatmul.mubr.f32.gmra.mxu0 %v2489
    %v2580 = vpop.f32.mrf.mxu0
    %v2581 = vadd.f32 0.0, %v2580
    %v2582 = vpop.f32.mrf.mxu0
    %2583 = vmatprep.mubr.f32.mxu0 0.0
    %2584 = vmatmul.mubr.f32.gmra.mxu0 %v2492
    %v2585 = vpop.f32.mrf.mxu0
    %v2586 = vadd.f32 0.0, %v2585
    %v2587 = vpop.f32.mrf.mxu0
    %2588 = vdwg.mxu0
    %2589 = vrot.lane.b32.xlu0 %v1993, 108
    %v2590 = vpop.permute.xlu0 %2589
    %2591 = vrot.lane.b32.xlu0 %v1998, 108
    %v2592 = vpop.permute.xlu0 %2591
    %2593 = vrot.lane.b32.xlu0 %v2003, 108
    %v2594 = vpop.permute.xlu0 %2593
    %2595 = vrot.lane.b32.xlu0 %v2008, 108
    %v2596 = vpop.permute.xlu0 %2595
    %2597 = vrot.lane.b32.xlu0 %v2013, 108
    %v2598 = vpop.permute.xlu0 %2597
    %2599 = vrot.lane.b32.xlu0 %v2018, 108
    %v2600 = vpop.permute.xlu0 %2599
    %v2608 = vsel %vm724, %v2451, 0
    %v2611 = vsel %vm724, %v2452, 0
    %v2614 = vsel %vm724, %v2453, 0
    %v2617 = vsel %vm724, %v2454, 0
    %v2620 = vsel %vm724, %v2455, 0
    %v2623 = vsel %vm724, %v2456, 0
    %2625 = vmatprep.subr.mxu0 0.0
    %2626 = vmatpush1.msra.mxu0 0.0
    %2627 = vmatprep.subr.mxu0 0.0
    %2628 = vmatpush1.msra.mxu0 0.0
    %2629 = vmatprep.subr.mxu0 0.0
    %2630 = vmatpush1.msra.mxu0 0.0
    %2631 = vmatprep.subr.mxu0 0.0
    %2632 = vmatpush1.msra.mxu0 0.0
    %2633 = vmatprep.subr.mxu0 0.0
    %2634 = vmatpush1.msra.mxu0 0.0
    %2635 = vmatprep.subr.mxu0 0.0
    %2636 = vmatpush1.msra.mxu0 0.0
    %2637 = vmatprep.subr.mxu0 0.0
    %2638 = vmatpush1.msra.mxu0 0.0
    %2639 = vmatprep.subr.mxu0 0.0
    %2640 = vmatpush1.msra.mxu0 0.0
    %2641 = vmatprep.subr.mxu0 0.0
    %2642 = vmatpush1.msra.mxu0 0.0
    %2643 = vmatprep.subr.mxu0 0.0
    %2644 = vmatpush1.msra.mxu0 0.0
    %2645 = vmatprep.subr.mxu0 0.0
    %2646 = vmatpush1.msra.mxu0 %v2600
    %2647 = vmatprep.subr.mxu0 0.0
    %2648 = vmatpush1.msra.mxu0 %v2598
    %2649 = vmatprep.subr.mxu0 0.0
    %2650 = vmatpush1.msra.mxu0 %v2596
    %2651 = vmatprep.subr.mxu0 0.0
    %2652 = vmatpush1.msra.mxu0 %v2594
    %2653 = vmatprep.subr.mxu0 0.0
    %2654 = vmatpush1.msra.mxu0 %v2592
    %2655 = vmatprep.subr.mxu0 0.0
    %2656 = vmatpush1.msra.mxu0 %v2590
    %2657 = vmatprep.subr.mxu0 0.0
    %2658 = vmatpush2.msra.mxu0 0.0
    %2659 = vmatprep.subr.mxu0 0.0
    %2660 = vmatpush2.msra.mxu0 0.0
    %2661 = vmatprep.subr.mxu0 0.0
    %2662 = vmatpush2.msra.mxu0 0.0
    %2663 = vmatprep.subr.mxu0 0.0
    %2664 = vmatpush2.msra.mxu0 0.0
    %2665 = vmatprep.subr.mxu0 0.0
    %2666 = vmatpush2.msra.mxu0 0.0
    %2667 = vmatprep.subr.mxu0 0.0
    %2668 = vmatpush2.msra.mxu0 0.0
    %2669 = vmatprep.subr.mxu0 0.0
    %2670 = vmatpush2.msra.mxu0 0.0
    %2671 = vmatprep.subr.mxu0 0.0
    %2672 = vmatpush2.msra.mxu0 0.0
    %2673 = vmatprep.subr.mxu0 0.0
    %2674 = vmatpush2.msra.mxu0 0.0
    %2675 = vmatprep.subr.mxu0 0.0
    %2676 = vmatpush2.msra.mxu0 0.0
    %2677 = vmatprep.subr.mxu0 0.0
    %2678 = vmatpush2.msra.mxu0 0.0
    %2679 = vmatprep.subr.mxu0 0.0
    %2680 = vmatpush2.msra.mxu0 0.0
    %2681 = vmatprep.subr.mxu0 0.0
    %2682 = vmatpush2.msra.mxu0 0.0
    %2683 = vmatprep.subr.mxu0 0.0
    %2684 = vmatpush2.msra.mxu0 0.0
    %2685 = vmatprep.subr.mxu0 0.0
    %2686 = vmatpush2.msra.mxu0 0.0
    %2687 = vmatprep.subr.mxu0 0.0
    %2688 = vmatpush2.msra.mxu0 0.0
    %2689 = vmatprep.mubr.f32.mxu0 0.0
    %2690 = vmatmul.mubr.f32.gmra.mxu0 %v2608
    %v2691 = vpop.f32.mrf.mxu0
    %v2692 = vadd.f32 0.0, %v2691
    %v2693 = vpop.f32.mrf.mxu0
    %2694 = vmatprep.mubr.f32.mxu0 0.0
    %2695 = vmatmul.mubr.f32.gmra.mxu0 %v2611
    %v2696 = vpop.f32.mrf.mxu0
    %v2697 = vadd.f32 0.0, %v2696
    %v2698 = vpop.f32.mrf.mxu0
    %2699 = vmatprep.mubr.f32.mxu0 0.0
    %2700 = vmatmul.mubr.f32.gmra.mxu0 %v2614
    %v2701 = vpop.f32.mrf.mxu0
    %v2702 = vadd.f32 0.0, %v2701
    %v2703 = vpop.f32.mrf.mxu0
    %2704 = vmatprep.mubr.f32.mxu0 0.0
    %2705 = vmatmul.mubr.f32.gmra.mxu0 %v2617
    %v2706 = vpop.f32.mrf.mxu0
    %v2707 = vadd.f32 0.0, %v2706
    %v2708 = vpop.f32.mrf.mxu0
    %2709 = vmatprep.mubr.f32.mxu0 0.0
    %2710 = vmatmul.mubr.f32.gmra.mxu0 %v2620
    %v2711 = vpop.f32.mrf.mxu0
    %v2712 = vadd.f32 0.0, %v2711
    %v2713 = vpop.f32.mrf.mxu0
    %2714 = vmatprep.mubr.f32.mxu0 0.0
    %2715 = vmatmul.mubr.f32.gmra.mxu0 %v2623
    %v2716 = vpop.f32.mrf.mxu0
    %v2717 = vadd.f32 0.0, %v2716
    %v2718 = vpop.f32.mrf.mxu0
    %2719 = vdwg.mxu0
    %v2721 = vrot.slane %v2457, 4
    %v2723 = vsel %vm443, %v2692, 0
    %v2726 = vsel %vm443, %v2697, 0
    %v2729 = vsel %vm443, %v2702, 0
    %v2732 = vsel %vm443, %v2707, 0
    %v2735 = vsel %vm443, %v2712, 0
    %v2738 = vsel %vm443, %v2717, 0
    %v2740 = vsel %vm1140, %v2721, 0
    %2742 = vmatprep.subr.mxu0 0.0
    %2743 = vmatpush1.msra.mxu0 0.0
    %2744 = vmatprep.subr.mxu0 0.0
    %2745 = vmatpush1.msra.mxu0 0.0
    %2746 = vmatprep.subr.mxu0 0.0
    %2747 = vmatpush1.msra.mxu0 0.0
    %2748 = vmatprep.subr.mxu0 0.0
    %2749 = vmatpush1.msra.mxu0 0.0
    %2750 = vmatprep.subr.mxu0 0.0
    %2751 = vmatpush1.msra.mxu0 0.0
    %2752 = vmatprep.subr.mxu0 0.0
    %2753 = vmatpush1.msra.mxu0 0.0
    %2754 = vmatprep.subr.mxu0 0.0
    %2755 = vmatpush1.msra.mxu0 0.0
    %2756 = vmatprep.subr.mxu0 0.0
    %2757 = vmatpush1.msra.mxu0 0.0
    %2758 = vmatprep.subr.mxu0 0.0
    %2759 = vmatpush1.msra.mxu0 0.0
    %2760 = vmatprep.subr.mxu0 0.0
    %2761 = vmatpush1.msra.mxu0 0.0
    %2762 = vmatprep.subr.mxu0 0.0
    %2763 = vmatpush1.msra.mxu0 0.0
    %2764 = vmatprep.subr.mxu0 0.0
    %2765 = vmatpush1.msra.mxu0 0.0
    %2766 = vmatprep.subr.mxu0 0.0
    %2767 = vmatpush1.msra.mxu0 0.0
    %2768 = vmatprep.subr.mxu0 0.0
    %2769 = vmatpush1.msra.mxu0 0.0
    %2770 = vmatprep.subr.mxu0 0.0
    %2771 = vmatpush1.msra.mxu0 0.0
    %2772 = vmatprep.subr.mxu0 0.0
    %2773 = vmatpush1.msra.mxu0 %v2740
    %2774 = vmatprep.subr.mxu0 0.0
    %2775 = vmatpush2.msra.mxu0 0.0
    %2776 = vmatprep.subr.mxu0 0.0
    %2777 = vmatpush2.msra.mxu0 0.0
    %2778 = vmatprep.subr.mxu0 0.0
    %2779 = vmatpush2.msra.mxu0 0.0
    %2780 = vmatprep.subr.mxu0 0.0
    %2781 = vmatpush2.msra.mxu0 0.0
    %2782 = vmatprep.subr.mxu0 0.0
    %2783 = vmatpush2.msra.mxu0 0.0
    %2784 = vmatprep.subr.mxu0 0.0
    %2785 = vmatpush2.msra.mxu0 0.0
    %2786 = vmatprep.subr.mxu0 0.0
    %2787 = vmatpush2.msra.mxu0 0.0
    %2788 = vmatprep.subr.mxu0 0.0
    %2789 = vmatpush2.msra.mxu0 0.0
    %2790 = vmatprep.subr.mxu0 0.0
    %2791 = vmatpush2.msra.mxu0 0.0
    %2792 = vmatprep.subr.mxu0 0.0
    %2793 = vmatpush2.msra.mxu0 0.0
    %2794 = vmatprep.subr.mxu0 0.0
    %2795 = vmatpush2.msra.mxu0 0.0
    %2796 = vmatprep.subr.mxu0 0.0
    %2797 = vmatpush2.msra.mxu0 0.0
    %2798 = vmatprep.subr.mxu0 0.0
    %2799 = vmatpush2.msra.mxu0 0.0
    %2800 = vmatprep.subr.mxu0 0.0
    %2801 = vmatpush2.msra.mxu0 0.0
    %2802 = vmatprep.subr.mxu0 0.0
    %2803 = vmatpush2.msra.mxu0 0.0
    %2804 = vmatprep.subr.mxu0 0.0
    %2805 = vmatpush2.msra.mxu0 0.0
    %2806 = vmatprep.mubr.f32.mxu0 0.0
    %2807 = vmatmul.mubr.f32.gmra.mxu0 %v2723
    %v2808 = vpop.f32.mrf.mxu0
    %v2809 = vadd.f32 0.0, %v2808
    %v2810 = vpop.f32.mrf.mxu0
    %2811 = vmatprep.mubr.f32.mxu0 0.0
    %2812 = vmatmul.mubr.f32.gmra.mxu0 %v2726
    %v2813 = vpop.f32.mrf.mxu0
    %v2814 = vadd.f32 0.0, %v2813
    %v2815 = vpop.f32.mrf.mxu0
    %2816 = vmatprep.mubr.f32.mxu0 0.0
    %2817 = vmatmul.mubr.f32.gmra.mxu0 %v2729
    %v2818 = vpop.f32.mrf.mxu0
    %v2819 = vadd.f32 0.0, %v2818
    %v2820 = vpop.f32.mrf.mxu0
    %2821 = vmatprep.mubr.f32.mxu0 0.0
    %2822 = vmatmul.mubr.f32.gmra.mxu0 %v2732
    %v2823 = vpop.f32.mrf.mxu0
    %v2824 = vadd.f32 0.0, %v2823
    %v2825 = vpop.f32.mrf.mxu0
    %2826 = vmatprep.mubr.f32.mxu0 0.0
    %2827 = vmatmul.mubr.f32.gmra.mxu0 %v2735
    %v2828 = vpop.f32.mrf.mxu0
    %v2829 = vadd.f32 0.0, %v2828
    %v2830 = vpop.f32.mrf.mxu0
    %2831 = vmatprep.mubr.f32.mxu0 0.0
    %2832 = vmatmul.mubr.f32.gmra.mxu0 %v2738
    %v2833 = vpop.f32.mrf.mxu0
    %v2834 = vadd.f32 0.0, %v2833
    %v2835 = vpop.f32.mrf.mxu0
    %2836 = vdwg.mxu0
    %v2838 = vsel %vm443, %v2561, 0
    %v2841 = vsel %vm443, %v2566, 0
    %v2844 = vsel %vm443, %v2571, 0
    %v2847 = vsel %vm443, %v2576, 0
    %v2850 = vsel %vm443, %v2581, 0
    %v2853 = vsel %vm443, %v2586, 0
    %v2855 = vsel %vm1140, %v2457, 0
    %2857 = vmatprep.subr.mxu0 0.0
    %2858 = vmatpush1.msra.mxu0 0.0
    %2859 = vmatprep.subr.mxu0 0.0
    %2860 = vmatpush1.msra.mxu0 0.0
    %2861 = vmatprep.subr.mxu0 0.0
    %2862 = vmatpush1.msra.mxu0 0.0
    %2863 = vmatprep.subr.mxu0 0.0
    %2864 = vmatpush1.msra.mxu0 0.0
    %2865 = vmatprep.subr.mxu0 0.0
    %2866 = vmatpush1.msra.mxu0 0.0
    %2867 = vmatprep.subr.mxu0 0.0
    %2868 = vmatpush1.msra.mxu0 0.0
    %2869 = vmatprep.subr.mxu0 0.0
    %2870 = vmatpush1.msra.mxu0 0.0
    %2871 = vmatprep.subr.mxu0 0.0
    %2872 = vmatpush1.msra.mxu0 0.0
    %2873 = vmatprep.subr.mxu0 0.0
    %2874 = vmatpush1.msra.mxu0 0.0
    %2875 = vmatprep.subr.mxu0 0.0
    %2876 = vmatpush1.msra.mxu0 0.0
    %2877 = vmatprep.subr.mxu0 0.0
    %2878 = vmatpush1.msra.mxu0 0.0
    %2879 = vmatprep.subr.mxu0 0.0
    %2880 = vmatpush1.msra.mxu0 0.0
    %2881 = vmatprep.subr.mxu0 0.0
    %2882 = vmatpush1.msra.mxu0 0.0
    %2883 = vmatprep.subr.mxu0 0.0
    %2884 = vmatpush1.msra.mxu0 0.0
    %2885 = vmatprep.subr.mxu0 0.0
    %2886 = vmatpush1.msra.mxu0 0.0
    %2887 = vmatprep.subr.mxu0 0.0
    %2888 = vmatpush1.msra.mxu0 %v2855
    %2889 = vmatprep.subr.mxu0 0.0
    %2890 = vmatpush2.msra.mxu0 0.0
    %2891 = vmatprep.subr.mxu0 0.0
    %2892 = vmatpush2.msra.mxu0 0.0
    %2893 = vmatprep.subr.mxu0 0.0
    %2894 = vmatpush2.msra.mxu0 0.0
    %2895 = vmatprep.subr.mxu0 0.0
    %2896 = vmatpush2.msra.mxu0 0.0
    %2897 = vmatprep.subr.mxu0 0.0
    %2898 = vmatpush2.msra.mxu0 0.0
    %2899 = vmatprep.subr.mxu0 0.0
    %2900 = vmatpush2.msra.mxu0 0.0
    %2901 = vmatprep.subr.mxu0 0.0
    %2902 = vmatpush2.msra.mxu0 0.0
    %2903 = vmatprep.subr.mxu0 0.0
    %2904 = vmatpush2.msra.mxu0 0.0
    %2905 = vmatprep.subr.mxu0 0.0
    %2906 = vmatpush2.msra.mxu0 0.0
    %2907 = vmatprep.subr.mxu0 0.0
    %2908 = vmatpush2.msra.mxu0 0.0
    %2909 = vmatprep.subr.mxu0 0.0
    %2910 = vmatpush2.msra.mxu0 0.0
    %2911 = vmatprep.subr.mxu0 0.0
    %2912 = vmatpush2.msra.mxu0 0.0
    %2913 = vmatprep.subr.mxu0 0.0
    %2914 = vmatpush2.msra.mxu0 0.0
    %2915 = vmatprep.subr.mxu0 0.0
    %2916 = vmatpush2.msra.mxu0 0.0
    %2917 = vmatprep.subr.mxu0 0.0
    %2918 = vmatpush2.msra.mxu0 0.0
    %2919 = vmatprep.subr.mxu0 0.0
    %2920 = vmatpush2.msra.mxu0 0.0
    %2921 = vmatprep.mubr.f32.mxu0 0.0
    %2922 = vmatmul.mubr.f32.gmra.mxu0 %v2838
    %v2923 = vpop.f32.mrf.mxu0
    %v2924 = vadd.f32 %v2809, %v2923
    %v2925 = vpop.f32.mrf.mxu0
    %2926 = vmatprep.mubr.f32.mxu0 0.0
    %2927 = vmatmul.mubr.f32.gmra.mxu0 %v2841
    %v2928 = vpop.f32.mrf.mxu0
    %v2929 = vadd.f32 %v2814, %v2928
    %v2930 = vpop.f32.mrf.mxu0
    %2931 = vmatprep.mubr.f32.mxu0 0.0
    %2932 = vmatmul.mubr.f32.gmra.mxu0 %v2844
    %v2933 = vpop.f32.mrf.mxu0
    %v2934 = vadd.f32 %v2819, %v2933
    %v2935 = vpop.f32.mrf.mxu0
    %2936 = vmatprep.mubr.f32.mxu0 0.0
    %2937 = vmatmul.mubr.f32.gmra.mxu0 %v2847
    %v2938 = vpop.f32.mrf.mxu0
    %v2939 = vadd.f32 %v2824, %v2938
    %v2940 = vpop.f32.mrf.mxu0
    %2941 = vmatprep.mubr.f32.mxu0 0.0
    %2942 = vmatmul.mubr.f32.gmra.mxu0 %v2850
    %v2943 = vpop.f32.mrf.mxu0
    %v2944 = vadd.f32 %v2829, %v2943
    %v2945 = vpop.f32.mrf.mxu0
    %2946 = vmatprep.mubr.f32.mxu0 0.0
    %2947 = vmatmul.mubr.f32.gmra.mxu0 %v2853
    %v2948 = vpop.f32.mrf.mxu0
    %v2949 = vadd.f32 %v2834, %v2948
    %v2950 = vpop.f32.mrf.mxu0
    %2951 = vdwg.mxu0
    %v2952 = vadd.f32 %v1784, %v2924
    %v2953 = vadd.f32 %v1785, %v2929
    %v2954 = vadd.f32 %v1786, %v2934
    %v2955 = vadd.f32 %v1787, %v2939
    %v2956 = vadd.f32 %v1788, %v2944
    %v2957 = vadd.f32 %v1789, %v2949
    %v2958 = vld [vmem:[%s2 + $0x13] sm:$0x1]
    %v2959 = vlaneseq
    %v2960 = vshrl.u32 %v2959, 7
    %v2961 = vsub.s32 0, %v2960
    %v2962 = vrot.slane %v2958, %v2961
    %v2963 = vadd.f32 %v2952, %v2962
    %v2964 = vadd.f32 %v2953, %v2962
    %v2965 = vadd.f32 %v2954, %v2962
    %v2966 = vadd.f32 %v2955, %v2962
    %v2967 = vadd.f32 %v2956, %v2962
    %v2968 = vadd.f32 %v2957, %v2962
    %v2969 = vld [vmem:[%s2 + $0x14] sm:$0x1]
    %v2970 = vld [vmem:[%s2 + $0x15] sm:$0x1]
    %v2971 = vsel %vm188, %v2963, 0.0
    %2972 = vadd.xlane.f32.xlu0 %v2971
    %v2973 = vpop.xlane.xlu0 %2972
    %v2974 = vsel %vm188, %v2964, 0.0
    %2975 = vadd.xlane.f32.xlu0 %v2974
    %v2976 = vpop.xlane.xlu0 %2975
    %v2977 = vsel %vm188, %v2965, 0.0
    %2978 = vadd.xlane.f32.xlu0 %v2977
    %v2979 = vpop.xlane.xlu0 %2978
    %v2980 = vsel %vm188, %v2966, 0.0
    %2981 = vadd.xlane.f32.xlu0 %v2980
    %v2982 = vpop.xlane.xlu0 %2981
    %v2983 = vsel %vm188, %v2967, 0.0
    %2984 = vadd.xlane.f32.xlu0 %v2983
    %v2985 = vpop.xlane.xlu0 %2984
    %v2986 = vsel %vm188, %v2968, 0.0
    %2987 = vadd.xlane.f32.xlu0 %v2986
    %v2988 = vpop.xlane.xlu0 %2987
    %v2989 = vmul.f32 %v2973, %v207
    %v2990 = vmul.f32 %v2976, %v207
    %v2991 = vmul.f32 %v2979, %v207
    %v2992 = vmul.f32 %v2982, %v207
    %v2993 = vmul.f32 %v2985, %v207
    %v2994 = vmul.f32 %v2988, %v207
    %v2995 = vmul.f32 %v2963, %v2963
    %v2996 = vmul.f32 %v2964, %v2964
    %v2997 = vmul.f32 %v2965, %v2965
    %v2998 = vmul.f32 %v2966, %v2966
    %v2999 = vmul.f32 %v2967, %v2967
    %v3000 = vmul.f32 %v2968, %v2968
    %v3001 = vsel %vm188, %v2995, 0.0
    %3002 = vadd.xlane.f32.xlu0 %v3001
    %v3003 = vpop.xlane.xlu0 %3002
    %v3004 = vsel %vm188, %v2996, 0.0
    %3005 = vadd.xlane.f32.xlu0 %v3004
    %v3006 = vpop.xlane.xlu0 %3005
    %v3007 = vsel %vm188, %v2997, 0.0
    %3008 = vadd.xlane.f32.xlu0 %v3007
    %v3009 = vpop.xlane.xlu0 %3008
    %v3010 = vsel %vm188, %v2998, 0.0
    %3011 = vadd.xlane.f32.xlu0 %v3010
    %v3012 = vpop.xlane.xlu0 %3011
    %v3013 = vsel %vm188, %v2999, 0.0
    %3014 = vadd.xlane.f32.xlu0 %v3013
    %v3015 = vpop.xlane.xlu0 %3014
    %v3016 = vsel %vm188, %v3000, 0.0
    %3017 = vadd.xlane.f32.xlu0 %v3016
    %v3018 = vpop.xlane.xlu0 %3017
    %v3019 = vmul.f32 %v3003, %v207
    %v3020 = vmul.f32 %v3006, %v207
    %v3021 = vmul.f32 %v3009, %v207
    %v3022 = vmul.f32 %v3012, %v207
    %v3023 = vmul.f32 %v3015, %v207
    %v3024 = vmul.f32 %v3018, %v207
    %v3025 = vmul.f32 %v2989, %v2989
    %v3026 = vmul.f32 %v2990, %v2990
    %v3027 = vmul.f32 %v2991, %v2991
    %v3028 = vmul.f32 %v2992, %v2992
    %v3029 = vmul.f32 %v2993, %v2993
    %v3030 = vmul.f32 %v2994, %v2994
    %v3031 = vsub.f32 %v3019, %v3025
    %v3032 = vsub.f32 %v3020, %v3026
    %v3033 = vsub.f32 %v3021, %v3027
    %v3034 = vsub.f32 %v3022, %v3028
    %v3035 = vsub.f32 %v3023, %v3029
    %v3036 = vsub.f32 %v3024, %v3030
    %v3037 = vsub.f32 %v2963, %v2989
    %v3038 = vsub.f32 %v2964, %v2990
    %v3039 = vsub.f32 %v2965, %v2991
    %v3040 = vsub.f32 %v2966, %v2992
    %v3041 = vsub.f32 %v2967, %v2993
    %v3042 = vsub.f32 %v2968, %v2994
    %v3043 = vadd.f32 %v3031, 1e-06
    %v3044 = vadd.f32 %v3032, 1e-06
    %v3045 = vadd.f32 %v3033, 1e-06
    %v3046 = vadd.f32 %v3034, 1e-06
    %v3047 = vadd.f32 %v3035, 1e-06
    %v3048 = vadd.f32 %v3036, 1e-06
    %v3049 = vrsqrt.pop %v3043
    %v3050 = vrsqrt.pop %v3044
    %v3051 = vrsqrt.pop %v3045
    %v3052 = vrsqrt.pop %v3046
    %v3053 = vrsqrt.pop %v3047
    %v3054 = vrsqrt.pop %v3048
    %v3055 = vmul.f32 %v3037, %v3049
    %v3056 = vmul.f32 %v3038, %v3050
    %v3057 = vmul.f32 %v3039, %v3051
    %v3058 = vmul.f32 %v3040, %v3052
    %v3059 = vmul.f32 %v3041, %v3053
    %v3060 = vmul.f32 %v3042, %v3054
    %v3061 = vlaneseq
    %v3062 = vshrl.u32 %v3061, 7
    %v3063 = vsub.s32 0, %v3062
    %v3064 = vrot.slane %v2969, %v3063
    %v3065 = vmul.f32 %v3055, %v3064
    %v3066 = vmul.f32 %v3056, %v3064
    %v3067 = vmul.f32 %v3057, %v3064
    %v3068 = vmul.f32 %v3058, %v3064
    %v3069 = vmul.f32 %v3059, %v3064
    %v3070 = vmul.f32 %v3060, %v3064
    %v3071 = vlaneseq
    %v3072 = vshrl.u32 %v3071, 7
    %v3073 = vsub.s32 0, %v3072
    %v3074 = vrot.slane %v2970, %v3073
    %v3075 = vadd.f32 %v3065, %v3074
    %v3076 = vadd.f32 %v3066, %v3074
    %v3077 = vadd.f32 %v3067, %v3074
    %v3078 = vadd.f32 %v3068, %v3074
    %v3079 = vadd.f32 %v3069, %v3074
    %v3080 = vadd.f32 %v3070, %v3074
    %v3081 = vld [vmem:[%s1 + $0x108] sm:$0xff]
    %v3082 = vld [vmem:[%s2 + $0x16] sm:$0x1]
    %v3083 = vlaneseq
    %v3084 = vshrl.u32 %v3083, 7
    %v3085 = vsub.s32 0, %v3084
    %v3086 = vrot.slane %v3082, %v3085
    %v3088 = vsel %vm188, %v3075, 0
    %v3091 = vsel %vm188, %v3076, 0
    %v3094 = vsel %vm188, %v3077, 0
    %v3097 = vsel %vm188, %v3078, 0
    %v3100 = vsel %vm188, %v3079, 0
    %v3103 = vsel %vm188, %v3080, 0
    %3105 = vmatprep.subr.mxu0 0.0
    %3106 = vmatpush1.msra.mxu0 0.0
    %3107 = vmatprep.subr.mxu0 0.0
    %3108 = vmatpush1.msra.mxu0 0.0
    %3109 = vmatprep.subr.mxu0 0.0
    %3110 = vmatpush1.msra.mxu0 0.0
    %3111 = vmatprep.subr.mxu0 0.0
    %3112 = vmatpush1.msra.mxu0 0.0
    %3113 = vmatprep.subr.mxu0 0.0
    %3114 = vmatpush1.msra.mxu0 0.0
    %3115 = vmatprep.subr.mxu0 0.0
    %3116 = vmatpush1.msra.mxu0 0.0
    %3117 = vmatprep.subr.mxu0 0.0
    %3118 = vmatpush1.msra.mxu0 0.0
    %3119 = vmatprep.subr.mxu0 0.0
    %3120 = vmatpush1.msra.mxu0 0.0
    %3121 = vmatprep.subr.mxu0 0.0
    %3122 = vmatpush1.msra.mxu0 0.0
    %3123 = vmatprep.subr.mxu0 0.0
    %3124 = vmatpush1.msra.mxu0 0.0
    %3125 = vmatprep.subr.mxu0 0.0
    %3126 = vmatpush1.msra.mxu0 0.0
    %3127 = vmatprep.subr.mxu0 0.0
    %3128 = vmatpush1.msra.mxu0 0.0
    %3129 = vmatprep.subr.mxu0 0.0
    %3130 = vmatpush1.msra.mxu0 0.0
    %3131 = vmatprep.subr.mxu0 0.0
    %3132 = vmatpush1.msra.mxu0 0.0
    %3133 = vmatprep.subr.mxu0 0.0
    %3134 = vmatpush1.msra.mxu0 0.0
    %3135 = vmatprep.subr.mxu0 0.0
    %3136 = vmatpush1.msra.mxu0 %v3081
    %3137 = vmatprep.subr.mxu0 0.0
    %3138 = vmatpush2.msra.mxu0 0.0
    %3139 = vmatprep.subr.mxu0 0.0
    %3140 = vmatpush2.msra.mxu0 0.0
    %3141 = vmatprep.subr.mxu0 0.0
    %3142 = vmatpush2.msra.mxu0 0.0
    %3143 = vmatprep.subr.mxu0 0.0
    %3144 = vmatpush2.msra.mxu0 0.0
    %3145 = vmatprep.subr.mxu0 0.0
    %3146 = vmatpush2.msra.mxu0 0.0
    %3147 = vmatprep.subr.mxu0 0.0
    %3148 = vmatpush2.msra.mxu0 0.0
    %3149 = vmatprep.subr.mxu0 0.0
    %3150 = vmatpush2.msra.mxu0 0.0
    %3151 = vmatprep.subr.mxu0 0.0
    %3152 = vmatpush2.msra.mxu0 0.0
    %3153 = vmatprep.subr.mxu0 0.0
    %3154 = vmatpush2.msra.mxu0 0.0
    %3155 = vmatprep.subr.mxu0 0.0
    %3156 = vmatpush2.msra.mxu0 0.0
    %3157 = vmatprep.subr.mxu0 0.0
    %3158 = vmatpush2.msra.mxu0 0.0
    %3159 = vmatprep.subr.mxu0 0.0
    %3160 = vmatpush2.msra.mxu0 0.0
    %3161 = vmatprep.subr.mxu0 0.0
    %3162 = vmatpush2.msra.mxu0 0.0
    %3163 = vmatprep.subr.mxu0 0.0
    %3164 = vmatpush2.msra.mxu0 0.0
    %3165 = vmatprep.subr.mxu0 0.0
    %3166 = vmatpush2.msra.mxu0 0.0
    %3167 = vmatprep.subr.mxu0 0.0
    %3168 = vmatpush2.msra.mxu0 0.0
    %3169 = vmatprep.mubr.f32.mxu0 0.0
    %3170 = vmatmul.mubr.f32.gmra.mxu0 %v3088
    %v3171 = vpop.f32.mrf.mxu0
    %v3172 = vadd.f32 %v3086, %v3171
    %v3173 = vpop.f32.mrf.mxu0
    %3174 = vmatprep.mubr.f32.mxu0 0.0
    %3175 = vmatmul.mubr.f32.gmra.mxu0 %v3091
    %v3176 = vpop.f32.mrf.mxu0
    %v3177 = vadd.f32 %v3086, %v3176
    %v3178 = vpop.f32.mrf.mxu0
    %3179 = vmatprep.mubr.f32.mxu0 0.0
    %3180 = vmatmul.mubr.f32.gmra.mxu0 %v3094
    %v3181 = vpop.f32.mrf.mxu0
    %v3182 = vadd.f32 %v3086, %v3181
    %v3183 = vpop.f32.mrf.mxu0
    %3184 = vmatprep.mubr.f32.mxu0 0.0
    %3185 = vmatmul.mubr.f32.gmra.mxu0 %v3097
    %v3186 = vpop.f32.mrf.mxu0
    %v3187 = vadd.f32 %v3086, %v3186
    %v3188 = vpop.f32.mrf.mxu0
    %3189 = vmatprep.mubr.f32.mxu0 0.0
    %3190 = vmatmul.mubr.f32.gmra.mxu0 %v3100
    %v3191 = vpop.f32.mrf.mxu0
    %v3192 = vadd.f32 %v3086, %v3191
    %v3193 = vpop.f32.mrf.mxu0
    %3194 = vmatprep.mubr.f32.mxu0 0.0
    %3195 = vmatmul.mubr.f32.gmra.mxu0 %v3103
    %v3196 = vpop.f32.mrf.mxu0
    %v3197 = vadd.f32 %v3086, %v3196
    %v3198 = vpop.f32.mrf.mxu0
    %3199 = vdwg.mxu0
    %v3200 = vmul.f32 %v3172, 0.5
    %v3201 = vmul.f32 %v3177, 0.5
    %v3202 = vmul.f32 %v3182, 0.5
    %v3203 = vmul.f32 %v3187, 0.5
    %v3204 = vmul.f32 %v3192, 0.5
    %v3205 = vmul.f32 %v3197, 0.5
    %v3206 = vmul.f32 %v3172, 0.044715
    %v3207 = vmul.f32 %v3177, 0.044715
    %v3208 = vmul.f32 %v3182, 0.044715
    %v3209 = vmul.f32 %v3187, 0.044715
    %v3210 = vmul.f32 %v3192, 0.044715
    %v3211 = vmul.f32 %v3197, 0.044715
    %v3212 = vmul.f32 %v3206, %v3172
    %v3213 = vmul.f32 %v3207, %v3177
    %v3214 = vmul.f32 %v3208, %v3182
    %v3215 = vmul.f32 %v3209, %v3187
    %v3216 = vmul.f32 %v3210, %v3192
    %v3217 = vmul.f32 %v3211, %v3197
    %v3218 = vmul.f32 %v3212, %v3172
    %v3219 = vmul.f32 %v3213, %v3177
    %v3220 = vmul.f32 %v3214, %v3182
    %v3221 = vmul.f32 %v3215, %v3187
    %v3222 = vmul.f32 %v3216, %v3192
    %v3223 = vmul.f32 %v3217, %v3197
    %v3224 = vadd.f32 %v3172, %v3218
    %v3225 = vadd.f32 %v3177, %v3219
    %v3226 = vadd.f32 %v3182, %v3220
    %v3227 = vadd.f32 %v3187, %v3221
    %v3228 = vadd.f32 %v3192, %v3222
    %v3229 = vadd.f32 %v3197, %v3223
    %v3230 = vmul.f32 %v3224, 0.7978846
    %v3231 = vmul.f32 %v3225, 0.7978846
    %v3232 = vmul.f32 %v3226, 0.7978846
    %v3233 = vmul.f32 %v3227, 0.7978846
    %v3234 = vmul.f32 %v3228, 0.7978846
    %v3235 = vmul.f32 %v3229, 0.7978846
    %v3236 = vtanh.pop %v3230
    %v3237 = vtanh.pop %v3231
    %v3238 = vtanh.pop %v3232
    %v3239 = vtanh.pop %v3233
    %v3240 = vtanh.pop %v3234
    %v3241 = vtanh.pop %v3235
    %v3242 = vadd.f32 %v3236, 1.0
    %v3243 = vadd.f32 %v3237, 1.0
    %v3244 = vadd.f32 %v3238, 1.0
    %v3245 = vadd.f32 %v3239, 1.0
    %v3246 = vadd.f32 %v3240, 1.0
    %v3247 = vadd.f32 %v3241, 1.0
    %v3248 = vmul.f32 %v3200, %v3242
    %v3249 = vmul.f32 %v3201, %v3243
    %v3250 = vmul.f32 %v3202, %v3244
    %v3251 = vmul.f32 %v3203, %v3245
    %v3252 = vmul.f32 %v3204, %v3246
    %v3253 = vmul.f32 %v3205, %v3247
    %v3254 = vld [vmem:[%s1 + $0x110] sm:$0xff]
    %v3255 = vld [vmem:[%s1 + $0x118] sm:$0xff]
    %v3256 = vld [vmem:[%s1 + $0x120] sm:$0xff]
    %v3257 = vld [vmem:[%s1 + $0x128] sm:$0xff]
    %v3259 = vsel %vm1659, %v3248, 0
    %v3262 = vsel %vm1659, %v3249, 0
    %v3265 = vsel %vm1659, %v3250, 0
    %v3268 = vsel %vm1659, %v3251, 0
    %v3271 = vsel %vm1659, %v3252, 0
    %v3274 = vsel %vm1659, %v3253, 0
    %3276 = vmatprep.subr.mxu0 0.0
    %3277 = vmatpush1.msra.mxu0 0.0
    %3278 = vmatprep.subr.mxu0 0.0
    %3279 = vmatpush1.msra.mxu0 0.0
    %3280 = vmatprep.subr.mxu0 0.0
    %3281 = vmatpush1.msra.mxu0 0.0
    %3282 = vmatprep.subr.mxu0 0.0
    %3283 = vmatpush1.msra.mxu0 0.0
    %3284 = vmatprep.subr.mxu0 0.0
    %3285 = vmatpush1.msra.mxu0 0.0
    %3286 = vmatprep.subr.mxu0 0.0
    %3287 = vmatpush1.msra.mxu0 0.0
    %3288 = vmatprep.subr.mxu0 0.0
    %3289 = vmatpush1.msra.mxu0 0.0
    %3290 = vmatprep.subr.mxu0 0.0
    %3291 = vmatpush1.msra.mxu0 0.0
    %3292 = vmatprep.subr.mxu0 0.0
    %3293 = vmatpush1.msra.mxu0 0.0
    %3294 = vmatprep.subr.mxu0 0.0
    %3295 = vmatpush1.msra.mxu0 0.0
    %3296 = vmatprep.subr.mxu0 0.0
    %3297 = vmatpush1.msra.mxu0 0.0
    %3298 = vmatprep.subr.mxu0 0.0
    %3299 = vmatpush1.msra.mxu0 0.0
    %3300 = vmatprep.subr.mxu0 0.0
    %3301 = vmatpush1.msra.mxu0 %v3257
    %3302 = vmatprep.subr.mxu0 0.0
    %3303 = vmatpush1.msra.mxu0 %v3256
    %3304 = vmatprep.subr.mxu0 0.0
    %3305 = vmatpush1.msra.mxu0 %v3255
    %3306 = vmatprep.subr.mxu0 0.0
    %3307 = vmatpush1.msra.mxu0 %v3254
    %3308 = vmatprep.subr.mxu0 0.0
    %3309 = vmatpush2.msra.mxu0 0.0
    %3310 = vmatprep.subr.mxu0 0.0
    %3311 = vmatpush2.msra.mxu0 0.0
    %3312 = vmatprep.subr.mxu0 0.0
    %3313 = vmatpush2.msra.mxu0 0.0
    %3314 = vmatprep.subr.mxu0 0.0
    %3315 = vmatpush2.msra.mxu0 0.0
    %3316 = vmatprep.subr.mxu0 0.0
    %3317 = vmatpush2.msra.mxu0 0.0
    %3318 = vmatprep.subr.mxu0 0.0
    %3319 = vmatpush2.msra.mxu0 0.0
    %3320 = vmatprep.subr.mxu0 0.0
    %3321 = vmatpush2.msra.mxu0 0.0
    %3322 = vmatprep.subr.mxu0 0.0
    %3323 = vmatpush2.msra.mxu0 0.0
    %3324 = vmatprep.subr.mxu0 0.0
    %3325 = vmatpush2.msra.mxu0 0.0
    %3326 = vmatprep.subr.mxu0 0.0
    %3327 = vmatpush2.msra.mxu0 0.0
    %3328 = vmatprep.subr.mxu0 0.0
    %3329 = vmatpush2.msra.mxu0 0.0
    %3330 = vmatprep.subr.mxu0 0.0
    %3331 = vmatpush2.msra.mxu0 0.0
    %3332 = vmatprep.subr.mxu0 0.0
    %3333 = vmatpush2.msra.mxu0 0.0
    %3334 = vmatprep.subr.mxu0 0.0
    %3335 = vmatpush2.msra.mxu0 0.0
    %3336 = vmatprep.subr.mxu0 0.0
    %3337 = vmatpush2.msra.mxu0 0.0
    %3338 = vmatprep.subr.mxu0 0.0
    %3339 = vmatpush2.msra.mxu0 0.0
    %3340 = vmatprep.mubr.f32.mxu0 0.0
    %3341 = vmatmul.mubr.f32.gmra.mxu0 %v3259
    %v3342 = vpop.f32.mrf.mxu0
    %v3343 = vadd.f32 0.0, %v3342
    %v3344 = vpop.f32.mrf.mxu0
    %3345 = vmatprep.mubr.f32.mxu0 0.0
    %3346 = vmatmul.mubr.f32.gmra.mxu0 %v3262
    %v3347 = vpop.f32.mrf.mxu0
    %v3348 = vadd.f32 0.0, %v3347
    %v3349 = vpop.f32.mrf.mxu0
    %3350 = vmatprep.mubr.f32.mxu0 0.0
    %3351 = vmatmul.mubr.f32.gmra.mxu0 %v3265
    %v3352 = vpop.f32.mrf.mxu0
    %v3353 = vadd.f32 0.0, %v3352
    %v3354 = vpop.f32.mrf.mxu0
    %3355 = vmatprep.mubr.f32.mxu0 0.0
    %3356 = vmatmul.mubr.f32.gmra.mxu0 %v3268
    %v3357 = vpop.f32.mrf.mxu0
    %v3358 = vadd.f32 0.0, %v3357
    %v3359 = vpop.f32.mrf.mxu0
    %3360 = vmatprep.mubr.f32.mxu0 0.0
    %3361 = vmatmul.mubr.f32.gmra.mxu0 %v3271
    %v3362 = vpop.f32.mrf.mxu0
    %v3363 = vadd.f32 0.0, %v3362
    %v3364 = vpop.f32.mrf.mxu0
    %3365 = vmatprep.mubr.f32.mxu0 0.0
    %3366 = vmatmul.mubr.f32.gmra.mxu0 %v3274
    %v3367 = vpop.f32.mrf.mxu0
    %v3368 = vadd.f32 0.0, %v3367
    %v3369 = vpop.f32.mrf.mxu0
    %3370 = vdwg.mxu0
    %v3371 = vadd.f32 %v2963, %v3343
    %v3372 = vadd.f32 %v2964, %v3348
    %v3373 = vadd.f32 %v2965, %v3353
    %v3374 = vadd.f32 %v2966, %v3358
    %v3375 = vadd.f32 %v2967, %v3363
    %v3376 = vadd.f32 %v2968, %v3368
    %v3377 = vld [vmem:[%s2 + $0x17] sm:$0x1]
    %v3378 = vlaneseq
    %v3379 = vshrl.u32 %v3378, 7
    %v3380 = vsub.s32 0, %v3379
    %v3381 = vrot.slane %v3377, %v3380
    %v3382 = vadd.f32 %v3371, %v3381
    %v3383 = vadd.f32 %v3372, %v3381
    %v3384 = vadd.f32 %v3373, %v3381
    %v3385 = vadd.f32 %v3374, %v3381
    %v3386 = vadd.f32 %v3375, %v3381
    %v3387 = vadd.f32 %v3376, %v3381
    %v3388 = vld [vmem:[%s2] sm:$0x1]
    %v3389 = vld [vmem:[%s2 + $0x1] sm:$0x1]
    %v3390 = vsel %vm188, %v3382, 0.0
    %3391 = vadd.xlane.f32.xlu0 %v3390
    %v3392 = vpop.xlane.xlu0 %3391
    %v3393 = vsel %vm188, %v3383, 0.0
    %3394 = vadd.xlane.f32.xlu0 %v3393
    %v3395 = vpop.xlane.xlu0 %3394
    %v3396 = vsel %vm188, %v3384, 0.0
    %3397 = vadd.xlane.f32.xlu0 %v3396
    %v3398 = vpop.xlane.xlu0 %3397
    %v3399 = vsel %vm188, %v3385, 0.0
    %3400 = vadd.xlane.f32.xlu0 %v3399
    %v3401 = vpop.xlane.xlu0 %3400
    %v3402 = vsel %vm188, %v3386, 0.0
    %3403 = vadd.xlane.f32.xlu0 %v3402
    %v3404 = vpop.xlane.xlu0 %3403
    %v3405 = vsel %vm188, %v3387, 0.0
    %3406 = vadd.xlane.f32.xlu0 %v3405
    %v3407 = vpop.xlane.xlu0 %3406
    %v3408 = vmul.f32 %v3392, %v207
    %v3409 = vmul.f32 %v3395, %v207
    %v3410 = vmul.f32 %v3398, %v207
    %v3411 = vmul.f32 %v3401, %v207
    %v3412 = vmul.f32 %v3404, %v207
    %v3413 = vmul.f32 %v3407, %v207
    %v3414 = vmul.f32 %v3382, %v3382
    %v3415 = vmul.f32 %v3383, %v3383
    %v3416 = vmul.f32 %v3384, %v3384
    %v3417 = vmul.f32 %v3385, %v3385
    %v3418 = vmul.f32 %v3386, %v3386
    %v3419 = vmul.f32 %v3387, %v3387
    %v3420 = vsel %vm188, %v3414, 0.0
    %3421 = vadd.xlane.f32.xlu0 %v3420
    %v3422 = vpop.xlane.xlu0 %3421
    %v3423 = vsel %vm188, %v3415, 0.0
    %3424 = vadd.xlane.f32.xlu0 %v3423
    %v3425 = vpop.xlane.xlu0 %3424
    %v3426 = vsel %vm188, %v3416, 0.0
    %3427 = vadd.xlane.f32.xlu0 %v3426
    %v3428 = vpop.xlane.xlu0 %3427
    %v3429 = vsel %vm188, %v3417, 0.0
    %3430 = vadd.xlane.f32.xlu0 %v3429
    %v3431 = vpop.xlane.xlu0 %3430
    %v3432 = vsel %vm188, %v3418, 0.0
    %3433 = vadd.xlane.f32.xlu0 %v3432
    %v3434 = vpop.xlane.xlu0 %3433
    %v3435 = vsel %vm188, %v3419, 0.0
    %3436 = vadd.xlane.f32.xlu0 %v3435
    %v3437 = vpop.xlane.xlu0 %3436
    %v3438 = vmul.f32 %v3422, %v207
    %v3439 = vmul.f32 %v3425, %v207
    %v3440 = vmul.f32 %v3428, %v207
    %v3441 = vmul.f32 %v3431, %v207
    %v3442 = vmul.f32 %v3434, %v207
    %v3443 = vmul.f32 %v3437, %v207
    %v3444 = vmul.f32 %v3408, %v3408
    %v3445 = vmul.f32 %v3409, %v3409
    %v3446 = vmul.f32 %v3410, %v3410
    %v3447 = vmul.f32 %v3411, %v3411
    %v3448 = vmul.f32 %v3412, %v3412
    %v3449 = vmul.f32 %v3413, %v3413
    %v3450 = vsub.f32 %v3438, %v3444
    %v3451 = vsub.f32 %v3439, %v3445
    %v3452 = vsub.f32 %v3440, %v3446
    %v3453 = vsub.f32 %v3441, %v3447
    %v3454 = vsub.f32 %v3442, %v3448
    %v3455 = vsub.f32 %v3443, %v3449
    %v3456 = vsub.f32 %v3382, %v3408
    %v3457 = vsub.f32 %v3383, %v3409
    %v3458 = vsub.f32 %v3384, %v3410
    %v3459 = vsub.f32 %v3385, %v3411
    %v3460 = vsub.f32 %v3386, %v3412
    %v3461 = vsub.f32 %v3387, %v3413
    %v3462 = vadd.f32 %v3450, 1e-06
    %v3463 = vadd.f32 %v3451, 1e-06
    %v3464 = vadd.f32 %v3452, 1e-06
    %v3465 = vadd.f32 %v3453, 1e-06
    %v3466 = vadd.f32 %v3454, 1e-06
    %v3467 = vadd.f32 %v3455, 1e-06
    %v3468 = vrsqrt.pop %v3462
    %v3469 = vrsqrt.pop %v3463
    %v3470 = vrsqrt.pop %v3464
    %v3471 = vrsqrt.pop %v3465
    %v3472 = vrsqrt.pop %v3466
    %v3473 = vrsqrt.pop %v3467
    %v3474 = vmul.f32 %v3456, %v3468
    %v3475 = vmul.f32 %v3457, %v3469
    %v3476 = vmul.f32 %v3458, %v3470
    %v3477 = vmul.f32 %v3459, %v3471
    %v3478 = vmul.f32 %v3460, %v3472
    %v3479 = vmul.f32 %v3461, %v3473
    %v3480 = vlaneseq
    %v3481 = vshrl.u32 %v3480, 7
    %v3482 = vsub.s32 0, %v3481
    %v3483 = vrot.slane %v3388, %v3482
    %v3484 = vmul.f32 %v3474, %v3483
    %v3485 = vmul.f32 %v3475, %v3483
    %v3486 = vmul.f32 %v3476, %v3483
    %v3487 = vmul.f32 %v3477, %v3483
    %v3488 = vmul.f32 %v3478, %v3483
    %v3489 = vmul.f32 %v3479, %v3483
    %v3490 = vlaneseq
    %v3491 = vshrl.u32 %v3490, 7
    %v3492 = vsub.s32 0, %v3491
    %v3493 = vrot.slane %v3389, %v3492
    %v3494 = vadd.f32 %v3484, %v3493
    %v3495 = vadd.f32 %v3485, %v3493
    %v3496 = vadd.f32 %v3486, %v3493
    %v3497 = vadd.f32 %v3487, %v3493
    %v3498 = vadd.f32 %v3488, %v3493
    %v3499 = vadd.f32 %v3489, %v3493
    %v3500 = vld [vmem:[%s2 + $0x2] sm:$0x1]
    %v3501 = vld [vmem:[%s2 + $0x3] sm:$0x1]
    %3503 = vset.pattern.permute.xlu0 0
    %3504 = vperm.xlu0 %3503, %v3501
    %v3505 = vpop.permute.xlu0 %3504
    %v3508 = vsel %vm188, %v3500, 0
    %v3511 = vsel %vm188, %v3494, 0
    %v3514 = vsel %vm188, %v3495, 0
    %v3517 = vsel %vm188, %v3496, 0
    %v3520 = vsel %vm188, %v3497, 0
    %v3523 = vsel %vm188, %v3498, 0
    %v3526 = vsel %vm188, %v3499, 0
    %3528 = vmatprep.subr.mxu0 0.0
    %3529 = vmatpush1.xpose.msra.mxu0 0.0
    %3530 = vmatprep.subr.mxu0 0.0
    %3531 = vmatpush1.xpose.msra.mxu0 0.0
    %3532 = vmatprep.subr.mxu0 0.0
    %3533 = vmatpush1.xpose.msra.mxu0 0.0
    %3534 = vmatprep.subr.mxu0 0.0
    %3535 = vmatpush1.xpose.msra.mxu0 0.0
    %3536 = vmatprep.subr.mxu0 0.0
    %3537 = vmatpush1.xpose.msra.mxu0 0.0
    %3538 = vmatprep.subr.mxu0 0.0
    %3539 = vmatpush1.xpose.msra.mxu0 0.0
    %3540 = vmatprep.subr.mxu0 0.0
    %3541 = vmatpush1.xpose.msra.mxu0 0.0
    %3542 = vmatprep.subr.mxu0 0.0
    %3543 = vmatpush1.xpose.msra.mxu0 0.0
    %3544 = vmatprep.subr.mxu0 0.0
    %3545 = vmatpush1.xpose.msra.mxu0 0.0
    %3546 = vmatprep.subr.mxu0 0.0
    %3547 = vmatpush1.xpose.msra.mxu0 0.0
    %3548 = vmatprep.subr.mxu0 0.0
    %3549 = vmatpush1.xpose.msra.mxu0 %v3526
    %3550 = vmatprep.subr.mxu0 0.0
    %3551 = vmatpush1.xpose.msra.mxu0 %v3523
    %3552 = vmatprep.subr.mxu0 0.0
    %3553 = vmatpush1.xpose.msra.mxu0 %v3520
    %3554 = vmatprep.subr.mxu0 0.0
    %3555 = vmatpush1.xpose.msra.mxu0 %v3517
    %3556 = vmatprep.subr.mxu0 0.0
    %3557 = vmatpush1.xpose.msra.mxu0 %v3514
    %3558 = vmatprep.subr.mxu0 0.0
    %3559 = vmatpush1.xpose.msra.mxu0 %v3511
    %3560 = vmatprep.subr.mxu0 0.0
    %3561 = vmatpush2.xpose.msra.mxu0 0.0
    %3562 = vmatprep.subr.mxu0 0.0
    %3563 = vmatpush2.xpose.msra.mxu0 0.0
    %3564 = vmatprep.subr.mxu0 0.0
    %3565 = vmatpush2.xpose.msra.mxu0 0.0
    %3566 = vmatprep.subr.mxu0 0.0
    %3567 = vmatpush2.xpose.msra.mxu0 0.0
    %3568 = vmatprep.subr.mxu0 0.0
    %3569 = vmatpush2.xpose.msra.mxu0 0.0
    %3570 = vmatprep.subr.mxu0 0.0
    %3571 = vmatpush2.xpose.msra.mxu0 0.0
    %3572 = vmatprep.subr.mxu0 0.0
    %3573 = vmatpush2.xpose.msra.mxu0 0.0
    %3574 = vmatprep.subr.mxu0 0.0
    %3575 = vmatpush2.xpose.msra.mxu0 0.0
    %3576 = vmatprep.subr.mxu0 0.0
    %3577 = vmatpush2.xpose.msra.mxu0 0.0
    %3578 = vmatprep.subr.mxu0 0.0
    %3579 = vmatpush2.xpose.msra.mxu0 0.0
    %3580 = vmatprep.subr.mxu0 0.0
    %3581 = vmatpush2.xpose.msra.mxu0 0.0
    %3582 = vmatprep.subr.mxu0 0.0
    %3583 = vmatpush2.xpose.msra.mxu0 0.0
    %3584 = vmatprep.subr.mxu0 0.0
    %3585 = vmatpush2.xpose.msra.mxu0 0.0
    %3586 = vmatprep.subr.mxu0 0.0
    %3587 = vmatpush2.xpose.msra.mxu0 0.0
    %3588 = vmatprep.subr.mxu0 0.0
    %3589 = vmatpush2.xpose.msra.mxu0 0.0
    %3590 = vmatprep.subr.mxu0 0.0
    %3591 = vmatpush2.xpose.msra.mxu0 0.0
    %3592 = vmatprep.mubr.f32.mxu0 0.0
    %3593 = vmatmul.mubr.f32.gmra.mxu0 %v3508
    %v3594 = vpop.f32.mrf.mxu0
    %v3595 = vadd.f32 %v3505, %v3594
    %v3596 = vpop.f32.mrf.mxu0
    %3597 = vdwg.mxu0
    %vm3598 = vcmask 385024
    %3599 = vst.msk [vmem:[#allocation2] sm:$0x1] %vm3598, %v3595
    // Predicated region
    $region18: #{tpu_custom_call.1} parent=1 // pred_check
      _
    $region19: #{tpu_custom_call.1} parent=1 // pred_check_branch
      %3601 = sbr.rel (0) target = $region21
    $region20: #{tpu_custom_call.1} parent=1 // pred_region
      %s3603 = ssub.s32 16, 16
      %3604 = vsyncadd [#allocation3], %s3603
      %s3606 = sshll.u32 [#allocation2], 4
      %s3607 = int_to_ptr.vmem [resolvable:$true] %s3606
      %3609 = dma.vmem_to_hbm [thread:$0]  %s3607, 16, %s4, [#allocation3]
    $region21: #{tpu_custom_call.1} parent=1 // pred_fallthru
      _
    // Predicated region
    $region22: #{tpu_custom_call.1} parent=1 // pred_check
      _
    $region23: #{tpu_custom_call.1} parent=1 // pred_check_branch
      %3611 = sbr.rel (0) target = $region25
    $region24: #{tpu_custom_call.1} parent=1 // pred_region
      %3612 = dma.done [#allocation3], 16
    $region25: #{tpu_custom_call.1} parent=1 // pred_fallthru
      _
    %3613 = vsyncpa [#allocation3], 1

</llo_original>
